<compile_context>
chip_gen: v7x
topology: tpu7x:2x2x1
jax: 0.10.0
libtpu: 0.0.40
codegen_flags: <defaults>
</compile_context>

<pallas_src>
import functools

import jax
import jax.numpy as jnp
from jax.experimental import pallas as pl
from jax.experimental.pallas import tpu as pltpu

# ---------------- small-config MiniViT hyperparameters ----------------
IMG = 16            # img_size (small)
PATCH = 4           # patch_size
IN_CH = 3           # in_channels
EMBED = 32          # embed_dim (small)
DEPTH = 2           # depth (small)
HEADS = 4           # heads
MLP_RATIO = 4.0
NUM_CLASSES = 10
LN_EPS = 1e-5

N_PATCHES = (IMG // PATCH) ** 2              # 16
SEQ = N_PATCHES + 1                          # 17 (cls token + patches)
S_PAD = ((SEQ + 7) // 8) * 8                 # 24: sublane-aligned padded sequence
HIDDEN = int(EMBED * MLP_RATIO)              # 128
HEAD_DIM = EMBED // HEADS                    # 8
SCALE = 1.0 / float(HEAD_DIM) ** 0.5
CPP = IN_CH * PATCH * PATCH                  # 48 pixels per patch
CPP_PAD = ((CPP + 1 + 15) // 16) * 16        # 64: indicator col + zero pad
OUT_PAD = 128                                # lane-dense output slab width
NEG = -1e30

# -------- packed bf16 weight slab layout (W_ROWS x 128 lanes) --------
PATCH_W_ROW = 0                              # (CPP_PAD, EMBED)
W_BLK_ROW = CPP_PAD                          # per-depth blocks start here
W_BLK_ROWS = 3 * EMBED + HIDDEN              # qkv(32) + proj(32) + fc1(32) + fc2(128) = 224
HEAD_W_ROW = W_BLK_ROW + DEPTH * W_BLK_ROWS  # 512
W_ROWS = HEAD_W_ROW + EMBED                  # 544  (multiple of 16)

# -------- packed f32 vector slab layout (V_ROWS x 128 lanes) --------
POS_ROW = 0                                  # (S_PAD, EMBED) pos + folded conv bias
V_BLK_ROW = S_PAD                            # per-depth 8-row blocks
V_BLK_ROWS = 8                               # ln1_g, ln1_b, qkv_b, proj_b, ln2_g, ln2_b, fc1_b, fc2_b
FIN_ROW = V_BLK_ROW + DEPTH * V_BLK_ROWS     # 40: norm_g, norm_b, head_ln_g, head_ln_b, head_b
V_ROWS = ((FIN_ROW + 5 + 7) // 8) * 8        # 48


def _layernorm(x, g, b):
    mu = jnp.mean(x, axis=-1, keepdims=True)
    var = jnp.mean((x - mu) ** 2, axis=-1, keepdims=True)
    return (x - mu) * jax.lax.rsqrt(var + LN_EPS) * g + b


# ---------------- single fused kernel: full MiniViT forward ----------------
def _fused_vit_kernel(patches_ref, w_ref, vec_ref, logits_ref, cls_ref, *, batch):
    R = batch * S_PAD

    # ---- additive attention mask, hoisted once:
    #      0 where (same batch block AND key < SEQ), -1e30 elsewhere ----
    key_iota = jax.lax.broadcasted_iota(jnp.int32, (S_PAD, S_PAD), 1)
    diag_blk = jnp.where(key_iota < SEQ, 0.0, NEG).astype(jnp.float32)
    off_blk = jnp.full((S_PAD, S_PAD), NEG, jnp.float32)
    mask_add = jnp.concatenate(
        [jnp.concatenate([diag_blk if j == i else off_blk for j in range(batch)], axis=1)
         for i in range(batch)], axis=0)                              # (R, R)

    # ---- patch embedding (+ cls token via indicator column) + pos (+conv bias) ----
    pos = vec_ref[POS_ROW:POS_ROW + S_PAD, 0:EMBED]                    # (S_PAD, D) f32
    pos_full = jnp.concatenate([pos] * batch, axis=0)                  # (R, D) in-kernel tile
    x = jnp.dot(patches_ref[...],
                w_ref[PATCH_W_ROW:PATCH_W_ROW + CPP_PAD, 0:EMBED],
                preferred_element_type=jnp.float32) + pos_full         # (R, D) f32

    for d in range(DEPTH):                                             # static unroll
        wb = W_BLK_ROW + d * W_BLK_ROWS
        vb = V_BLK_ROW + d * V_BLK_ROWS

        # ---------- multi-head self attention (pre-norm) ----------
        xn = _layernorm(x, vec_ref[vb + 0:vb + 1, 0:EMBED],
                        vec_ref[vb + 1:vb + 2, 0:EMBED])
        qkv = (jnp.dot(xn.astype(jnp.bfloat16),
                       w_ref[wb:wb + EMBED, 0:3 * EMBED],
                       preferred_element_type=jnp.float32)
               + vec_ref[vb + 2:vb + 3, 0:3 * EMBED])                  # (R, 96) f32

        ctx = []
        for h in range(HEADS):                                         # lane slices only
            c0 = h * HEAD_DIM
            q_h = qkv[:, c0:c0 + HEAD_DIM] * SCALE                     # scale in f32
            k_h = qkv[:, EMBED + c0:EMBED + c0 + HEAD_DIM]
            v_h = qkv[:, 2 * EMBED + c0:2 * EMBED + c0 + HEAD_DIM]
            s = jax.lax.dot_general(q_h, k_h, (((1,), (1,)), ((), ())),
                                    preferred_element_type=jnp.float32) + mask_add
            s = s - jnp.max(s, axis=-1, keepdims=True)
            p = jnp.exp(s)
            p = p * pl.reciprocal(jnp.sum(p, axis=-1, keepdims=True), approx=True)
            ctx.append(jnp.dot(p, v_h, preferred_element_type=jnp.float32))
        ctx = jnp.concatenate(ctx, axis=-1)                            # (R, D): heads on lanes

        attn = (jnp.dot(ctx.astype(jnp.bfloat16),
                        w_ref[wb + EMBED:wb + 2 * EMBED, 0:EMBED],     # un-split proj_w
                        preferred_element_type=jnp.float32)
                + vec_ref[vb + 3:vb + 4, 0:EMBED])
        x = x + attn

        # ---------- MLP (pre-norm) ----------
        xn2 = _layernorm(x, vec_ref[vb + 4:vb + 5, 0:EMBED],
                         vec_ref[vb + 5:vb + 6, 0:EMBED])
        h1 = (jnp.dot(xn2.astype(jnp.bfloat16),
                      w_ref[wb + 2 * EMBED:wb + 3 * EMBED, 0:HIDDEN],
                      preferred_element_type=jnp.float32)
              + vec_ref[vb + 6:vb + 7, 0:HIDDEN])
        # TODO(synk): PyTorch nn.GELU default is exact erf; tanh approximation used here.
        h1 = jax.nn.gelu(h1, approximate=True)
        h2 = (jnp.dot(h1.astype(jnp.bfloat16),
                      w_ref[wb + 3 * EMBED:wb + 3 * EMBED + HIDDEN, 0:EMBED],
                      preferred_element_type=jnp.float32)
              + vec_ref[vb + 7:vb + 8, 0:EMBED])
        x = x + h2

    # ---- final norm + MLP head on the whole slab (cls rows picked in wrapper) ----
    xn = _layernorm(x, vec_ref[FIN_ROW + 0:FIN_ROW + 1, 0:EMBED],
                    vec_ref[FIN_ROW + 1:FIN_ROW + 2, 0:EMBED])         # self.norm
    cls_ref[...] = jnp.concatenate(
        [xn, jnp.zeros((R, OUT_PAD - EMBED), jnp.float32)], axis=-1)   # lane-dense store
    y = _layernorm(xn, vec_ref[FIN_ROW + 2:FIN_ROW + 3, 0:EMBED],
                   vec_ref[FIN_ROW + 3:FIN_ROW + 4, 0:EMBED])          # mlp_head LayerNorm
    logits_ref[...] = (jnp.dot(y.astype(jnp.bfloat16),
                               w_ref[HEAD_W_ROW:HEAD_W_ROW + EMBED, 0:OUT_PAD],
                               preferred_element_type=jnp.float32)
                       + vec_ref[FIN_ROW + 4:FIN_ROW + 5, 0:OUT_PAD])


def _full_spec(shape):
    n = len(shape)
    return pl.BlockSpec(shape, lambda i, _n=n: (0,) * _n)


# ---------------- host-side glue ----------------
def extract_patches(x):
    # x: (B, C, H, W) NCHW -> (B, N, C*P*P) with (C, ph, pw) flatten order,
    # matching Conv2d(weight.reshape(D, C*P*P)) semantics.
    B, C, H, W = x.shape
    P = PATCH
    x = x.reshape(B, C, H // P, P, W // P, P)
    x = x.transpose(0, 2, 4, 1, 3, 5)                        # (B, Hp, Wp, C, P, P)
    return x.reshape(B, (H // P) * (W // P), C * P * P)


def build_ext_patches(x_img):
    # Rows per batch: [cls-indicator row, 16 patch rows, 7 zero pad rows],
    # columns: [indicator, C*P*P pixels, zero pad] -> (B*S_PAD, CPP_PAD).
    B = x_img.shape[0]
    patches = extract_patches(x_img)                         # (B, N, CPP)
    ext = jnp.zeros((B, S_PAD, CPP_PAD), jnp.float32)
    ext = ext.at[:, 0, 0].set(1.0)                           # cls indicator column
    ext = ext.at[:, 1:SEQ, 1:1 + CPP].set(patches)
    return ext.reshape(B * S_PAD, CPP_PAD)


def minivit_forward(x_img, kp, return_cls=False):
    B = x_img.shape[0]
    R = B * S_PAD
    patches_ext = build_ext_patches(x_img).astype(jnp.bfloat16)

    kernel = functools.partial(_fused_vit_kernel, batch=B)
    logits_full, cls_full = pl.pallas_call(
        kernel,
        out_shape=(jax.ShapeDtypeStruct((R, OUT_PAD), jnp.float32),
                   jax.ShapeDtypeStruct((R, OUT_PAD), jnp.float32)),
        grid=(1,),
        in_specs=[_full_spec(patches_ext.shape),
                  _full_spec(kp["w_slab"].shape),
                  _full_spec(kp["vec_slab"].shape)],
        out_specs=(pl.BlockSpec((R, OUT_PAD), lambda i: (0, 0)),
                   pl.BlockSpec((R, OUT_PAD), lambda i: (0, 0))),
        compiler_params=pltpu.CompilerParams(
            dimension_semantics=("arbitrary",)),
    )(patches_ext, kp["w_slab"], kp["vec_slab"])

    if return_cls:
        return cls_full[0::S_PAD][:B, :EMBED]
    return logits_full[0::S_PAD][:B, :NUM_CLASSES]


# ---------------- deterministic parameter init (PyTorch-equivalent layout) ----------------
def init_params(key):
    def nrm(k, shape, std=0.02):
        return std * jax.random.normal(k, shape, jnp.float32)

    keys = iter(jax.random.split(key, 64))
    p = {}
    conv_w = nrm(next(keys), (EMBED, IN_CH, PATCH, PATCH))   # Conv2d(C, D, P, P)
    p["patch_w"] = conv_w.reshape(EMBED, CPP).T              # (CPP, D) matmul form
    p["patch_b"] = jnp.zeros((EMBED,), jnp.float32)
    p["cls_token"] = nrm(next(keys), (1, 1, EMBED))
    p["pos_embed"] = nrm(next(keys), (1, SEQ, EMBED))
    p["blocks"] = []
    for _ in range(DEPTH):
        p["blocks"].append({
            "ln1_g": jnp.ones((EMBED,), jnp.float32),
            "ln1_b": jnp.zeros((EMBED,), jnp.float32),
            "qkv_w": nrm(next(keys), (EMBED, 3 * EMBED)),
            "qkv_b": jnp.zeros((3 * EMBED,), jnp.float32),
            "proj_w": nrm(next(keys), (EMBED, EMBED)),
            "proj_b": jnp.zeros((EMBED,), jnp.float32),
            "ln2_g": jnp.ones((EMBED,), jnp.float32),
            "ln2_b": jnp.zeros((EMBED,), jnp.float32),
            "fc1_w": nrm(next(keys), (EMBED, HIDDEN)),
            "fc1_b": jnp.zeros((HIDDEN,), jnp.float32),
            "fc2_w": nrm(next(keys), (HIDDEN, EMBED)),
            "fc2_b": jnp.zeros((EMBED,), jnp.float32),
        })
    p["norm_g"] = jnp.ones((EMBED,), jnp.float32)
    p["norm_b"] = jnp.zeros((EMBED,), jnp.float32)
    p["head_ln_g"] = jnp.ones((EMBED,), jnp.float32)
    p["head_ln_b"] = jnp.zeros((EMBED,), jnp.float32)
    p["head_w"] = nrm(next(keys), (EMBED, NUM_CLASSES))
    p["head_b"] = jnp.zeros((NUM_CLASSES,), jnp.float32)
    return p


def prepare_params(p):
    """Pack logical params into two VMEM slabs:
       one bf16 weight slab and one f32 LN/bias/pos slab (static row offsets)."""
    D = EMBED

    # -------- bf16 weight slab (W_ROWS x 128) --------
    w = jnp.zeros((W_ROWS, OUT_PAD), jnp.float32)
    # cls token folded into patch matmul via indicator column; cancel the folded conv
    # bias (which lives in the pos rows) for the cls row.
    cls_row = p["cls_token"].reshape(1, D) - p["patch_b"].reshape(1, D)
    w = w.at[PATCH_W_ROW:PATCH_W_ROW + 1, :D].set(cls_row)
    w = w.at[PATCH_W_ROW + 1:PATCH_W_ROW + 1 + CPP, :D].set(p["patch_w"])
    for d, blk in enumerate(p["blocks"]):
        wb = W_BLK_ROW + d * W_BLK_ROWS
        w = w.at[wb:wb + D, :3 * D].set(blk["qkv_w"])                      # fused QKV
        w = w.at[wb + D:wb + 2 * D, :D].set(blk["proj_w"])                 # un-split out proj
        w = w.at[wb + 2 * D:wb + 3 * D, :HIDDEN].set(blk["fc1_w"])
        w = w.at[wb + 3 * D:wb + 3 * D + HIDDEN, :D].set(blk["fc2_w"])
    w = w.at[HEAD_W_ROW:HEAD_W_ROW + D, :NUM_CLASSES].set(p["head_w"])

    # -------- f32 vector slab (V_ROWS x 128) --------
    v = jnp.zeros((V_ROWS, OUT_PAD), jnp.float32)
    pos_bias = p["pos_embed"][0] + p["patch_b"].reshape(1, D)              # fold conv bias
    v = v.at[POS_ROW:POS_ROW + SEQ, :D].set(pos_bias)
    for d, blk in enumerate(p["blocks"]):
        vb = V_BLK_ROW + d * V_BLK_ROWS
        v = v.at[vb + 0, :D].set(blk["ln1_g"])
        v = v.at[vb + 1, :D].set(blk["ln1_b"])
        v = v.at[vb + 2, :3 * D].set(blk["qkv_b"])
        v = v.at[vb + 3, :D].set(blk["proj_b"])
        v = v.at[vb + 4, :D].set(blk["ln2_g"])
        v = v.at[vb + 5, :D].set(blk["ln2_b"])
        v = v.at[vb + 6, :HIDDEN].set(blk["fc1_b"])
        v = v.at[vb + 7, :D].set(blk["fc2_b"])
    v = v.at[FIN_ROW + 0, :D].set(p["norm_g"])
    v = v.at[FIN_ROW + 1, :D].set(p["norm_b"])
    v = v.at[FIN_ROW + 2, :D].set(p["head_ln_g"])
    v = v.at[FIN_ROW + 3, :D].set(p["head_ln_b"])
    v = v.at[FIN_ROW + 4, :NUM_CLASSES].set(p["head_b"])

    return {"w_slab": w.astype(jnp.bfloat16), "vec_slab": v}


if __name__ == "__main__":
    root = jax.random.PRNGKey(0)
    kparams = prepare_params(init_params(root))
    x = jax.random.normal(jax.random.fold_in(root, 123),
                          (2, IN_CH, IMG, IMG), jnp.float32)   # NCHW like PyTorch
    fwd = jax.jit(functools.partial(minivit_forward, return_cls=False))
    logits = jax.block_until_ready(fwd(x, kparams))
    assert logits.shape == (2, NUM_CLASSES)
    assert bool(jnp.all(jnp.isfinite(logits)))
    print("KERNEL_OK")
</pallas_src>

<mosaic_0001>
module attributes {stable_mosaic.version = 11 : i64} {
  func.func @_fused_vit_kernel(%arg0: i32, %arg1: memref<48x64xbf16, #tpu.memory_space<vmem>>, %arg2: memref<544x128xbf16, #tpu.memory_space<vmem>>, %arg3: memref<48x128xf32, #tpu.memory_space<vmem>>, %arg4: memref<48x128xf32, #tpu.memory_space<vmem>>, %arg5: memref<48x128xf32, #tpu.memory_space<vmem>>) attributes {dimension_semantics = [#tpu.dimension_semantics<arbitrary>], iteration_bounds = array<i64: 1>, scalar_prefetch = 0 : i64, scratch_operands = 0 : i64, tpu.core_type = #tpu.core_type<tc>, window_params = [{pipeline_mode = #tpu.pipeline_mode<synchronous>, transform_indices = @transform_0, window_bounds = array<i64: 48, 64>}, {pipeline_mode = #tpu.pipeline_mode<synchronous>, transform_indices = @transform_1, window_bounds = array<i64: 544, 128>}, {pipeline_mode = #tpu.pipeline_mode<synchronous>, transform_indices = @transform_2, window_bounds = array<i64: 48, 128>}, {pipeline_mode = #tpu.pipeline_mode<synchronous>, transform_indices = @transform_3, window_bounds = array<i64: 48, 128>}, {pipeline_mode = #tpu.pipeline_mode<synchronous>, transform_indices = @transform_4, window_bounds = array<i64: 48, 128>}]} {
    %0 = tpu.iota {dimensions = array<i32: 1>} : vector<24x24xi32>
    %c17_i32 = arith.constant 17 : i32
    %1 = vector.broadcast %c17_i32 : i32 to vector<24x24xi32>
    %2 = arith.cmpi slt, %0, %1 : vector<24x24xi32>
    %cst = arith.constant 0.000000e+00 : f32
    %cst_0 = arith.constant -1.000000e+30 : f32
    %3 = vector.broadcast %cst : f32 to vector<24x24xf32>
    %4 = vector.broadcast %cst_0 : f32 to vector<24x24xf32>
    %5 = arith.select %2, %3, %4 : vector<24x24xi1>, vector<24x24xf32>
    %cst_1 = arith.constant -1.000000e+30 : f32
    %6 = vector.broadcast %cst_1 : f32 to vector<24x24xf32>
    %7 = tpu.concatenate %5, %6 in 1 : vector<24x24xf32>, vector<24x24xf32> -> vector<24x48xf32>
    %8 = tpu.concatenate %6, %5 in 1 : vector<24x24xf32>, vector<24x24xf32> -> vector<24x48xf32>
    %9 = tpu.concatenate %7, %8 in 0 : vector<24x48xf32>, vector<24x48xf32> -> vector<48x48xf32>
    %c0 = arith.constant 0 : index
    %c0_2 = arith.constant 0 : index
    %10 = vector.load %arg3[%c0, %c0_2] : memref<48x128xf32, #tpu.memory_space<vmem>>, vector<24x32xf32>
    %11 = tpu.concatenate %10, %10 in 0 : vector<24x32xf32>, vector<24x32xf32> -> vector<48x32xf32>
    %c0_3 = arith.constant 0 : index
    %c0_4 = arith.constant 0 : index
    %12 = vector.load %arg1[%c0_3, %c0_4] : memref<48x64xbf16, #tpu.memory_space<vmem>>, vector<48x64xbf16>
    %c0_5 = arith.constant 0 : index
    %c0_6 = arith.constant 0 : index
    %13 = vector.load %arg2[%c0_5, %c0_6] : memref<544x128xbf16, #tpu.memory_space<vmem>>, vector<64x32xbf16>
    %cst_7 = arith.constant dense<0.000000e+00> : vector<48x32xf32>
    %14 = tpu.matmul %12, %13, %cst_7 {dimension_numbers = #tpu.dot_dimension_numbers<[1], [0], [0], [1], [0, 0, 1, 1], [], []>} : vector<48x64xbf16>, vector<64x32xbf16>, vector<48x32xf32> -> vector<48x32xf32>
    %15 = arith.addf %14, %11 : vector<48x32xf32>
    %c24 = arith.constant 24 : index
    %c0_8 = arith.constant 0 : index
    %16 = vector.load %arg3[%c24, %c0_8] : memref<48x128xf32, #tpu.memory_space<vmem>>, vector<1x32xf32>
    %c25 = arith.constant 25 : index
    %c0_9 = arith.constant 0 : index
    %17 = vector.load %arg3[%c25, %c0_9] : memref<48x128xf32, #tpu.memory_space<vmem>>, vector<1x32xf32>
    %cst_10 = arith.constant dense<0.000000e+00> : vector<48xf32>
    %18 = vector.multi_reduction <add>, %15, %cst_10 [1] : vector<48x32xf32> to vector<48xf32>
    %19 = vector.shape_cast %18 : vector<48xf32> to vector<48x1xf32>
    %cst_11 = arith.constant 3.200000e+01 : f32
    %20 = vector.broadcast %cst_11 : f32 to vector<48x1xf32>
    %21 = arith.divf %19, %20 : vector<48x1xf32>
    %22 = vector.broadcast %21 : vector<48x1xf32> to vector<48x32xf32>
    %23 = arith.subf %15, %22 : vector<48x32xf32>
    %24 = arith.mulf %23, %23 : vector<48x32xf32>
    %cst_12 = arith.constant dense<0.000000e+00> : vector<48xf32>
    %25 = vector.multi_reduction <add>, %24, %cst_12 [1] : vector<48x32xf32> to vector<48xf32>
    %26 = vector.shape_cast %25 : vector<48xf32> to vector<48x1xf32>
    %cst_13 = arith.constant 3.200000e+01 : f32
    %27 = vector.broadcast %cst_13 : f32 to vector<48x1xf32>
    %28 = arith.divf %26, %27 : vector<48x1xf32>
    %29 = vector.broadcast %21 : vector<48x1xf32> to vector<48x32xf32>
    %30 = arith.subf %15, %29 : vector<48x32xf32>
    %cst_14 = arith.constant 9.99999974E-6 : f32
    %31 = vector.broadcast %cst_14 : f32 to vector<48x1xf32>
    %32 = arith.addf %28, %31 : vector<48x1xf32>
    %33 = math.rsqrt %32 : vector<48x1xf32>
    %34 = vector.broadcast %33 : vector<48x1xf32> to vector<48x32xf32>
    %35 = arith.mulf %30, %34 : vector<48x32xf32>
    %36 = vector.broadcast %16 : vector<1x32xf32> to vector<48x32xf32>
    %37 = arith.mulf %35, %36 : vector<48x32xf32>
    %38 = vector.broadcast %17 : vector<1x32xf32> to vector<48x32xf32>
    %39 = arith.addf %37, %38 : vector<48x32xf32>
    %40 = arith.truncf %39 : vector<48x32xf32> to vector<48x32xbf16>
    %c64 = arith.constant 64 : index
    %c0_15 = arith.constant 0 : index
    %41 = vector.load %arg2[%c64, %c0_15] : memref<544x128xbf16, #tpu.memory_space<vmem>>, vector<32x96xbf16>
    %cst_16 = arith.constant dense<0.000000e+00> : vector<48x96xf32>
    %42 = tpu.matmul %40, %41, %cst_16 {dimension_numbers = #tpu.dot_dimension_numbers<[1], [0], [0], [1], [0, 0, 1, 1], [], []>} : vector<48x32xbf16>, vector<32x96xbf16>, vector<48x96xf32> -> vector<48x96xf32>
    %c26 = arith.constant 26 : index
    %c0_17 = arith.constant 0 : index
    %43 = vector.load %arg3[%c26, %c0_17] : memref<48x128xf32, #tpu.memory_space<vmem>>, vector<1x96xf32>
    %44 = vector.broadcast %43 : vector<1x96xf32> to vector<48x96xf32>
    %45 = arith.addf %42, %44 : vector<48x96xf32>
    %46 = vector.extract_strided_slice %45 {offsets = [0, 0], sizes = [48, 8], strides = [1, 1]} : vector<48x96xf32> to vector<48x8xf32>
    %cst_18 = arith.constant 0.353553385 : f32
    %47 = vector.broadcast %cst_18 : f32 to vector<48x8xf32>
    %48 = arith.mulf %46, %47 : vector<48x8xf32>
    %49 = vector.extract_strided_slice %45 {offsets = [0, 32], sizes = [48, 8], strides = [1, 1]} : vector<48x96xf32> to vector<48x8xf32>
    %50 = vector.extract_strided_slice %45 {offsets = [0, 64], sizes = [48, 8], strides = [1, 1]} : vector<48x96xf32> to vector<48x8xf32>
    %cst_19 = arith.constant dense<0.000000e+00> : vector<48x48xf32>
    %51 = tpu.matmul %48, %49, %cst_19 {dimension_numbers = #tpu.dot_dimension_numbers<[1], [1], [0], [0], [0, 0, 1, 0], [], []>} : vector<48x8xf32>, vector<48x8xf32>, vector<48x48xf32> -> vector<48x48xf32>
    %52 = arith.addf %51, %9 : vector<48x48xf32>
    %cst_20 = arith.constant dense<0xFF800000> : vector<48xf32>
    %53 = vector.multi_reduction <maximumf>, %52, %cst_20 [1] : vector<48x48xf32> to vector<48xf32>
    %54 = vector.shape_cast %53 : vector<48xf32> to vector<48x1xf32>
    %55 = vector.broadcast %54 : vector<48x1xf32> to vector<48x48xf32>
    %56 = arith.subf %52, %55 : vector<48x48xf32>
    %57 = math.exp %56 : vector<48x48xf32>
    %cst_21 = arith.constant dense<0.000000e+00> : vector<48xf32>
    %58 = vector.multi_reduction <add>, %57, %cst_21 [1] : vector<48x48xf32> to vector<48xf32>
    %59 = vector.shape_cast %58 : vector<48xf32> to vector<48x1xf32>
    %60 = tpu.reciprocal %59 {approx = true} : vector<48x1xf32> -> vector<48x1xf32>
    %61 = vector.broadcast %60 : vector<48x1xf32> to vector<48x48xf32>
    %62 = arith.mulf %57, %61 : vector<48x48xf32>
    %cst_22 = arith.constant dense<0.000000e+00> : vector<48x8xf32>
    %63 = tpu.matmul %62, %50, %cst_22 {dimension_numbers = #tpu.dot_dimension_numbers<[1], [0], [0], [1], [0, 0, 1, 1], [], []>} : vector<48x48xf32>, vector<48x8xf32>, vector<48x8xf32> -> vector<48x8xf32>
    %64 = vector.extract_strided_slice %45 {offsets = [0, 8], sizes = [48, 8], strides = [1, 1]} : vector<48x96xf32> to vector<48x8xf32>
    %cst_23 = arith.constant 0.353553385 : f32
    %65 = vector.broadcast %cst_23 : f32 to vector<48x8xf32>
    %66 = arith.mulf %64, %65 : vector<48x8xf32>
    %67 = vector.extract_strided_slice %45 {offsets = [0, 40], sizes = [48, 8], strides = [1, 1]} : vector<48x96xf32> to vector<48x8xf32>
    %68 = vector.extract_strided_slice %45 {offsets = [0, 72], sizes = [48, 8], strides = [1, 1]} : vector<48x96xf32> to vector<48x8xf32>
    %cst_24 = arith.constant dense<0.000000e+00> : vector<48x48xf32>
    %69 = tpu.matmul %66, %67, %cst_24 {dimension_numbers = #tpu.dot_dimension_numbers<[1], [1], [0], [0], [0, 0, 1, 0], [], []>} : vector<48x8xf32>, vector<48x8xf32>, vector<48x48xf32> -> vector<48x48xf32>
    %70 = arith.addf %69, %9 : vector<48x48xf32>
    %cst_25 = arith.constant dense<0xFF800000> : vector<48xf32>
    %71 = vector.multi_reduction <maximumf>, %70, %cst_25 [1] : vector<48x48xf32> to vector<48xf32>
    %72 = vector.shape_cast %71 : vector<48xf32> to vector<48x1xf32>
    %73 = vector.broadcast %72 : vector<48x1xf32> to vector<48x48xf32>
    %74 = arith.subf %70, %73 : vector<48x48xf32>
    %75 = math.exp %74 : vector<48x48xf32>
    %cst_26 = arith.constant dense<0.000000e+00> : vector<48xf32>
    %76 = vector.multi_reduction <add>, %75, %cst_26 [1] : vector<48x48xf32> to vector<48xf32>
    %77 = vector.shape_cast %76 : vector<48xf32> to vector<48x1xf32>
    %78 = tpu.reciprocal %77 {approx = true} : vector<48x1xf32> -> vector<48x1xf32>
    %79 = vector.broadcast %78 : vector<48x1xf32> to vector<48x48xf32>
    %80 = arith.mulf %75, %79 : vector<48x48xf32>
    %cst_27 = arith.constant dense<0.000000e+00> : vector<48x8xf32>
    %81 = tpu.matmul %80, %68, %cst_27 {dimension_numbers = #tpu.dot_dimension_numbers<[1], [0], [0], [1], [0, 0, 1, 1], [], []>} : vector<48x48xf32>, vector<48x8xf32>, vector<48x8xf32> -> vector<48x8xf32>
    %82 = vector.extract_strided_slice %45 {offsets = [0, 16], sizes = [48, 8], strides = [1, 1]} : vector<48x96xf32> to vector<48x8xf32>
    %cst_28 = arith.constant 0.353553385 : f32
    %83 = vector.broadcast %cst_28 : f32 to vector<48x8xf32>
    %84 = arith.mulf %82, %83 : vector<48x8xf32>
    %85 = vector.extract_strided_slice %45 {offsets = [0, 48], sizes = [48, 8], strides = [1, 1]} : vector<48x96xf32> to vector<48x8xf32>
    %86 = vector.extract_strided_slice %45 {offsets = [0, 80], sizes = [48, 8], strides = [1, 1]} : vector<48x96xf32> to vector<48x8xf32>
    %cst_29 = arith.constant dense<0.000000e+00> : vector<48x48xf32>
    %87 = tpu.matmul %84, %85, %cst_29 {dimension_numbers = #tpu.dot_dimension_numbers<[1], [1], [0], [0], [0, 0, 1, 0], [], []>} : vector<48x8xf32>, vector<48x8xf32>, vector<48x48xf32> -> vector<48x48xf32>
    %88 = arith.addf %87, %9 : vector<48x48xf32>
    %cst_30 = arith.constant dense<0xFF800000> : vector<48xf32>
    %89 = vector.multi_reduction <maximumf>, %88, %cst_30 [1] : vector<48x48xf32> to vector<48xf32>
    %90 = vector.shape_cast %89 : vector<48xf32> to vector<48x1xf32>
    %91 = vector.broadcast %90 : vector<48x1xf32> to vector<48x48xf32>
    %92 = arith.subf %88, %91 : vector<48x48xf32>
    %93 = math.exp %92 : vector<48x48xf32>
    %cst_31 = arith.constant dense<0.000000e+00> : vector<48xf32>
    %94 = vector.multi_reduction <add>, %93, %cst_31 [1] : vector<48x48xf32> to vector<48xf32>
    %95 = vector.shape_cast %94 : vector<48xf32> to vector<48x1xf32>
    %96 = tpu.reciprocal %95 {approx = true} : vector<48x1xf32> -> vector<48x1xf32>
    %97 = vector.broadcast %96 : vector<48x1xf32> to vector<48x48xf32>
    %98 = arith.mulf %93, %97 : vector<48x48xf32>
    %cst_32 = arith.constant dense<0.000000e+00> : vector<48x8xf32>
    %99 = tpu.matmul %98, %86, %cst_32 {dimension_numbers = #tpu.dot_dimension_numbers<[1], [0], [0], [1], [0, 0, 1, 1], [], []>} : vector<48x48xf32>, vector<48x8xf32>, vector<48x8xf32> -> vector<48x8xf32>
    %100 = vector.extract_strided_slice %45 {offsets = [0, 24], sizes = [48, 8], strides = [1, 1]} : vector<48x96xf32> to vector<48x8xf32>
    %cst_33 = arith.constant 0.353553385 : f32
    %101 = vector.broadcast %cst_33 : f32 to vector<48x8xf32>
    %102 = arith.mulf %100, %101 : vector<48x8xf32>
    %103 = vector.extract_strided_slice %45 {offsets = [0, 56], sizes = [48, 8], strides = [1, 1]} : vector<48x96xf32> to vector<48x8xf32>
    %104 = vector.extract_strided_slice %45 {offsets = [0, 88], sizes = [48, 8], strides = [1, 1]} : vector<48x96xf32> to vector<48x8xf32>
    %cst_34 = arith.constant dense<0.000000e+00> : vector<48x48xf32>
    %105 = tpu.matmul %102, %103, %cst_34 {dimension_numbers = #tpu.dot_dimension_numbers<[1], [1], [0], [0], [0, 0, 1, 0], [], []>} : vector<48x8xf32>, vector<48x8xf32>, vector<48x48xf32> -> vector<48x48xf32>
    %106 = arith.addf %105, %9 : vector<48x48xf32>
    %cst_35 = arith.constant dense<0xFF800000> : vector<48xf32>
    %107 = vector.multi_reduction <maximumf>, %106, %cst_35 [1] : vector<48x48xf32> to vector<48xf32>
    %108 = vector.shape_cast %107 : vector<48xf32> to vector<48x1xf32>
    %109 = vector.broadcast %108 : vector<48x1xf32> to vector<48x48xf32>
    %110 = arith.subf %106, %109 : vector<48x48xf32>
    %111 = math.exp %110 : vector<48x48xf32>
    %cst_36 = arith.constant dense<0.000000e+00> : vector<48xf32>
    %112 = vector.multi_reduction <add>, %111, %cst_36 [1] : vector<48x48xf32> to vector<48xf32>
    %113 = vector.shape_cast %112 : vector<48xf32> to vector<48x1xf32>
    %114 = tpu.reciprocal %113 {approx = true} : vector<48x1xf32> -> vector<48x1xf32>
    %115 = vector.broadcast %114 : vector<48x1xf32> to vector<48x48xf32>
    %116 = arith.mulf %111, %115 : vector<48x48xf32>
    %cst_37 = arith.constant dense<0.000000e+00> : vector<48x8xf32>
    %117 = tpu.matmul %116, %104, %cst_37 {dimension_numbers = #tpu.dot_dimension_numbers<[1], [0], [0], [1], [0, 0, 1, 1], [], []>} : vector<48x48xf32>, vector<48x8xf32>, vector<48x8xf32> -> vector<48x8xf32>
    %118 = tpu.concatenate %63, %81, %99, %117 in 1 : vector<48x8xf32>, vector<48x8xf32>, vector<48x8xf32>, vector<48x8xf32> -> vector<48x32xf32>
    %119 = arith.truncf %118 : vector<48x32xf32> to vector<48x32xbf16>
    %c96 = arith.constant 96 : index
    %c0_38 = arith.constant 0 : index
    %120 = vector.load %arg2[%c96, %c0_38] : memref<544x128xbf16, #tpu.memory_space<vmem>>, vector<32x32xbf16>
    %cst_39 = arith.constant dense<0.000000e+00> : vector<48x32xf32>
    %121 = tpu.matmul %119, %120, %cst_39 {dimension_numbers = #tpu.dot_dimension_numbers<[1], [0], [0], [1], [0, 0, 1, 1], [], []>} : vector<48x32xbf16>, vector<32x32xbf16>, vector<48x32xf32> -> vector<48x32xf32>
    %c27 = arith.constant 27 : index
    %c0_40 = arith.constant 0 : index
    %122 = vector.load %arg3[%c27, %c0_40] : memref<48x128xf32, #tpu.memory_space<vmem>>, vector<1x32xf32>
    %123 = vector.broadcast %122 : vector<1x32xf32> to vector<48x32xf32>
    %124 = arith.addf %121, %123 : vector<48x32xf32>
    %125 = arith.addf %15, %124 : vector<48x32xf32>
    %c28 = arith.constant 28 : index
    %c0_41 = arith.constant 0 : index
    %126 = vector.load %arg3[%c28, %c0_41] : memref<48x128xf32, #tpu.memory_space<vmem>>, vector<1x32xf32>
    %c29 = arith.constant 29 : index
    %c0_42 = arith.constant 0 : index
    %127 = vector.load %arg3[%c29, %c0_42] : memref<48x128xf32, #tpu.memory_space<vmem>>, vector<1x32xf32>
    %cst_43 = arith.constant dense<0.000000e+00> : vector<48xf32>
    %128 = vector.multi_reduction <add>, %125, %cst_43 [1] : vector<48x32xf32> to vector<48xf32>
    %129 = vector.shape_cast %128 : vector<48xf32> to vector<48x1xf32>
    %cst_44 = arith.constant 3.200000e+01 : f32
    %130 = vector.broadcast %cst_44 : f32 to vector<48x1xf32>
    %131 = arith.divf %129, %130 : vector<48x1xf32>
    %132 = vector.broadcast %131 : vector<48x1xf32> to vector<48x32xf32>
    %133 = arith.subf %125, %132 : vector<48x32xf32>
    %134 = arith.mulf %133, %133 : vector<48x32xf32>
    %cst_45 = arith.constant dense<0.000000e+00> : vector<48xf32>
    %135 = vector.multi_reduction <add>, %134, %cst_45 [1] : vector<48x32xf32> to vector<48xf32>
    %136 = vector.shape_cast %135 : vector<48xf32> to vector<48x1xf32>
    %cst_46 = arith.constant 3.200000e+01 : f32
    %137 = vector.broadcast %cst_46 : f32 to vector<48x1xf32>
    %138 = arith.divf %136, %137 : vector<48x1xf32>
    %139 = vector.broadcast %131 : vector<48x1xf32> to vector<48x32xf32>
    %140 = arith.subf %125, %139 : vector<48x32xf32>
    %cst_47 = arith.constant 9.99999974E-6 : f32
    %141 = vector.broadcast %cst_47 : f32 to vector<48x1xf32>
    %142 = arith.addf %138, %141 : vector<48x1xf32>
    %143 = math.rsqrt %142 : vector<48x1xf32>
    %144 = vector.broadcast %143 : vector<48x1xf32> to vector<48x32xf32>
    %145 = arith.mulf %140, %144 : vector<48x32xf32>
    %146 = vector.broadcast %126 : vector<1x32xf32> to vector<48x32xf32>
    %147 = arith.mulf %145, %146 : vector<48x32xf32>
    %148 = vector.broadcast %127 : vector<1x32xf32> to vector<48x32xf32>
    %149 = arith.addf %147, %148 : vector<48x32xf32>
    %150 = arith.truncf %149 : vector<48x32xf32> to vector<48x32xbf16>
    %c128 = arith.constant 128 : index
    %c0_48 = arith.constant 0 : index
    %151 = vector.load %arg2[%c128, %c0_48] : memref<544x128xbf16, #tpu.memory_space<vmem>>, vector<32x128xbf16>
    %cst_49 = arith.constant dense<0.000000e+00> : vector<48x128xf32>
    %152 = tpu.matmul %150, %151, %cst_49 {dimension_numbers = #tpu.dot_dimension_numbers<[1], [0], [0], [1], [0, 0, 1, 1], [], []>} : vector<48x32xbf16>, vector<32x128xbf16>, vector<48x128xf32> -> vector<48x128xf32>
    %c30 = arith.constant 30 : index
    %c0_50 = arith.constant 0 : index
    %153 = vector.load %arg3[%c30, %c0_50] : memref<48x128xf32, #tpu.memory_space<vmem>>, vector<1x128xf32>
    %154 = vector.broadcast %153 : vector<1x128xf32> to vector<48x128xf32>
    %155 = arith.addf %152, %154 : vector<48x128xf32>
    %156 = arith.mulf %155, %155 : vector<48x128xf32>
    %157 = arith.mulf %155, %156 : vector<48x128xf32>
    %cst_51 = arith.constant 4.471500e-02 : f32
    %158 = vector.broadcast %cst_51 : f32 to vector<48x128xf32>
    %159 = arith.mulf %158, %157 : vector<48x128xf32>
    %160 = arith.addf %155, %159 : vector<48x128xf32>
    %cst_52 = arith.constant 0.797884583 : f32
    %161 = vector.broadcast %cst_52 : f32 to vector<48x128xf32>
    %162 = arith.mulf %161, %160 : vector<48x128xf32>
    %163 = math.tanh %162 : vector<48x128xf32>
    %cst_53 = arith.constant 1.000000e+00 : f32
    %164 = vector.broadcast %cst_53 : f32 to vector<48x128xf32>
    %165 = arith.addf %164, %163 : vector<48x128xf32>
    %cst_54 = arith.constant 5.000000e-01 : f32
    %166 = vector.broadcast %cst_54 : f32 to vector<48x128xf32>
    %167 = arith.mulf %166, %165 : vector<48x128xf32>
    %168 = arith.mulf %155, %167 : vector<48x128xf32>
    %169 = arith.truncf %168 : vector<48x128xf32> to vector<48x128xbf16>
    %c160 = arith.constant 160 : index
    %c0_55 = arith.constant 0 : index
    %170 = vector.load %arg2[%c160, %c0_55] : memref<544x128xbf16, #tpu.memory_space<vmem>>, vector<128x32xbf16>
    %cst_56 = arith.constant dense<0.000000e+00> : vector<48x32xf32>
    %171 = tpu.matmul %169, %170, %cst_56 {dimension_numbers = #tpu.dot_dimension_numbers<[1], [0], [0], [1], [0, 0, 1, 1], [], []>} : vector<48x128xbf16>, vector<128x32xbf16>, vector<48x32xf32> -> vector<48x32xf32>
    %c31 = arith.constant 31 : index
    %c0_57 = arith.constant 0 : index
    %172 = vector.load %arg3[%c31, %c0_57] : memref<48x128xf32, #tpu.memory_space<vmem>>, vector<1x32xf32>
    %173 = vector.broadcast %172 : vector<1x32xf32> to vector<48x32xf32>
    %174 = arith.addf %171, %173 : vector<48x32xf32>
    %175 = arith.addf %125, %174 : vector<48x32xf32>
    %c32 = arith.constant 32 : index
    %c0_58 = arith.constant 0 : index
    %176 = vector.load %arg3[%c32, %c0_58] : memref<48x128xf32, #tpu.memory_space<vmem>>, vector<1x32xf32>
    %c33 = arith.constant 33 : index
    %c0_59 = arith.constant 0 : index
    %177 = vector.load %arg3[%c33, %c0_59] : memref<48x128xf32, #tpu.memory_space<vmem>>, vector<1x32xf32>
    %cst_60 = arith.constant dense<0.000000e+00> : vector<48xf32>
    %178 = vector.multi_reduction <add>, %175, %cst_60 [1] : vector<48x32xf32> to vector<48xf32>
    %179 = vector.shape_cast %178 : vector<48xf32> to vector<48x1xf32>
    %cst_61 = arith.constant 3.200000e+01 : f32
    %180 = vector.broadcast %cst_61 : f32 to vector<48x1xf32>
    %181 = arith.divf %179, %180 : vector<48x1xf32>
    %182 = vector.broadcast %181 : vector<48x1xf32> to vector<48x32xf32>
    %183 = arith.subf %175, %182 : vector<48x32xf32>
    %184 = arith.mulf %183, %183 : vector<48x32xf32>
    %cst_62 = arith.constant dense<0.000000e+00> : vector<48xf32>
    %185 = vector.multi_reduction <add>, %184, %cst_62 [1] : vector<48x32xf32> to vector<48xf32>
    %186 = vector.shape_cast %185 : vector<48xf32> to vector<48x1xf32>
    %cst_63 = arith.constant 3.200000e+01 : f32
    %187 = vector.broadcast %cst_63 : f32 to vector<48x1xf32>
    %188 = arith.divf %186, %187 : vector<48x1xf32>
    %189 = vector.broadcast %181 : vector<48x1xf32> to vector<48x32xf32>
    %190 = arith.subf %175, %189 : vector<48x32xf32>
    %cst_64 = arith.constant 9.99999974E-6 : f32
    %191 = vector.broadcast %cst_64 : f32 to vector<48x1xf32>
    %192 = arith.addf %188, %191 : vector<48x1xf32>
    %193 = math.rsqrt %192 : vector<48x1xf32>
    %194 = vector.broadcast %193 : vector<48x1xf32> to vector<48x32xf32>
    %195 = arith.mulf %190, %194 : vector<48x32xf32>
    %196 = vector.broadcast %176 : vector<1x32xf32> to vector<48x32xf32>
    %197 = arith.mulf %195, %196 : vector<48x32xf32>
    %198 = vector.broadcast %177 : vector<1x32xf32> to vector<48x32xf32>
    %199 = arith.addf %197, %198 : vector<48x32xf32>
    %200 = arith.truncf %199 : vector<48x32xf32> to vector<48x32xbf16>
    %c288 = arith.constant 288 : index
    %c0_65 = arith.constant 0 : index
    %201 = vector.load %arg2[%c288, %c0_65] : memref<544x128xbf16, #tpu.memory_space<vmem>>, vector<32x96xbf16>
    %cst_66 = arith.constant dense<0.000000e+00> : vector<48x96xf32>
    %202 = tpu.matmul %200, %201, %cst_66 {dimension_numbers = #tpu.dot_dimension_numbers<[1], [0], [0], [1], [0, 0, 1, 1], [], []>} : vector<48x32xbf16>, vector<32x96xbf16>, vector<48x96xf32> -> vector<48x96xf32>
    %c34 = arith.constant 34 : index
    %c0_67 = arith.constant 0 : index
    %203 = vector.load %arg3[%c34, %c0_67] : memref<48x128xf32, #tpu.memory_space<vmem>>, vector<1x96xf32>
    %204 = vector.broadcast %203 : vector<1x96xf32> to vector<48x96xf32>
    %205 = arith.addf %202, %204 : vector<48x96xf32>
    %206 = vector.extract_strided_slice %205 {offsets = [0, 0], sizes = [48, 8], strides = [1, 1]} : vector<48x96xf32> to vector<48x8xf32>
    %cst_68 = arith.constant 0.353553385 : f32
    %207 = vector.broadcast %cst_68 : f32 to vector<48x8xf32>
    %208 = arith.mulf %206, %207 : vector<48x8xf32>
    %209 = vector.extract_strided_slice %205 {offsets = [0, 32], sizes = [48, 8], strides = [1, 1]} : vector<48x96xf32> to vector<48x8xf32>
    %210 = vector.extract_strided_slice %205 {offsets = [0, 64], sizes = [48, 8], strides = [1, 1]} : vector<48x96xf32> to vector<48x8xf32>
    %cst_69 = arith.constant dense<0.000000e+00> : vector<48x48xf32>
    %211 = tpu.matmul %208, %209, %cst_69 {dimension_numbers = #tpu.dot_dimension_numbers<[1], [1], [0], [0], [0, 0, 1, 0], [], []>} : vector<48x8xf32>, vector<48x8xf32>, vector<48x48xf32> -> vector<48x48xf32>
    %212 = arith.addf %211, %9 : vector<48x48xf32>
    %cst_70 = arith.constant dense<0xFF800000> : vector<48xf32>
    %213 = vector.multi_reduction <maximumf>, %212, %cst_70 [1] : vector<48x48xf32> to vector<48xf32>
    %214 = vector.shape_cast %213 : vector<48xf32> to vector<48x1xf32>
    %215 = vector.broadcast %214 : vector<48x1xf32> to vector<48x48xf32>
    %216 = arith.subf %212, %215 : vector<48x48xf32>
    %217 = math.exp %216 : vector<48x48xf32>
    %cst_71 = arith.constant dense<0.000000e+00> : vector<48xf32>
    %218 = vector.multi_reduction <add>, %217, %cst_71 [1] : vector<48x48xf32> to vector<48xf32>
    %219 = vector.shape_cast %218 : vector<48xf32> to vector<48x1xf32>
    %220 = tpu.reciprocal %219 {approx = true} : vector<48x1xf32> -> vector<48x1xf32>
    %221 = vector.broadcast %220 : vector<48x1xf32> to vector<48x48xf32>
    %222 = arith.mulf %217, %221 : vector<48x48xf32>
    %cst_72 = arith.constant dense<0.000000e+00> : vector<48x8xf32>
    %223 = tpu.matmul %222, %210, %cst_72 {dimension_numbers = #tpu.dot_dimension_numbers<[1], [0], [0], [1], [0, 0, 1, 1], [], []>} : vector<48x48xf32>, vector<48x8xf32>, vector<48x8xf32> -> vector<48x8xf32>
    %224 = vector.extract_strided_slice %205 {offsets = [0, 8], sizes = [48, 8], strides = [1, 1]} : vector<48x96xf32> to vector<48x8xf32>
    %cst_73 = arith.constant 0.353553385 : f32
    %225 = vector.broadcast %cst_73 : f32 to vector<48x8xf32>
    %226 = arith.mulf %224, %225 : vector<48x8xf32>
    %227 = vector.extract_strided_slice %205 {offsets = [0, 40], sizes = [48, 8], strides = [1, 1]} : vector<48x96xf32> to vector<48x8xf32>
    %228 = vector.extract_strided_slice %205 {offsets = [0, 72], sizes = [48, 8], strides = [1, 1]} : vector<48x96xf32> to vector<48x8xf32>
    %cst_74 = arith.constant dense<0.000000e+00> : vector<48x48xf32>
    %229 = tpu.matmul %226, %227, %cst_74 {dimension_numbers = #tpu.dot_dimension_numbers<[1], [1], [0], [0], [0, 0, 1, 0], [], []>} : vector<48x8xf32>, vector<48x8xf32>, vector<48x48xf32> -> vector<48x48xf32>
    %230 = arith.addf %229, %9 : vector<48x48xf32>
    %cst_75 = arith.constant dense<0xFF800000> : vector<48xf32>
    %231 = vector.multi_reduction <maximumf>, %230, %cst_75 [1] : vector<48x48xf32> to vector<48xf32>
    %232 = vector.shape_cast %231 : vector<48xf32> to vector<48x1xf32>
    %233 = vector.broadcast %232 : vector<48x1xf32> to vector<48x48xf32>
    %234 = arith.subf %230, %233 : vector<48x48xf32>
    %235 = math.exp %234 : vector<48x48xf32>
    %cst_76 = arith.constant dense<0.000000e+00> : vector<48xf32>
    %236 = vector.multi_reduction <add>, %235, %cst_76 [1] : vector<48x48xf32> to vector<48xf32>
    %237 = vector.shape_cast %236 : vector<48xf32> to vector<48x1xf32>
    %238 = tpu.reciprocal %237 {approx = true} : vector<48x1xf32> -> vector<48x1xf32>
    %239 = vector.broadcast %238 : vector<48x1xf32> to vector<48x48xf32>
    %240 = arith.mulf %235, %239 : vector<48x48xf32>
    %cst_77 = arith.constant dense<0.000000e+00> : vector<48x8xf32>
    %241 = tpu.matmul %240, %228, %cst_77 {dimension_numbers = #tpu.dot_dimension_numbers<[1], [0], [0], [1], [0, 0, 1, 1], [], []>} : vector<48x48xf32>, vector<48x8xf32>, vector<48x8xf32> -> vector<48x8xf32>
    %242 = vector.extract_strided_slice %205 {offsets = [0, 16], sizes = [48, 8], strides = [1, 1]} : vector<48x96xf32> to vector<48x8xf32>
    %cst_78 = arith.constant 0.353553385 : f32
    %243 = vector.broadcast %cst_78 : f32 to vector<48x8xf32>
    %244 = arith.mulf %242, %243 : vector<48x8xf32>
    %245 = vector.extract_strided_slice %205 {offsets = [0, 48], sizes = [48, 8], strides = [1, 1]} : vector<48x96xf32> to vector<48x8xf32>
    %246 = vector.extract_strided_slice %205 {offsets = [0, 80], sizes = [48, 8], strides = [1, 1]} : vector<48x96xf32> to vector<48x8xf32>
    %cst_79 = arith.constant dense<0.000000e+00> : vector<48x48xf32>
    %247 = tpu.matmul %244, %245, %cst_79 {dimension_numbers = #tpu.dot_dimension_numbers<[1], [1], [0], [0], [0, 0, 1, 0], [], []>} : vector<48x8xf32>, vector<48x8xf32>, vector<48x48xf32> -> vector<48x48xf32>
    %248 = arith.addf %247, %9 : vector<48x48xf32>
    %cst_80 = arith.constant dense<0xFF800000> : vector<48xf32>
    %249 = vector.multi_reduction <maximumf>, %248, %cst_80 [1] : vector<48x48xf32> to vector<48xf32>
    %250 = vector.shape_cast %249 : vector<48xf32> to vector<48x1xf32>
    %251 = vector.broadcast %250 : vector<48x1xf32> to vector<48x48xf32>
    %252 = arith.subf %248, %251 : vector<48x48xf32>
    %253 = math.exp %252 : vector<48x48xf32>
    %cst_81 = arith.constant dense<0.000000e+00> : vector<48xf32>
    %254 = vector.multi_reduction <add>, %253, %cst_81 [1] : vector<48x48xf32> to vector<48xf32>
    %255 = vector.shape_cast %254 : vector<48xf32> to vector<48x1xf32>
    %256 = tpu.reciprocal %255 {approx = true} : vector<48x1xf32> -> vector<48x1xf32>
    %257 = vector.broadcast %256 : vector<48x1xf32> to vector<48x48xf32>
    %258 = arith.mulf %253, %257 : vector<48x48xf32>
    %cst_82 = arith.constant dense<0.000000e+00> : vector<48x8xf32>
    %259 = tpu.matmul %258, %246, %cst_82 {dimension_numbers = #tpu.dot_dimension_numbers<[1], [0], [0], [1], [0, 0, 1, 1], [], []>} : vector<48x48xf32>, vector<48x8xf32>, vector<48x8xf32> -> vector<48x8xf32>
    %260 = vector.extract_strided_slice %205 {offsets = [0, 24], sizes = [48, 8], strides = [1, 1]} : vector<48x96xf32> to vector<48x8xf32>
    %cst_83 = arith.constant 0.353553385 : f32
    %261 = vector.broadcast %cst_83 : f32 to vector<48x8xf32>
    %262 = arith.mulf %260, %261 : vector<48x8xf32>
    %263 = vector.extract_strided_slice %205 {offsets = [0, 56], sizes = [48, 8], strides = [1, 1]} : vector<48x96xf32> to vector<48x8xf32>
    %264 = vector.extract_strided_slice %205 {offsets = [0, 88], sizes = [48, 8], strides = [1, 1]} : vector<48x96xf32> to vector<48x8xf32>
    %cst_84 = arith.constant dense<0.000000e+00> : vector<48x48xf32>
    %265 = tpu.matmul %262, %263, %cst_84 {dimension_numbers = #tpu.dot_dimension_numbers<[1], [1], [0], [0], [0, 0, 1, 0], [], []>} : vector<48x8xf32>, vector<48x8xf32>, vector<48x48xf32> -> vector<48x48xf32>
    %266 = arith.addf %265, %9 : vector<48x48xf32>
    %cst_85 = arith.constant dense<0xFF800000> : vector<48xf32>
    %267 = vector.multi_reduction <maximumf>, %266, %cst_85 [1] : vector<48x48xf32> to vector<48xf32>
    %268 = vector.shape_cast %267 : vector<48xf32> to vector<48x1xf32>
    %269 = vector.broadcast %268 : vector<48x1xf32> to vector<48x48xf32>
    %270 = arith.subf %266, %269 : vector<48x48xf32>
    %271 = math.exp %270 : vector<48x48xf32>
    %cst_86 = arith.constant dense<0.000000e+00> : vector<48xf32>
    %272 = vector.multi_reduction <add>, %271, %cst_86 [1] : vector<48x48xf32> to vector<48xf32>
    %273 = vector.shape_cast %272 : vector<48xf32> to vector<48x1xf32>
    %274 = tpu.reciprocal %273 {approx = true} : vector<48x1xf32> -> vector<48x1xf32>
    %275 = vector.broadcast %274 : vector<48x1xf32> to vector<48x48xf32>
    %276 = arith.mulf %271, %275 : vector<48x48xf32>
    %cst_87 = arith.constant dense<0.000000e+00> : vector<48x8xf32>
    %277 = tpu.matmul %276, %264, %cst_87 {dimension_numbers = #tpu.dot_dimension_numbers<[1], [0], [0], [1], [0, 0, 1, 1], [], []>} : vector<48x48xf32>, vector<48x8xf32>, vector<48x8xf32> -> vector<48x8xf32>
    %278 = tpu.concatenate %223, %241, %259, %277 in 1 : vector<48x8xf32>, vector<48x8xf32>, vector<48x8xf32>, vector<48x8xf32> -> vector<48x32xf32>
    %279 = arith.truncf %278 : vector<48x32xf32> to vector<48x32xbf16>
    %c320 = arith.constant 320 : index
    %c0_88 = arith.constant 0 : index
    %280 = vector.load %arg2[%c320, %c0_88] : memref<544x128xbf16, #tpu.memory_space<vmem>>, vector<32x32xbf16>
    %cst_89 = arith.constant dense<0.000000e+00> : vector<48x32xf32>
    %281 = tpu.matmul %279, %280, %cst_89 {dimension_numbers = #tpu.dot_dimension_numbers<[1], [0], [0], [1], [0, 0, 1, 1], [], []>} : vector<48x32xbf16>, vector<32x32xbf16>, vector<48x32xf32> -> vector<48x32xf32>
    %c35 = arith.constant 35 : index
    %c0_90 = arith.constant 0 : index
    %282 = vector.load %arg3[%c35, %c0_90] : memref<48x128xf32, #tpu.memory_space<vmem>>, vector<1x32xf32>
    %283 = vector.broadcast %282 : vector<1x32xf32> to vector<48x32xf32>
    %284 = arith.addf %281, %283 : vector<48x32xf32>
    %285 = arith.addf %175, %284 : vector<48x32xf32>
    %c36 = arith.constant 36 : index
    %c0_91 = arith.constant 0 : index
    %286 = vector.load %arg3[%c36, %c0_91] : memref<48x128xf32, #tpu.memory_space<vmem>>, vector<1x32xf32>
    %c37 = arith.constant 37 : index
    %c0_92 = arith.constant 0 : index
    %287 = vector.load %arg3[%c37, %c0_92] : memref<48x128xf32, #tpu.memory_space<vmem>>, vector<1x32xf32>
    %cst_93 = arith.constant dense<0.000000e+00> : vector<48xf32>
    %288 = vector.multi_reduction <add>, %285, %cst_93 [1] : vector<48x32xf32> to vector<48xf32>
    %289 = vector.shape_cast %288 : vector<48xf32> to vector<48x1xf32>
    %cst_94 = arith.constant 3.200000e+01 : f32
    %290 = vector.broadcast %cst_94 : f32 to vector<48x1xf32>
    %291 = arith.divf %289, %290 : vector<48x1xf32>
    %292 = vector.broadcast %291 : vector<48x1xf32> to vector<48x32xf32>
    %293 = arith.subf %285, %292 : vector<48x32xf32>
    %294 = arith.mulf %293, %293 : vector<48x32xf32>
    %cst_95 = arith.constant dense<0.000000e+00> : vector<48xf32>
    %295 = vector.multi_reduction <add>, %294, %cst_95 [1] : vector<48x32xf32> to vector<48xf32>
    %296 = vector.shape_cast %295 : vector<48xf32> to vector<48x1xf32>
    %cst_96 = arith.constant 3.200000e+01 : f32
    %297 = vector.broadcast %cst_96 : f32 to vector<48x1xf32>
    %298 = arith.divf %296, %297 : vector<48x1xf32>
    %299 = vector.broadcast %291 : vector<48x1xf32> to vector<48x32xf32>
    %300 = arith.subf %285, %299 : vector<48x32xf32>
    %cst_97 = arith.constant 9.99999974E-6 : f32
    %301 = vector.broadcast %cst_97 : f32 to vector<48x1xf32>
    %302 = arith.addf %298, %301 : vector<48x1xf32>
    %303 = math.rsqrt %302 : vector<48x1xf32>
    %304 = vector.broadcast %303 : vector<48x1xf32> to vector<48x32xf32>
    %305 = arith.mulf %300, %304 : vector<48x32xf32>
    %306 = vector.broadcast %286 : vector<1x32xf32> to vector<48x32xf32>
    %307 = arith.mulf %305, %306 : vector<48x32xf32>
    %308 = vector.broadcast %287 : vector<1x32xf32> to vector<48x32xf32>
    %309 = arith.addf %307, %308 : vector<48x32xf32>
    %310 = arith.truncf %309 : vector<48x32xf32> to vector<48x32xbf16>
    %c352 = arith.constant 352 : index
    %c0_98 = arith.constant 0 : index
    %311 = vector.load %arg2[%c352, %c0_98] : memref<544x128xbf16, #tpu.memory_space<vmem>>, vector<32x128xbf16>
    %cst_99 = arith.constant dense<0.000000e+00> : vector<48x128xf32>
    %312 = tpu.matmul %310, %311, %cst_99 {dimension_numbers = #tpu.dot_dimension_numbers<[1], [0], [0], [1], [0, 0, 1, 1], [], []>} : vector<48x32xbf16>, vector<32x128xbf16>, vector<48x128xf32> -> vector<48x128xf32>
    %c38 = arith.constant 38 : index
    %c0_100 = arith.constant 0 : index
    %313 = vector.load %arg3[%c38, %c0_100] : memref<48x128xf32, #tpu.memory_space<vmem>>, vector<1x128xf32>
    %314 = vector.broadcast %313 : vector<1x128xf32> to vector<48x128xf32>
    %315 = arith.addf %312, %314 : vector<48x128xf32>
    %316 = arith.mulf %315, %315 : vector<48x128xf32>
    %317 = arith.mulf %315, %316 : vector<48x128xf32>
    %cst_101 = arith.constant 4.471500e-02 : f32
    %318 = vector.broadcast %cst_101 : f32 to vector<48x128xf32>
    %319 = arith.mulf %318, %317 : vector<48x128xf32>
    %320 = arith.addf %315, %319 : vector<48x128xf32>
    %cst_102 = arith.constant 0.797884583 : f32
    %321 = vector.broadcast %cst_102 : f32 to vector<48x128xf32>
    %322 = arith.mulf %321, %320 : vector<48x128xf32>
    %323 = math.tanh %322 : vector<48x128xf32>
    %cst_103 = arith.constant 1.000000e+00 : f32
    %324 = vector.broadcast %cst_103 : f32 to vector<48x128xf32>
    %325 = arith.addf %324, %323 : vector<48x128xf32>
    %cst_104 = arith.constant 5.000000e-01 : f32
    %326 = vector.broadcast %cst_104 : f32 to vector<48x128xf32>
    %327 = arith.mulf %326, %325 : vector<48x128xf32>
    %328 = arith.mulf %315, %327 : vector<48x128xf32>
    %329 = arith.truncf %328 : vector<48x128xf32> to vector<48x128xbf16>
    %c384 = arith.constant 384 : index
    %c0_105 = arith.constant 0 : index
    %330 = vector.load %arg2[%c384, %c0_105] : memref<544x128xbf16, #tpu.memory_space<vmem>>, vector<128x32xbf16>
    %cst_106 = arith.constant dense<0.000000e+00> : vector<48x32xf32>
    %331 = tpu.matmul %329, %330, %cst_106 {dimension_numbers = #tpu.dot_dimension_numbers<[1], [0], [0], [1], [0, 0, 1, 1], [], []>} : vector<48x128xbf16>, vector<128x32xbf16>, vector<48x32xf32> -> vector<48x32xf32>
    %c39 = arith.constant 39 : index
    %c0_107 = arith.constant 0 : index
    %332 = vector.load %arg3[%c39, %c0_107] : memref<48x128xf32, #tpu.memory_space<vmem>>, vector<1x32xf32>
    %333 = vector.broadcast %332 : vector<1x32xf32> to vector<48x32xf32>
    %334 = arith.addf %331, %333 : vector<48x32xf32>
    %335 = arith.addf %285, %334 : vector<48x32xf32>
    %c40 = arith.constant 40 : index
    %c0_108 = arith.constant 0 : index
    %336 = vector.load %arg3[%c40, %c0_108] : memref<48x128xf32, #tpu.memory_space<vmem>>, vector<1x32xf32>
    %c41 = arith.constant 41 : index
    %c0_109 = arith.constant 0 : index
    %337 = vector.load %arg3[%c41, %c0_109] : memref<48x128xf32, #tpu.memory_space<vmem>>, vector<1x32xf32>
    %cst_110 = arith.constant dense<0.000000e+00> : vector<48xf32>
    %338 = vector.multi_reduction <add>, %335, %cst_110 [1] : vector<48x32xf32> to vector<48xf32>
    %339 = vector.shape_cast %338 : vector<48xf32> to vector<48x1xf32>
    %cst_111 = arith.constant 3.200000e+01 : f32
    %340 = vector.broadcast %cst_111 : f32 to vector<48x1xf32>
    %341 = arith.divf %339, %340 : vector<48x1xf32>
    %342 = vector.broadcast %341 : vector<48x1xf32> to vector<48x32xf32>
    %343 = arith.subf %335, %342 : vector<48x32xf32>
    %344 = arith.mulf %343, %343 : vector<48x32xf32>
    %cst_112 = arith.constant dense<0.000000e+00> : vector<48xf32>
    %345 = vector.multi_reduction <add>, %344, %cst_112 [1] : vector<48x32xf32> to vector<48xf32>
    %346 = vector.shape_cast %345 : vector<48xf32> to vector<48x1xf32>
    %cst_113 = arith.constant 3.200000e+01 : f32
    %347 = vector.broadcast %cst_113 : f32 to vector<48x1xf32>
    %348 = arith.divf %346, %347 : vector<48x1xf32>
    %349 = vector.broadcast %341 : vector<48x1xf32> to vector<48x32xf32>
    %350 = arith.subf %335, %349 : vector<48x32xf32>
    %cst_114 = arith.constant 9.99999974E-6 : f32
    %351 = vector.broadcast %cst_114 : f32 to vector<48x1xf32>
    %352 = arith.addf %348, %351 : vector<48x1xf32>
    %353 = math.rsqrt %352 : vector<48x1xf32>
    %354 = vector.broadcast %353 : vector<48x1xf32> to vector<48x32xf32>
    %355 = arith.mulf %350, %354 : vector<48x32xf32>
    %356 = vector.broadcast %336 : vector<1x32xf32> to vector<48x32xf32>
    %357 = arith.mulf %355, %356 : vector<48x32xf32>
    %358 = vector.broadcast %337 : vector<1x32xf32> to vector<48x32xf32>
    %359 = arith.addf %357, %358 : vector<48x32xf32>
    %cst_115 = arith.constant 0.000000e+00 : f32
    %360 = vector.broadcast %cst_115 : f32 to vector<48x96xf32>
    %361 = tpu.concatenate %359, %360 in 1 : vector<48x32xf32>, vector<48x96xf32> -> vector<48x128xf32>
    %c0_116 = arith.constant 0 : index
    %c0_117 = arith.constant 0 : index
    %362 = vector.load %arg5[%c0_116, %c0_117] : memref<48x128xf32, #tpu.memory_space<vmem>>, vector<48x128xf32>
    tpu.vector_store %arg5[%c0_116, %c0_117], %361 {strides = array<i32>} : memref<48x128xf32, #tpu.memory_space<vmem>>, vector<48x128xf32>,
    %c42 = arith.constant 42 : index
    %c0_118 = arith.constant 0 : index
    %363 = vector.load %arg3[%c42, %c0_118] : memref<48x128xf32, #tpu.memory_space<vmem>>, vector<1x32xf32>
    %c43 = arith.constant 43 : index
    %c0_119 = arith.constant 0 : index
    %364 = vector.load %arg3[%c43, %c0_119] : memref<48x128xf32, #tpu.memory_space<vmem>>, vector<1x32xf32>
    %cst_120 = arith.constant dense<0.000000e+00> : vector<48xf32>
    %365 = vector.multi_reduction <add>, %359, %cst_120 [1] : vector<48x32xf32> to vector<48xf32>
    %366 = vector.shape_cast %365 : vector<48xf32> to vector<48x1xf32>
    %cst_121 = arith.constant 3.200000e+01 : f32
    %367 = vector.broadcast %cst_121 : f32 to vector<48x1xf32>
    %368 = arith.divf %366, %367 : vector<48x1xf32>
    %369 = vector.broadcast %368 : vector<48x1xf32> to vector<48x32xf32>
    %370 = arith.subf %359, %369 : vector<48x32xf32>
    %371 = arith.mulf %370, %370 : vector<48x32xf32>
    %cst_122 = arith.constant dense<0.000000e+00> : vector<48xf32>
    %372 = vector.multi_reduction <add>, %371, %cst_122 [1] : vector<48x32xf32> to vector<48xf32>
    %373 = vector.shape_cast %372 : vector<48xf32> to vector<48x1xf32>
    %cst_123 = arith.constant 3.200000e+01 : f32
    %374 = vector.broadcast %cst_123 : f32 to vector<48x1xf32>
    %375 = arith.divf %373, %374 : vector<48x1xf32>
    %376 = vector.broadcast %368 : vector<48x1xf32> to vector<48x32xf32>
    %377 = arith.subf %359, %376 : vector<48x32xf32>
    %cst_124 = arith.constant 9.99999974E-6 : f32
    %378 = vector.broadcast %cst_124 : f32 to vector<48x1xf32>
    %379 = arith.addf %375, %378 : vector<48x1xf32>
    %380 = math.rsqrt %379 : vector<48x1xf32>
    %381 = vector.broadcast %380 : vector<48x1xf32> to vector<48x32xf32>
    %382 = arith.mulf %377, %381 : vector<48x32xf32>
    %383 = vector.broadcast %363 : vector<1x32xf32> to vector<48x32xf32>
    %384 = arith.mulf %382, %383 : vector<48x32xf32>
    %385 = vector.broadcast %364 : vector<1x32xf32> to vector<48x32xf32>
    %386 = arith.addf %384, %385 : vector<48x32xf32>
    %387 = arith.truncf %386 : vector<48x32xf32> to vector<48x32xbf16>
    %c512 = arith.constant 512 : index
    %c0_125 = arith.constant 0 : index
    %388 = vector.load %arg2[%c512, %c0_125] : memref<544x128xbf16, #tpu.memory_space<vmem>>, vector<32x128xbf16>
    %cst_126 = arith.constant dense<0.000000e+00> : vector<48x128xf32>
    %389 = tpu.matmul %387, %388, %cst_126 {dimension_numbers = #tpu.dot_dimension_numbers<[1], [0], [0], [1], [0, 0, 1, 1], [], []>} : vector<48x32xbf16>, vector<32x128xbf16>, vector<48x128xf32> -> vector<48x128xf32>
    %c44 = arith.constant 44 : index
    %c0_127 = arith.constant 0 : index
    %390 = vector.load %arg3[%c44, %c0_127] : memref<48x128xf32, #tpu.memory_space<vmem>>, vector<1x128xf32>
    %391 = vector.broadcast %390 : vector<1x128xf32> to vector<48x128xf32>
    %392 = arith.addf %389, %391 : vector<48x128xf32>
    %c0_128 = arith.constant 0 : index
    %c0_129 = arith.constant 0 : index
    %393 = vector.load %arg4[%c0_128, %c0_129] : memref<48x128xf32, #tpu.memory_space<vmem>>, vector<48x128xf32>
    tpu.vector_store %arg4[%c0_128, %c0_129], %392 {strides = array<i32>} : memref<48x128xf32, #tpu.memory_space<vmem>>, vector<48x128xf32>,
    return
  }
  func.func @transform_0(%arg0: i32) -> (i32, i32) {
    %c0_i32 = arith.constant 0 : i32
    %c0_i32_0 = arith.constant 0 : i32
    %c0_i32_1 = arith.constant 0 : i32
    return %c0_i32, %c0_i32_0 : i32, i32
  }
  func.func @transform_1(%arg0: i32) -> (i32, i32) {
    %c0_i32 = arith.constant 0 : i32
    %c0_i32_0 = arith.constant 0 : i32
    %c0_i32_1 = arith.constant 0 : i32
    return %c0_i32, %c0_i32_0 : i32, i32
  }
  func.func @transform_2(%arg0: i32) -> (i32, i32) {
    %c0_i32 = arith.constant 0 : i32
    %c0_i32_0 = arith.constant 0 : i32
    %c0_i32_1 = arith.constant 0 : i32
    return %c0_i32, %c0_i32_0 : i32, i32
  }
  func.func @transform_3(%arg0: i32) -> (i32, i32) {
    %c0_i32 = arith.constant 0 : i32
    %c0_i32_0 = arith.constant 0 : i32
    %c0_i32_1 = arith.constant 0 : i32
    return %c0_i32, %c0_i32_0 : i32, i32
  }
  func.func @transform_4(%arg0: i32) -> (i32, i32) {
    %c0_i32 = arith.constant 0 : i32
    %c0_i32_0 = arith.constant 0 : i32
    %c0_i32_1 = arith.constant 0 : i32
    return %c0_i32, %c0_i32_0 : i32, i32
  }
}

</mosaic_0001>

<llo_original>
// kernel: minivit_forward.1
$region0: #{minivit_forward.1}
  #allocation0 [shape = 'u32[]', space=smem, size = 0x4, offset = 0x4, fixed_abs, tag = 'smem constant byte address 0x4 - core index']
  #allocation1 [shape = 'u32[144,128]{1,0:T(1,128)}', space=vmem, size = 0x12000, scoped, tag = 'internal scratch']
  %s0 = inlined_call_operand.vmem [shape: bf16[48,64], index: 0, kind: input, shape index: {}]
  %s1 = inlined_call_operand.vmem [shape: bf16[544,128], index: 1, kind: input, shape index: {}]
  %s2 = inlined_call_operand.vmem [shape: f32[48,128], index: 2, kind: input, shape index: {}]
  %s3 = inlined_call_operand.vmem [shape: f32[48,128], index: 3, kind: output, shape index: {0}]
  %s4 = inlined_call_operand.hbm [shape: f32[48,128], index: 4, kind: output, shape index: {1}]
  %5 = xla_tuple %s3, %s4
  %s6 = sld [smem:[#allocation0]]
  $region30: #{minivit_forward.1} parent=0
    _
  %s8 = ssub.s32 1, %s6
  %s9 = scalar_select 0, %s8, %s6
  $region1: #{minivit_forward.1} parent=0
    #allocation2 [shape = 'u8[24576]{0}', space=vmem, size = 0x6000, scoped, tag = 'output window, operand 1, single buffered']
    #allocation3 [shape = 's32[1]{0}', space=sflag, size = 0x4, scoped, tag = 'scoped memory for minivit_forward.1']
    %10 = vsyncpa [#allocation3], 0
    // Predicated region
    $region2: #{minivit_forward.1} parent=1 // pred_check
      _
    $region3: #{minivit_forward.1} parent=1 // pred_check_branch
      %12 = sbr.rel (0) target = $region5
    $region4: #{minivit_forward.1} parent=1 // pred_region
      _
    $region5: #{minivit_forward.1} parent=1 // pred_fallthru
      _
    // Predicated region
    $region6: #{minivit_forward.1} parent=1 // pred_check
      _
    $region7: #{minivit_forward.1} parent=1 // pred_check_branch
      %14 = sbr.rel (0) target = $region9
    $region8: #{minivit_forward.1} parent=1 // pred_region
      _
    $region9: #{minivit_forward.1} parent=1 // pred_fallthru
      _
    // Predicated region
    $region10: #{minivit_forward.1} parent=1 // pred_check
      _
    $region11: #{minivit_forward.1} parent=1 // pred_check_branch
      %16 = sbr.rel (0) target = $region13
    $region12: #{minivit_forward.1} parent=1 // pred_region
      _
    $region13: #{minivit_forward.1} parent=1 // pred_fallthru
      _
    %v18 = vlaneseq
    %v19 = vand.u32 %v18, 127
    %vm20 = vcmp.lt.s32.totalorder %v19, 17
    %v21 = vsel %vm20, 0.0, -1e+30
    %vm22 = vcmask 195584
    %v23 = vsel %vm22, %v21, -1e+30
    %25 = vrot.lane.b32.xlu0 %v21, 24
    %v26 = vpop.permute.xlu0 %25
    %v28 = vsel %vm22, -1e+30, %v26
    %v29 = vld [vmem:[%s2] sm:$0xff]
    %v30 = vld [vmem:[%s2 + $0x8] sm:$0xff]
    %v31 = vld [vmem:[%s2 + $0x10] sm:$0xff]
    %v32 = vld [vmem:[%s0] sm:$0xf]
    %v33 = vld [vmem:[%s0 + $0x4] sm:$0xf]
    %v34 = vld [vmem:[%s0 + $0x8] sm:$0xf]
    %v35 = vld [vmem:[%s0 + $0xc] sm:$0xf]
    %v36 = vld [vmem:[%s0 + $0x10] sm:$0xf]
    %v37 = vld [vmem:[%s0 + $0x14] sm:$0xf]
    %v38 = vld [vmem:[%s1] sm:$0xf]
    %v39 = vld [vmem:[%s1 + $0x4] sm:$0xf]
    %v40 = vld [vmem:[%s1 + $0x8] sm:$0xf]
    %v41 = vld [vmem:[%s1 + $0xc] sm:$0xf]
    %v42 = vld [vmem:[%s1 + $0x10] sm:$0xf]
    %v43 = vld [vmem:[%s1 + $0x14] sm:$0xf]
    %v44 = vld [vmem:[%s1 + $0x18] sm:$0xf]
    %v45 = vld [vmem:[%s1 + $0x1c] sm:$0xf]
    %v52 = vunpack.c.l.b16 %v32
    %v53 = vunpack.c.l.b16 %v33
    %v54 = vunpack.c.l.b16 %v34
    %v55 = vunpack.c.l.b16 %v35
    %v56 = vunpack.c.l.b16 %v36
    %v57 = vunpack.c.l.b16 %v37
    %v58 = vpack.c.b16 %v53, %v52
    %v59 = vpack.c.b16 %v55, %v54
    %v60 = vpack.c.b16 %v57, %v56
    %v69 = vunpack.c.l.b16 %v38
    %v70 = vunpack.c.l.b16 %v39
    %v71 = vunpack.c.l.b16 %v40
    %v72 = vunpack.c.l.b16 %v41
    %v73 = vunpack.c.l.b16 %v42
    %v74 = vunpack.c.l.b16 %v43
    %v75 = vunpack.c.l.b16 %v44
    %v76 = vunpack.c.l.b16 %v45
    %v77 = vpack.c.b16 %v70, %v69
    %v78 = vpack.c.b16 %v72, %v71
    %v79 = vpack.c.b16 %v74, %v73
    %v80 = vpack.c.b16 %v76, %v75
    %vm85 = vcmask 523264
    %v87 = vsel %vm85, %v58, 0
    %v90 = vsel %vm85, %v59, 0
    %v93 = vsel %vm85, %v60, 0
    %95 = vmatprep.subr.bf16.mxu0 0
    %96 = vmatpush1.bf16.msra.mxu0 %v77
    %97 = vmatprep.subr.bf16.mxu0 0
    %98 = vmatpush1.bf16.msra.mxu0 %v78
    %99 = vmatprep.subr.bf16.mxu0 0
    %100 = vmatpush1.bf16.msra.mxu0 %v79
    %101 = vmatprep.subr.bf16.mxu0 0
    %102 = vmatpush1.bf16.msra.mxu0 %v80
    %103 = vmatprep.subr.bf16.mxu0 0
    %104 = vmatpush1.bf16.msra.mxu0 0
    %105 = vmatprep.subr.bf16.mxu0 0
    %106 = vmatpush1.bf16.msra.mxu0 0
    %107 = vmatprep.subr.bf16.mxu0 0
    %108 = vmatpush1.bf16.msra.mxu0 0
    %109 = vmatprep.subr.bf16.mxu0 0
    %110 = vmatpush1.bf16.msra.mxu0 0
    %111 = vmatprep.subr.bf16.mxu0 0
    %112 = vmatpush1.bf16.msra.mxu0 0
    %113 = vmatprep.subr.bf16.mxu0 0
    %114 = vmatpush1.bf16.msra.mxu0 0
    %115 = vmatprep.subr.bf16.mxu0 0
    %116 = vmatpush1.bf16.msra.mxu0 0
    %117 = vmatprep.subr.bf16.mxu0 0
    %118 = vmatpush1.bf16.msra.mxu0 0
    %119 = vmatprep.subr.bf16.mxu0 0
    %120 = vmatpush1.bf16.msra.mxu0 0
    %121 = vmatprep.subr.bf16.mxu0 0
    %122 = vmatpush1.bf16.msra.mxu0 0
    %123 = vmatprep.subr.bf16.mxu0 0
    %124 = vmatpush1.bf16.msra.mxu0 0
    %125 = vmatprep.subr.bf16.mxu0 0
    %126 = vmatpush1.bf16.msra.mxu0 0
    %127 = vmatprep.mubr.bf16.mxu0 0
    %128 = vmatmul.mubr.bf16.gmra.mrb[0].mxu0 %v87
    %v129 = vpop.f32.mrb[0].mxu0
    %v130 = vadd.f32 %v29, %v129
    %v131 = vpop.f32.mrb[0].mxu0
    %v132 = vpop.f32.mrb[0].mxu0
    %v133 = vadd.f32 %v30, %v132
    %v134 = vpop.f32.mrb[0].mxu0
    %135 = vmatprep.mubr.bf16.mxu0 0
    %136 = vmatmul.mubr.bf16.gmra.mrb[0].mxu0 %v90
    %v137 = vpop.f32.mrb[0].mxu0
    %v138 = vadd.f32 %v31, %v137
    %v139 = vpop.f32.mrb[0].mxu0
    %v140 = vpop.f32.mrb[0].mxu0
    %v141 = vadd.f32 %v29, %v140
    %v142 = vpop.f32.mrb[0].mxu0
    %143 = vmatprep.mubr.bf16.mxu0 0
    %144 = vmatmul.mubr.bf16.gmra.mrb[0].mxu0 %v93
    %v145 = vpop.f32.mrb[0].mxu0
    %v146 = vadd.f32 %v30, %v145
    %v147 = vpop.f32.mrb[0].mxu0
    %v148 = vpop.f32.mrb[0].mxu0
    %v149 = vadd.f32 %v31, %v148
    %v150 = vpop.f32.mrb[0].mxu0
    %151 = vdwg.mxu0
    %v152 = vld [vmem:[%s2 + $0x18] sm:$0x1]
    %v153 = vld [vmem:[%s2 + $0x19] sm:$0x1]
    %vm154 = vcmask 261120
    %v155 = vsel %vm154, %v130, 0.0
    %156 = vadd.xlane.f32.xlu0 %v155
    %v157 = vpop.xlane.xlu0 %156
    %v158 = vsel %vm154, %v133, 0.0
    %159 = vadd.xlane.f32.xlu0 %v158
    %v160 = vpop.xlane.xlu0 %159
    %v161 = vsel %vm154, %v138, 0.0
    %162 = vadd.xlane.f32.xlu0 %v161
    %v163 = vpop.xlane.xlu0 %162
    %v164 = vsel %vm154, %v141, 0.0
    %165 = vadd.xlane.f32.xlu0 %v164
    %v166 = vpop.xlane.xlu0 %165
    %v167 = vsel %vm154, %v146, 0.0
    %168 = vadd.xlane.f32.xlu0 %v167
    %v169 = vpop.xlane.xlu0 %168
    %v170 = vsel %vm154, %v149, 0.0
    %171 = vadd.xlane.f32.xlu0 %v170
    %v172 = vpop.xlane.xlu0 %171
    %v173 = vrcp.pop 32.0
    %v174 = vmul.f32 %v157, %v173
    %v175 = vmul.f32 %v160, %v173
    %v176 = vmul.f32 %v163, %v173
    %v177 = vmul.f32 %v166, %v173
    %v178 = vmul.f32 %v169, %v173
    %v179 = vmul.f32 %v172, %v173
    %v180 = vsub.f32 %v130, %v174
    %v181 = vsub.f32 %v133, %v175
    %v182 = vsub.f32 %v138, %v176
    %v183 = vsub.f32 %v141, %v177
    %v184 = vsub.f32 %v146, %v178
    %v185 = vsub.f32 %v149, %v179
    %v186 = vmul.f32 %v180, %v180
    %v187 = vmul.f32 %v181, %v181
    %v188 = vmul.f32 %v182, %v182
    %v189 = vmul.f32 %v183, %v183
    %v190 = vmul.f32 %v184, %v184
    %v191 = vmul.f32 %v185, %v185
    %v192 = vsel %vm154, %v186, 0.0
    %193 = vadd.xlane.f32.xlu0 %v192
    %v194 = vpop.xlane.xlu0 %193
    %v195 = vsel %vm154, %v187, 0.0
    %196 = vadd.xlane.f32.xlu0 %v195
    %v197 = vpop.xlane.xlu0 %196
    %v198 = vsel %vm154, %v188, 0.0
    %199 = vadd.xlane.f32.xlu0 %v198
    %v200 = vpop.xlane.xlu0 %199
    %v201 = vsel %vm154, %v189, 0.0
    %202 = vadd.xlane.f32.xlu0 %v201
    %v203 = vpop.xlane.xlu0 %202
    %v204 = vsel %vm154, %v190, 0.0
    %205 = vadd.xlane.f32.xlu0 %v204
    %v206 = vpop.xlane.xlu0 %205
    %v207 = vsel %vm154, %v191, 0.0
    %208 = vadd.xlane.f32.xlu0 %v207
    %v209 = vpop.xlane.xlu0 %208
    %v210 = vmul.f32 %v194, %v173
    %v211 = vmul.f32 %v197, %v173
    %v212 = vmul.f32 %v200, %v173
    %v213 = vmul.f32 %v203, %v173
    %v214 = vmul.f32 %v206, %v173
    %v215 = vmul.f32 %v209, %v173
    %v216 = vadd.f32 %v210, 1e-05
    %v217 = vadd.f32 %v211, 1e-05
    %v218 = vadd.f32 %v212, 1e-05
    %v219 = vadd.f32 %v213, 1e-05
    %v220 = vadd.f32 %v214, 1e-05
    %v221 = vadd.f32 %v215, 1e-05
    %v222 = vrsqrt.pop %v216
    %v223 = vrsqrt.pop %v217
    %v224 = vrsqrt.pop %v218
    %v225 = vrsqrt.pop %v219
    %v226 = vrsqrt.pop %v220
    %v227 = vrsqrt.pop %v221
    %v228 = vmul.f32 %v180, %v222
    %v229 = vmul.f32 %v181, %v223
    %v230 = vmul.f32 %v182, %v224
    %v231 = vmul.f32 %v183, %v225
    %v232 = vmul.f32 %v184, %v226
    %v233 = vmul.f32 %v185, %v227
    %v234 = vlaneseq
    %v235 = vshrl.u32 %v234, 7
    %v236 = vsub.s32 0, %v235
    %v237 = vrot.slane %v152, %v236
    %v238 = vmul.f32 %v228, %v237
    %v239 = vmul.f32 %v229, %v237
    %v240 = vmul.f32 %v230, %v237
    %v241 = vmul.f32 %v231, %v237
    %v242 = vmul.f32 %v232, %v237
    %v243 = vmul.f32 %v233, %v237
    %v244 = vlaneseq
    %v245 = vshrl.u32 %v244, 7
    %v246 = vsub.s32 0, %v245
    %v247 = vrot.slane %v153, %v246
    %v248 = vadd.f32 %v238, %v247
    %v249 = vadd.f32 %v239, %v247
    %v250 = vadd.f32 %v240, %v247
    %v251 = vadd.f32 %v241, %v247
    %v252 = vadd.f32 %v242, %v247
    %v253 = vadd.f32 %v243, %v247
    %v254 = vpack.c.bf16 %v249, %v248
    %v255 = vpack.c.bf16 %v251, %v250
    %v256 = vpack.c.bf16 %v253, %v252
    %v257 = vld [vmem:[%s1 + $0x20] sm:$0xf]
    %v258 = vld [vmem:[%s1 + $0x24] sm:$0xf]
    %v259 = vld [vmem:[%s1 + $0x28] sm:$0xf]
    %v260 = vld [vmem:[%s1 + $0x2c] sm:$0xf]
    %v261 = vld [vmem:[%s2 + $0x1a] sm:$0x1]
    %v262 = vlaneseq
    %v263 = vshrl.u32 %v262, 7
    %v264 = vsub.s32 0, %v263
    %v265 = vrot.slane %v261, %v264
    %v270 = vunpack.c.l.b16 %v257
    %v271 = vunpack.c.l.b16 %v258
    %v272 = vunpack.c.l.b16 %v259
    %v273 = vunpack.c.l.b16 %v260
    %v274 = vpack.c.b16 %v271, %v270
    %v275 = vpack.c.b16 %v273, %v272
    %v279 = vsel %vm154, %v254, 0
    %v282 = vsel %vm154, %v255, 0
    %v285 = vsel %vm154, %v256, 0
    %287 = vmatprep.subr.bf16.mxu0 0
    %288 = vmatpush1.bf16.msra.mxu0 %v274
    %289 = vmatprep.subr.bf16.mxu0 0
    %290 = vmatpush1.bf16.msra.mxu0 %v275
    %291 = vmatprep.subr.bf16.mxu0 0
    %292 = vmatpush1.bf16.msra.mxu0 0
    %293 = vmatprep.subr.bf16.mxu0 0
    %294 = vmatpush1.bf16.msra.mxu0 0
    %295 = vmatprep.subr.bf16.mxu0 0
    %296 = vmatpush1.bf16.msra.mxu0 0
    %297 = vmatprep.subr.bf16.mxu0 0
    %298 = vmatpush1.bf16.msra.mxu0 0
    %299 = vmatprep.subr.bf16.mxu0 0
    %300 = vmatpush1.bf16.msra.mxu0 0
    %301 = vmatprep.subr.bf16.mxu0 0
    %302 = vmatpush1.bf16.msra.mxu0 0
    %303 = vmatprep.subr.bf16.mxu0 0
    %304 = vmatpush1.bf16.msra.mxu0 0
    %305 = vmatprep.subr.bf16.mxu0 0
    %306 = vmatpush1.bf16.msra.mxu0 0
    %307 = vmatprep.subr.bf16.mxu0 0
    %308 = vmatpush1.bf16.msra.mxu0 0
    %309 = vmatprep.subr.bf16.mxu0 0
    %310 = vmatpush1.bf16.msra.mxu0 0
    %311 = vmatprep.subr.bf16.mxu0 0
    %312 = vmatpush1.bf16.msra.mxu0 0
    %313 = vmatprep.subr.bf16.mxu0 0
    %314 = vmatpush1.bf16.msra.mxu0 0
    %315 = vmatprep.subr.bf16.mxu0 0
    %316 = vmatpush1.bf16.msra.mxu0 0
    %317 = vmatprep.subr.bf16.mxu0 0
    %318 = vmatpush1.bf16.msra.mxu0 0
    %319 = vmatprep.mubr.bf16.mxu0 0
    %320 = vmatmul.mubr.bf16.gmra.mrb[0].mxu0 %v279
    %v321 = vpop.f32.mrb[0].mxu0
    %v322 = vadd.f32 %v265, %v321
    %v323 = vpop.f32.mrb[0].mxu0
    %v324 = vpop.f32.mrb[0].mxu0
    %v325 = vadd.f32 %v265, %v324
    %v326 = vpop.f32.mrb[0].mxu0
    %327 = vmatprep.mubr.bf16.mxu0 0
    %328 = vmatmul.mubr.bf16.gmra.mrb[0].mxu0 %v282
    %v329 = vpop.f32.mrb[0].mxu0
    %v330 = vadd.f32 %v265, %v329
    %v331 = vpop.f32.mrb[0].mxu0
    %v332 = vpop.f32.mrb[0].mxu0
    %v333 = vadd.f32 %v265, %v332
    %v334 = vpop.f32.mrb[0].mxu0
    %335 = vmatprep.mubr.bf16.mxu0 0
    %336 = vmatmul.mubr.bf16.gmra.mrb[0].mxu0 %v285
    %v337 = vpop.f32.mrb[0].mxu0
    %v338 = vadd.f32 %v265, %v337
    %v339 = vpop.f32.mrb[0].mxu0
    %v340 = vpop.f32.mrb[0].mxu0
    %v341 = vadd.f32 %v265, %v340
    %v342 = vpop.f32.mrb[0].mxu0
    %343 = vdwg.mxu0
    %v344 = vmul.f32 %v322, 0.35355338
    %v345 = vmul.f32 %v325, 0.35355338
    %v346 = vmul.f32 %v330, 0.35355338
    %v347 = vmul.f32 %v333, 0.35355338
    %v348 = vmul.f32 %v338, 0.35355338
    %v349 = vmul.f32 %v341, 0.35355338
    %356 = vrot.lane.b32.xlu0 %v322, 96
    %v357 = vpop.permute.xlu0 %356
    %358 = vrot.lane.b32.xlu0 %v325, 96
    %v359 = vpop.permute.xlu0 %358
    %360 = vrot.lane.b32.xlu0 %v330, 96
    %v361 = vpop.permute.xlu0 %360
    %362 = vrot.lane.b32.xlu0 %v333, 96
    %v363 = vpop.permute.xlu0 %362
    %364 = vrot.lane.b32.xlu0 %v338, 96
    %v365 = vpop.permute.xlu0 %364
    %366 = vrot.lane.b32.xlu0 %v341, 96
    %v367 = vpop.permute.xlu0 %366
    %vm368 = vcmask 64512
    %v370 = vsel %vm368, %v344, 0
    %v373 = vsel %vm368, %v345, 0
    %v376 = vsel %vm368, %v346, 0
    %v379 = vsel %vm368, %v347, 0
    %v382 = vsel %vm368, %v348, 0
    %v385 = vsel %vm368, %v349, 0
    %v387 = vsel %vm368, %v357, 0
    %v389 = vsel %vm368, %v359, 0
    %v391 = vsel %vm368, %v361, 0
    %v393 = vsel %vm368, %v363, 0
    %v395 = vsel %vm368, %v365, 0
    %v397 = vsel %vm368, %v367, 0
    %399 = vmatprep.subr.mxu0 0.0
    %400 = vmatpush1.xpose.msra.mxu0 %v387
    %401 = vmatprep.subr.mxu0 0.0
    %402 = vmatpush1.xpose.msra.mxu0 %v389
    %403 = vmatprep.subr.mxu0 0.0
    %404 = vmatpush1.xpose.msra.mxu0 %v391
    %405 = vmatprep.subr.mxu0 0.0
    %406 = vmatpush1.xpose.msra.mxu0 %v393
    %407 = vmatprep.subr.mxu0 0.0
    %408 = vmatpush1.xpose.msra.mxu0 %v395
    %409 = vmatprep.subr.mxu0 0.0
    %410 = vmatpush1.xpose.msra.mxu0 %v397
    %411 = vmatprep.subr.mxu0 0.0
    %412 = vmatpush1.xpose.msra.mxu0 0.0
    %413 = vmatprep.subr.mxu0 0.0
    %414 = vmatpush1.xpose.msra.mxu0 0.0
    %415 = vmatprep.subr.mxu0 0.0
    %416 = vmatpush1.xpose.msra.mxu0 0.0
    %417 = vmatprep.subr.mxu0 0.0
    %418 = vmatpush1.xpose.msra.mxu0 0.0
    %419 = vmatprep.subr.mxu0 0.0
    %420 = vmatpush1.xpose.msra.mxu0 0.0
    %421 = vmatprep.subr.mxu0 0.0
    %422 = vmatpush1.xpose.msra.mxu0 0.0
    %423 = vmatprep.subr.mxu0 0.0
    %424 = vmatpush1.xpose.msra.mxu0 0.0
    %425 = vmatprep.subr.mxu0 0.0
    %426 = vmatpush1.xpose.msra.mxu0 0.0
    %427 = vmatprep.subr.mxu0 0.0
    %428 = vmatpush1.xpose.msra.mxu0 0.0
    %429 = vmatprep.subr.mxu0 0.0
    %430 = vmatpush1.xpose.msra.mxu0 0.0
    %431 = vmatprep.subr.mxu0 0.0
    %432 = vmatpush1.xpose.msra.mxu0 0.0
    %433 = vmatprep.subr.mxu0 0.0
    %434 = vmatpush1.xpose.msra.mxu0 0.0
    %435 = vmatprep.subr.mxu0 0.0
    %436 = vmatpush1.xpose.msra.mxu0 0.0
    %437 = vmatprep.subr.mxu0 0.0
    %438 = vmatpush1.xpose.msra.mxu0 0.0
    %439 = vmatprep.subr.mxu0 0.0
    %440 = vmatpush1.xpose.msra.mxu0 0.0
    %441 = vmatprep.subr.mxu0 0.0
    %442 = vmatpush1.xpose.msra.mxu0 0.0
    %443 = vmatprep.subr.mxu0 0.0
    %444 = vmatpush1.xpose.msra.mxu0 0.0
    %445 = vmatprep.subr.mxu0 0.0
    %446 = vmatpush1.xpose.msra.mxu0 0.0
    %447 = vmatprep.subr.mxu0 0.0
    %448 = vmatpush1.xpose.msra.mxu0 0.0
    %449 = vmatprep.subr.mxu0 0.0
    %450 = vmatpush1.xpose.msra.mxu0 0.0
    %451 = vmatprep.subr.mxu0 0.0
    %452 = vmatpush1.xpose.msra.mxu0 0.0
    %453 = vmatprep.subr.mxu0 0.0
    %454 = vmatpush1.xpose.msra.mxu0 0.0
    %455 = vmatprep.subr.mxu0 0.0
    %456 = vmatpush1.xpose.msra.mxu0 0.0
    %457 = vmatprep.subr.mxu0 0.0
    %458 = vmatpush1.xpose.msra.mxu0 0.0
    %459 = vmatprep.subr.mxu0 0.0
    %460 = vmatpush1.xpose.msra.mxu0 0.0
    %461 = vmatprep.subr.mxu0 0.0
    %462 = vmatpush1.xpose.msra.mxu0 0.0
    %463 = vmatprep.mubr.f32.mxu0 0.0
    %464 = vmatmul.mubr.f32.gmra.mrb[0].mxu0 %v370
    %v465 = vpop.f32.mrb[0].mxu0
    %v466 = vadd.f32 %v23, %v465
    %v467 = vpop.f32.mrb[0].mxu0
    %468 = vmatprep.mubr.f32.mxu0 0.0
    %469 = vmatmul.mubr.f32.gmra.mrb[0].mxu0 %v373
    %v470 = vpop.f32.mrb[0].mxu0
    %v471 = vadd.f32 %v23, %v470
    %v472 = vpop.f32.mrb[0].mxu0
    %473 = vmatprep.mubr.f32.mxu0 0.0
    %474 = vmatmul.mubr.f32.gmra.mrb[0].mxu0 %v376
    %v475 = vpop.f32.mrb[0].mxu0
    %v476 = vadd.f32 %v23, %v475
    %v477 = vpop.f32.mrb[0].mxu0
    %478 = vmatprep.mubr.f32.mxu0 0.0
    %479 = vmatmul.mubr.f32.gmra.mrb[0].mxu0 %v379
    %v480 = vpop.f32.mrb[0].mxu0
    %v481 = vadd.f32 %v28, %v480
    %v482 = vpop.f32.mrb[0].mxu0
    %483 = vmatprep.mubr.f32.mxu0 0.0
    %484 = vmatmul.mubr.f32.gmra.mrb[0].mxu0 %v382
    %v485 = vpop.f32.mrb[0].mxu0
    %v486 = vadd.f32 %v28, %v485
    %v487 = vpop.f32.mrb[0].mxu0
    %488 = vmatprep.mubr.f32.mxu0 0.0
    %489 = vmatmul.mubr.f32.gmra.mrb[0].mxu0 %v385
    %v490 = vpop.f32.mrb[0].mxu0
    %v491 = vadd.f32 %v28, %v490
    %v492 = vpop.f32.mrb[0].mxu0
    %493 = vdwg.mxu0
    %vm494 = vcmask 392192
    %v495 = vsel %vm494, %v466, -inf
    %496 = vmax.xlane.f32.xlu0 %v495
    %v497 = vpop.xlane.xlu0 %496
    %v498 = vsel %vm494, %v471, -inf
    %499 = vmax.xlane.f32.xlu0 %v498
    %v500 = vpop.xlane.xlu0 %499
    %v501 = vsel %vm494, %v476, -inf
    %502 = vmax.xlane.f32.xlu0 %v501
    %v503 = vpop.xlane.xlu0 %502
    %v504 = vsel %vm494, %v481, -inf
    %505 = vmax.xlane.f32.xlu0 %v504
    %v506 = vpop.xlane.xlu0 %505
    %v507 = vsel %vm494, %v486, -inf
    %508 = vmax.xlane.f32.xlu0 %v507
    %v509 = vpop.xlane.xlu0 %508
    %v510 = vsel %vm494, %v491, -inf
    %511 = vmax.xlane.f32.xlu0 %v510
    %v512 = vpop.xlane.xlu0 %511
    %v513 = vsub.f32 %v466, %v497
    %v514 = vsub.f32 %v471, %v500
    %v515 = vsub.f32 %v476, %v503
    %v516 = vsub.f32 %v481, %v506
    %v517 = vsub.f32 %v486, %v509
    %v518 = vsub.f32 %v491, %v512
    %v519 = vmul.f32 %v513, 1.442695
    %v520 = vpow.pop %v519
    %v521 = vmul.f32 %v514, 1.442695
    %v522 = vpow.pop %v521
    %v523 = vmul.f32 %v515, 1.442695
    %v524 = vpow.pop %v523
    %v525 = vmul.f32 %v516, 1.442695
    %v526 = vpow.pop %v525
    %v527 = vmul.f32 %v517, 1.442695
    %v528 = vpow.pop %v527
    %v529 = vmul.f32 %v518, 1.442695
    %v530 = vpow.pop %v529
    %v531 = vsel %vm494, %v520, 0.0
    %532 = vadd.xlane.f32.xlu0 %v531
    %v533 = vpop.xlane.xlu0 %532
    %v534 = vsel %vm494, %v522, 0.0
    %535 = vadd.xlane.f32.xlu0 %v534
    %v536 = vpop.xlane.xlu0 %535
    %v537 = vsel %vm494, %v524, 0.0
    %538 = vadd.xlane.f32.xlu0 %v537
    %v539 = vpop.xlane.xlu0 %538
    %v540 = vsel %vm494, %v526, 0.0
    %541 = vadd.xlane.f32.xlu0 %v540
    %v542 = vpop.xlane.xlu0 %541
    %v543 = vsel %vm494, %v528, 0.0
    %544 = vadd.xlane.f32.xlu0 %v543
    %v545 = vpop.xlane.xlu0 %544
    %v546 = vsel %vm494, %v530, 0.0
    %547 = vadd.xlane.f32.xlu0 %v546
    %v548 = vpop.xlane.xlu0 %547
    %v549 = vrcp.pop %v533
    %v550 = vrcp.pop %v536
    %v551 = vrcp.pop %v539
    %v552 = vrcp.pop %v542
    %v553 = vrcp.pop %v545
    %v554 = vrcp.pop %v548
    %v555 = vmul.f32 %v520, %v549
    %v556 = vmul.f32 %v522, %v550
    %v557 = vmul.f32 %v524, %v551
    %v558 = vmul.f32 %v526, %v552
    %v559 = vmul.f32 %v528, %v553
    %v560 = vmul.f32 %v530, %v554
    %561 = vrot.lane.b32.xlu0 %v322, 64
    %v562 = vpop.permute.xlu0 %561
    %563 = vrot.lane.b32.xlu0 %v325, 64
    %v564 = vpop.permute.xlu0 %563
    %565 = vrot.lane.b32.xlu0 %v330, 64
    %v566 = vpop.permute.xlu0 %565
    %567 = vrot.lane.b32.xlu0 %v333, 64
    %v568 = vpop.permute.xlu0 %567
    %569 = vrot.lane.b32.xlu0 %v338, 64
    %v570 = vpop.permute.xlu0 %569
    %571 = vrot.lane.b32.xlu0 %v341, 64
    %v572 = vpop.permute.xlu0 %571
    %v580 = vsel %vm494, %v555, 0
    %v583 = vsel %vm494, %v556, 0
    %v586 = vsel %vm494, %v557, 0
    %v589 = vsel %vm494, %v558, 0
    %v592 = vsel %vm494, %v559, 0
    %v595 = vsel %vm494, %v560, 0
    %597 = vmatprep.subr.mxu0 0.0
    %598 = vmatpush1.msra.mxu0 %v562
    %599 = vmatprep.subr.mxu0 0.0
    %600 = vmatpush1.msra.mxu0 %v564
    %601 = vmatprep.subr.mxu0 0.0
    %602 = vmatpush1.msra.mxu0 %v566
    %603 = vmatprep.subr.mxu0 0.0
    %604 = vmatpush1.msra.mxu0 %v568
    %605 = vmatprep.subr.mxu0 0.0
    %606 = vmatpush1.msra.mxu0 %v570
    %607 = vmatprep.subr.mxu0 0.0
    %608 = vmatpush1.msra.mxu0 %v572
    %609 = vmatprep.subr.mxu0 0.0
    %610 = vmatpush1.msra.mxu0 0.0
    %611 = vmatprep.subr.mxu0 0.0
    %612 = vmatpush1.msra.mxu0 0.0
    %613 = vmatprep.subr.mxu0 0.0
    %614 = vmatpush1.msra.mxu0 0.0
    %615 = vmatprep.subr.mxu0 0.0
    %616 = vmatpush1.msra.mxu0 0.0
    %617 = vmatprep.subr.mxu0 0.0
    %618 = vmatpush1.msra.mxu0 0.0
    %619 = vmatprep.subr.mxu0 0.0
    %620 = vmatpush1.msra.mxu0 0.0
    %621 = vmatprep.subr.mxu0 0.0
    %622 = vmatpush1.msra.mxu0 0.0
    %623 = vmatprep.subr.mxu0 0.0
    %624 = vmatpush1.msra.mxu0 0.0
    %625 = vmatprep.subr.mxu0 0.0
    %626 = vmatpush1.msra.mxu0 0.0
    %627 = vmatprep.subr.mxu0 0.0
    %628 = vmatpush1.msra.mxu0 0.0
    %629 = vmatprep.subr.mxu0 0.0
    %630 = vmatpush1.msra.mxu0 0.0
    %631 = vmatprep.subr.mxu0 0.0
    %632 = vmatpush1.msra.mxu0 0.0
    %633 = vmatprep.subr.mxu0 0.0
    %634 = vmatpush1.msra.mxu0 0.0
    %635 = vmatprep.subr.mxu0 0.0
    %636 = vmatpush1.msra.mxu0 0.0
    %637 = vmatprep.subr.mxu0 0.0
    %638 = vmatpush1.msra.mxu0 0.0
    %639 = vmatprep.subr.mxu0 0.0
    %640 = vmatpush1.msra.mxu0 0.0
    %641 = vmatprep.subr.mxu0 0.0
    %642 = vmatpush1.msra.mxu0 0.0
    %643 = vmatprep.subr.mxu0 0.0
    %644 = vmatpush1.msra.mxu0 0.0
    %645 = vmatprep.subr.mxu0 0.0
    %646 = vmatpush1.msra.mxu0 0.0
    %647 = vmatprep.subr.mxu0 0.0
    %648 = vmatpush1.msra.mxu0 0.0
    %649 = vmatprep.subr.mxu0 0.0
    %650 = vmatpush1.msra.mxu0 0.0
    %651 = vmatprep.subr.mxu0 0.0
    %652 = vmatpush1.msra.mxu0 0.0
    %653 = vmatprep.subr.mxu0 0.0
    %654 = vmatpush1.msra.mxu0 0.0
    %655 = vmatprep.subr.mxu0 0.0
    %656 = vmatpush1.msra.mxu0 0.0
    %657 = vmatprep.subr.mxu0 0.0
    %658 = vmatpush1.msra.mxu0 0.0
    %659 = vmatprep.subr.mxu0 0.0
    %660 = vmatpush1.msra.mxu0 0.0
    %661 = vmatprep.mubr.f32.mxu0 0.0
    %662 = vmatmul.mubr.f32.gmra.mrb[0].mxu0 %v580
    %v663 = vpop.f32.mrb[0].mxu0
    %v664 = vadd.f32 0.0, %v663
    %v665 = vpop.f32.mrb[0].mxu0
    %666 = vmatprep.mubr.f32.mxu0 0.0
    %667 = vmatmul.mubr.f32.gmra.mrb[0].mxu0 %v583
    %v668 = vpop.f32.mrb[0].mxu0
    %v669 = vadd.f32 0.0, %v668
    %v670 = vpop.f32.mrb[0].mxu0
    %671 = vmatprep.mubr.f32.mxu0 0.0
    %672 = vmatmul.mubr.f32.gmra.mrb[0].mxu0 %v586
    %v673 = vpop.f32.mrb[0].mxu0
    %v674 = vadd.f32 0.0, %v673
    %v675 = vpop.f32.mrb[0].mxu0
    %676 = vmatprep.mubr.f32.mxu0 0.0
    %677 = vmatmul.mubr.f32.gmra.mrb[0].mxu0 %v589
    %v678 = vpop.f32.mrb[0].mxu0
    %v679 = vadd.f32 0.0, %v678
    %v680 = vpop.f32.mrb[0].mxu0
    %681 = vmatprep.mubr.f32.mxu0 0.0
    %682 = vmatmul.mubr.f32.gmra.mrb[0].mxu0 %v592
    %v683 = vpop.f32.mrb[0].mxu0
    %v684 = vadd.f32 0.0, %v683
    %v685 = vpop.f32.mrb[0].mxu0
    %686 = vmatprep.mubr.f32.mxu0 0.0
    %687 = vmatmul.mubr.f32.gmra.mrb[0].mxu0 %v595
    %v688 = vpop.f32.mrb[0].mxu0
    %v689 = vadd.f32 0.0, %v688
    %v690 = vpop.f32.mrb[0].mxu0
    %691 = vdwg.mxu0
    %692 = vrot.lane.b32.xlu0 %v344, 120
    %v693 = vpop.permute.xlu0 %692
    %694 = vrot.lane.b32.xlu0 %v345, 120
    %v695 = vpop.permute.xlu0 %694
    %696 = vrot.lane.b32.xlu0 %v346, 120
    %v697 = vpop.permute.xlu0 %696
    %698 = vrot.lane.b32.xlu0 %v347, 120
    %v699 = vpop.permute.xlu0 %698
    %700 = vrot.lane.b32.xlu0 %v348, 120
    %v701 = vpop.permute.xlu0 %700
    %702 = vrot.lane.b32.xlu0 %v349, 120
    %v703 = vpop.permute.xlu0 %702
    %704 = vrot.lane.b32.xlu0 %v322, 88
    %v705 = vpop.permute.xlu0 %704
    %706 = vrot.lane.b32.xlu0 %v325, 88
    %v707 = vpop.permute.xlu0 %706
    %708 = vrot.lane.b32.xlu0 %v330, 88
    %v709 = vpop.permute.xlu0 %708
    %710 = vrot.lane.b32.xlu0 %v333, 88
    %v711 = vpop.permute.xlu0 %710
    %712 = vrot.lane.b32.xlu0 %v338, 88
    %v713 = vpop.permute.xlu0 %712
    %714 = vrot.lane.b32.xlu0 %v341, 88
    %v715 = vpop.permute.xlu0 %714
    %v716 = vsel %vm368, %v693, 0
    %v718 = vsel %vm368, %v695, 0
    %v720 = vsel %vm368, %v697, 0
    %v722 = vsel %vm368, %v699, 0
    %v724 = vsel %vm368, %v701, 0
    %v726 = vsel %vm368, %v703, 0
    %v728 = vsel %vm368, %v705, 0
    %v730 = vsel %vm368, %v707, 0
    %v732 = vsel %vm368, %v709, 0
    %v734 = vsel %vm368, %v711, 0
    %v736 = vsel %vm368, %v713, 0
    %v738 = vsel %vm368, %v715, 0
    %740 = vmatprep.subr.mxu0 0.0
    %741 = vmatpush1.xpose.msra.mxu0 %v728
    %742 = vmatprep.subr.mxu0 0.0
    %743 = vmatpush1.xpose.msra.mxu0 %v730
    %744 = vmatprep.subr.mxu0 0.0
    %745 = vmatpush1.xpose.msra.mxu0 %v732
    %746 = vmatprep.subr.mxu0 0.0
    %747 = vmatpush1.xpose.msra.mxu0 %v734
    %748 = vmatprep.subr.mxu0 0.0
    %749 = vmatpush1.xpose.msra.mxu0 %v736
    %750 = vmatprep.subr.mxu0 0.0
    %751 = vmatpush1.xpose.msra.mxu0 %v738
    %752 = vmatprep.subr.mxu0 0.0
    %753 = vmatpush1.xpose.msra.mxu0 0.0
    %754 = vmatprep.subr.mxu0 0.0
    %755 = vmatpush1.xpose.msra.mxu0 0.0
    %756 = vmatprep.subr.mxu0 0.0
    %757 = vmatpush1.xpose.msra.mxu0 0.0
    %758 = vmatprep.subr.mxu0 0.0
    %759 = vmatpush1.xpose.msra.mxu0 0.0
    %760 = vmatprep.subr.mxu0 0.0
    %761 = vmatpush1.xpose.msra.mxu0 0.0
    %762 = vmatprep.subr.mxu0 0.0
    %763 = vmatpush1.xpose.msra.mxu0 0.0
    %764 = vmatprep.subr.mxu0 0.0
    %765 = vmatpush1.xpose.msra.mxu0 0.0
    %766 = vmatprep.subr.mxu0 0.0
    %767 = vmatpush1.xpose.msra.mxu0 0.0
    %768 = vmatprep.subr.mxu0 0.0
    %769 = vmatpush1.xpose.msra.mxu0 0.0
    %770 = vmatprep.subr.mxu0 0.0
    %771 = vmatpush1.xpose.msra.mxu0 0.0
    %772 = vmatprep.subr.mxu0 0.0
    %773 = vmatpush1.xpose.msra.mxu0 0.0
    %774 = vmatprep.subr.mxu0 0.0
    %775 = vmatpush1.xpose.msra.mxu0 0.0
    %776 = vmatprep.subr.mxu0 0.0
    %777 = vmatpush1.xpose.msra.mxu0 0.0
    %778 = vmatprep.subr.mxu0 0.0
    %779 = vmatpush1.xpose.msra.mxu0 0.0
    %780 = vmatprep.subr.mxu0 0.0
    %781 = vmatpush1.xpose.msra.mxu0 0.0
    %782 = vmatprep.subr.mxu0 0.0
    %783 = vmatpush1.xpose.msra.mxu0 0.0
    %784 = vmatprep.subr.mxu0 0.0
    %785 = vmatpush1.xpose.msra.mxu0 0.0
    %786 = vmatprep.subr.mxu0 0.0
    %787 = vmatpush1.xpose.msra.mxu0 0.0
    %788 = vmatprep.subr.mxu0 0.0
    %789 = vmatpush1.xpose.msra.mxu0 0.0
    %790 = vmatprep.subr.mxu0 0.0
    %791 = vmatpush1.xpose.msra.mxu0 0.0
    %792 = vmatprep.subr.mxu0 0.0
    %793 = vmatpush1.xpose.msra.mxu0 0.0
    %794 = vmatprep.subr.mxu0 0.0
    %795 = vmatpush1.xpose.msra.mxu0 0.0
    %796 = vmatprep.subr.mxu0 0.0
    %797 = vmatpush1.xpose.msra.mxu0 0.0
    %798 = vmatprep.subr.mxu0 0.0
    %799 = vmatpush1.xpose.msra.mxu0 0.0
    %800 = vmatprep.subr.mxu0 0.0
    %801 = vmatpush1.xpose.msra.mxu0 0.0
    %802 = vmatprep.subr.mxu0 0.0
    %803 = vmatpush1.xpose.msra.mxu0 0.0
    %804 = vmatprep.mubr.f32.mxu0 0.0
    %805 = vmatmul.mubr.f32.gmra.mrb[0].mxu0 %v716
    %v806 = vpop.f32.mrb[0].mxu0
    %v807 = vadd.f32 %v23, %v806
    %v808 = vpop.f32.mrb[0].mxu0
    %809 = vmatprep.mubr.f32.mxu0 0.0
    %810 = vmatmul.mubr.f32.gmra.mrb[0].mxu0 %v718
    %v811 = vpop.f32.mrb[0].mxu0
    %v812 = vadd.f32 %v23, %v811
    %v813 = vpop.f32.mrb[0].mxu0
    %814 = vmatprep.mubr.f32.mxu0 0.0
    %815 = vmatmul.mubr.f32.gmra.mrb[0].mxu0 %v720
    %v816 = vpop.f32.mrb[0].mxu0
    %v817 = vadd.f32 %v23, %v816
    %v818 = vpop.f32.mrb[0].mxu0
    %819 = vmatprep.mubr.f32.mxu0 0.0
    %820 = vmatmul.mubr.f32.gmra.mrb[0].mxu0 %v722
    %v821 = vpop.f32.mrb[0].mxu0
    %v822 = vadd.f32 %v28, %v821
    %v823 = vpop.f32.mrb[0].mxu0
    %824 = vmatprep.mubr.f32.mxu0 0.0
    %825 = vmatmul.mubr.f32.gmra.mrb[0].mxu0 %v724
    %v826 = vpop.f32.mrb[0].mxu0
    %v827 = vadd.f32 %v28, %v826
    %v828 = vpop.f32.mrb[0].mxu0
    %829 = vmatprep.mubr.f32.mxu0 0.0
    %830 = vmatmul.mubr.f32.gmra.mrb[0].mxu0 %v726
    %v831 = vpop.f32.mrb[0].mxu0
    %v832 = vadd.f32 %v28, %v831
    %v833 = vpop.f32.mrb[0].mxu0
    %834 = vdwg.mxu0
    %v835 = vsel %vm494, %v807, -inf
    %836 = vmax.xlane.f32.xlu0 %v835
    %v837 = vpop.xlane.xlu0 %836
    %v838 = vsel %vm494, %v812, -inf
    %839 = vmax.xlane.f32.xlu0 %v838
    %v840 = vpop.xlane.xlu0 %839
    %v841 = vsel %vm494, %v817, -inf
    %842 = vmax.xlane.f32.xlu0 %v841
    %v843 = vpop.xlane.xlu0 %842
    %v844 = vsel %vm494, %v822, -inf
    %845 = vmax.xlane.f32.xlu0 %v844
    %v846 = vpop.xlane.xlu0 %845
    %v847 = vsel %vm494, %v827, -inf
    %848 = vmax.xlane.f32.xlu0 %v847
    %v849 = vpop.xlane.xlu0 %848
    %v850 = vsel %vm494, %v832, -inf
    %851 = vmax.xlane.f32.xlu0 %v850
    %v852 = vpop.xlane.xlu0 %851
    %v853 = vsub.f32 %v807, %v837
    %v854 = vsub.f32 %v812, %v840
    %v855 = vsub.f32 %v817, %v843
    %v856 = vsub.f32 %v822, %v846
    %v857 = vsub.f32 %v827, %v849
    %v858 = vsub.f32 %v832, %v852
    %v859 = vmul.f32 %v853, 1.442695
    %v860 = vpow.pop %v859
    %v861 = vmul.f32 %v854, 1.442695
    %v862 = vpow.pop %v861
    %v863 = vmul.f32 %v855, 1.442695
    %v864 = vpow.pop %v863
    %v865 = vmul.f32 %v856, 1.442695
    %v866 = vpow.pop %v865
    %v867 = vmul.f32 %v857, 1.442695
    %v868 = vpow.pop %v867
    %v869 = vmul.f32 %v858, 1.442695
    %v870 = vpow.pop %v869
    %v871 = vsel %vm494, %v860, 0.0
    %872 = vadd.xlane.f32.xlu0 %v871
    %v873 = vpop.xlane.xlu0 %872
    %v874 = vsel %vm494, %v862, 0.0
    %875 = vadd.xlane.f32.xlu0 %v874
    %v876 = vpop.xlane.xlu0 %875
    %v877 = vsel %vm494, %v864, 0.0
    %878 = vadd.xlane.f32.xlu0 %v877
    %v879 = vpop.xlane.xlu0 %878
    %v880 = vsel %vm494, %v866, 0.0
    %881 = vadd.xlane.f32.xlu0 %v880
    %v882 = vpop.xlane.xlu0 %881
    %v883 = vsel %vm494, %v868, 0.0
    %884 = vadd.xlane.f32.xlu0 %v883
    %v885 = vpop.xlane.xlu0 %884
    %v886 = vsel %vm494, %v870, 0.0
    %887 = vadd.xlane.f32.xlu0 %v886
    %v888 = vpop.xlane.xlu0 %887
    %v889 = vrcp.pop %v873
    %v890 = vrcp.pop %v876
    %v891 = vrcp.pop %v879
    %v892 = vrcp.pop %v882
    %v893 = vrcp.pop %v885
    %v894 = vrcp.pop %v888
    %v895 = vmul.f32 %v860, %v889
    %v896 = vmul.f32 %v862, %v890
    %v897 = vmul.f32 %v864, %v891
    %v898 = vmul.f32 %v866, %v892
    %v899 = vmul.f32 %v868, %v893
    %v900 = vmul.f32 %v870, %v894
    %901 = vrot.lane.b32.xlu0 %v322, 56
    %v902 = vpop.permute.xlu0 %901
    %903 = vrot.lane.b32.xlu0 %v325, 56
    %v904 = vpop.permute.xlu0 %903
    %905 = vrot.lane.b32.xlu0 %v330, 56
    %v906 = vpop.permute.xlu0 %905
    %907 = vrot.lane.b32.xlu0 %v333, 56
    %v908 = vpop.permute.xlu0 %907
    %909 = vrot.lane.b32.xlu0 %v338, 56
    %v910 = vpop.permute.xlu0 %909
    %911 = vrot.lane.b32.xlu0 %v341, 56
    %v912 = vpop.permute.xlu0 %911
    %v920 = vsel %vm494, %v895, 0
    %v923 = vsel %vm494, %v896, 0
    %v926 = vsel %vm494, %v897, 0
    %v929 = vsel %vm494, %v898, 0
    %v932 = vsel %vm494, %v899, 0
    %v935 = vsel %vm494, %v900, 0
    %937 = vmatprep.subr.mxu0 0.0
    %938 = vmatpush1.msra.mxu0 %v902
    %939 = vmatprep.subr.mxu0 0.0
    %940 = vmatpush1.msra.mxu0 %v904
    %941 = vmatprep.subr.mxu0 0.0
    %942 = vmatpush1.msra.mxu0 %v906
    %943 = vmatprep.subr.mxu0 0.0
    %944 = vmatpush1.msra.mxu0 %v908
    %945 = vmatprep.subr.mxu0 0.0
    %946 = vmatpush1.msra.mxu0 %v910
    %947 = vmatprep.subr.mxu0 0.0
    %948 = vmatpush1.msra.mxu0 %v912
    %949 = vmatprep.subr.mxu0 0.0
    %950 = vmatpush1.msra.mxu0 0.0
    %951 = vmatprep.subr.mxu0 0.0
    %952 = vmatpush1.msra.mxu0 0.0
    %953 = vmatprep.subr.mxu0 0.0
    %954 = vmatpush1.msra.mxu0 0.0
    %955 = vmatprep.subr.mxu0 0.0
    %956 = vmatpush1.msra.mxu0 0.0
    %957 = vmatprep.subr.mxu0 0.0
    %958 = vmatpush1.msra.mxu0 0.0
    %959 = vmatprep.subr.mxu0 0.0
    %960 = vmatpush1.msra.mxu0 0.0
    %961 = vmatprep.subr.mxu0 0.0
    %962 = vmatpush1.msra.mxu0 0.0
    %963 = vmatprep.subr.mxu0 0.0
    %964 = vmatpush1.msra.mxu0 0.0
    %965 = vmatprep.subr.mxu0 0.0
    %966 = vmatpush1.msra.mxu0 0.0
    %967 = vmatprep.subr.mxu0 0.0
    %968 = vmatpush1.msra.mxu0 0.0
    %969 = vmatprep.subr.mxu0 0.0
    %970 = vmatpush1.msra.mxu0 0.0
    %971 = vmatprep.subr.mxu0 0.0
    %972 = vmatpush1.msra.mxu0 0.0
    %973 = vmatprep.subr.mxu0 0.0
    %974 = vmatpush1.msra.mxu0 0.0
    %975 = vmatprep.subr.mxu0 0.0
    %976 = vmatpush1.msra.mxu0 0.0
    %977 = vmatprep.subr.mxu0 0.0
    %978 = vmatpush1.msra.mxu0 0.0
    %979 = vmatprep.subr.mxu0 0.0
    %980 = vmatpush1.msra.mxu0 0.0
    %981 = vmatprep.subr.mxu0 0.0
    %982 = vmatpush1.msra.mxu0 0.0
    %983 = vmatprep.subr.mxu0 0.0
    %984 = vmatpush1.msra.mxu0 0.0
    %985 = vmatprep.subr.mxu0 0.0
    %986 = vmatpush1.msra.mxu0 0.0
    %987 = vmatprep.subr.mxu0 0.0
    %988 = vmatpush1.msra.mxu0 0.0
    %989 = vmatprep.subr.mxu0 0.0
    %990 = vmatpush1.msra.mxu0 0.0
    %991 = vmatprep.subr.mxu0 0.0
    %992 = vmatpush1.msra.mxu0 0.0
    %993 = vmatprep.subr.mxu0 0.0
    %994 = vmatpush1.msra.mxu0 0.0
    %995 = vmatprep.subr.mxu0 0.0
    %996 = vmatpush1.msra.mxu0 0.0
    %997 = vmatprep.subr.mxu0 0.0
    %998 = vmatpush1.msra.mxu0 0.0
    %999 = vmatprep.subr.mxu0 0.0
    %1000 = vmatpush1.msra.mxu0 0.0
    %1001 = vmatprep.mubr.f32.mxu0 0.0
    %1002 = vmatmul.mubr.f32.gmra.mrb[0].mxu0 %v920
    %v1003 = vpop.f32.mrb[0].mxu0
    %v1004 = vadd.f32 0.0, %v1003
    %v1005 = vpop.f32.mrb[0].mxu0
    %1006 = vmatprep.mubr.f32.mxu0 0.0
    %1007 = vmatmul.mubr.f32.gmra.mrb[0].mxu0 %v923
    %v1008 = vpop.f32.mrb[0].mxu0
    %v1009 = vadd.f32 0.0, %v1008
    %v1010 = vpop.f32.mrb[0].mxu0
    %1011 = vmatprep.mubr.f32.mxu0 0.0
    %1012 = vmatmul.mubr.f32.gmra.mrb[0].mxu0 %v926
    %v1013 = vpop.f32.mrb[0].mxu0
    %v1014 = vadd.f32 0.0, %v1013
    %v1015 = vpop.f32.mrb[0].mxu0
    %1016 = vmatprep.mubr.f32.mxu0 0.0
    %1017 = vmatmul.mubr.f32.gmra.mrb[0].mxu0 %v929
    %v1018 = vpop.f32.mrb[0].mxu0
    %v1019 = vadd.f32 0.0, %v1018
    %v1020 = vpop.f32.mrb[0].mxu0
    %1021 = vmatprep.mubr.f32.mxu0 0.0
    %1022 = vmatmul.mubr.f32.gmra.mrb[0].mxu0 %v932
    %v1023 = vpop.f32.mrb[0].mxu0
    %v1024 = vadd.f32 0.0, %v1023
    %v1025 = vpop.f32.mrb[0].mxu0
    %1026 = vmatprep.mubr.f32.mxu0 0.0
    %1027 = vmatmul.mubr.f32.gmra.mrb[0].mxu0 %v935
    %v1028 = vpop.f32.mrb[0].mxu0
    %v1029 = vadd.f32 0.0, %v1028
    %v1030 = vpop.f32.mrb[0].mxu0
    %1031 = vdwg.mxu0
    %1032 = vrot.lane.b32.xlu0 %v344, 112
    %v1033 = vpop.permute.xlu0 %1032
    %1034 = vrot.lane.b32.xlu0 %v345, 112
    %v1035 = vpop.permute.xlu0 %1034
    %1036 = vrot.lane.b32.xlu0 %v346, 112
    %v1037 = vpop.permute.xlu0 %1036
    %1038 = vrot.lane.b32.xlu0 %v347, 112
    %v1039 = vpop.permute.xlu0 %1038
    %1040 = vrot.lane.b32.xlu0 %v348, 112
    %v1041 = vpop.permute.xlu0 %1040
    %1042 = vrot.lane.b32.xlu0 %v349, 112
    %v1043 = vpop.permute.xlu0 %1042
    %1044 = vrot.lane.b32.xlu0 %v322, 80
    %v1045 = vpop.permute.xlu0 %1044
    %1046 = vrot.lane.b32.xlu0 %v325, 80
    %v1047 = vpop.permute.xlu0 %1046
    %1048 = vrot.lane.b32.xlu0 %v330, 80
    %v1049 = vpop.permute.xlu0 %1048
    %1050 = vrot.lane.b32.xlu0 %v333, 80
    %v1051 = vpop.permute.xlu0 %1050
    %1052 = vrot.lane.b32.xlu0 %v338, 80
    %v1053 = vpop.permute.xlu0 %1052
    %1054 = vrot.lane.b32.xlu0 %v341, 80
    %v1055 = vpop.permute.xlu0 %1054
    %v1056 = vsel %vm368, %v1033, 0
    %v1058 = vsel %vm368, %v1035, 0
    %v1060 = vsel %vm368, %v1037, 0
    %v1062 = vsel %vm368, %v1039, 0
    %v1064 = vsel %vm368, %v1041, 0
    %v1066 = vsel %vm368, %v1043, 0
    %v1068 = vsel %vm368, %v1045, 0
    %v1070 = vsel %vm368, %v1047, 0
    %v1072 = vsel %vm368, %v1049, 0
    %v1074 = vsel %vm368, %v1051, 0
    %v1076 = vsel %vm368, %v1053, 0
    %v1078 = vsel %vm368, %v1055, 0
    %1080 = vmatprep.subr.mxu0 0.0
    %1081 = vmatpush1.xpose.msra.mxu0 %v1068
    %1082 = vmatprep.subr.mxu0 0.0
    %1083 = vmatpush1.xpose.msra.mxu0 %v1070
    %1084 = vmatprep.subr.mxu0 0.0
    %1085 = vmatpush1.xpose.msra.mxu0 %v1072
    %1086 = vmatprep.subr.mxu0 0.0
    %1087 = vmatpush1.xpose.msra.mxu0 %v1074
    %1088 = vmatprep.subr.mxu0 0.0
    %1089 = vmatpush1.xpose.msra.mxu0 %v1076
    %1090 = vmatprep.subr.mxu0 0.0
    %1091 = vmatpush1.xpose.msra.mxu0 %v1078
    %1092 = vmatprep.subr.mxu0 0.0
    %1093 = vmatpush1.xpose.msra.mxu0 0.0
    %1094 = vmatprep.subr.mxu0 0.0
    %1095 = vmatpush1.xpose.msra.mxu0 0.0
    %1096 = vmatprep.subr.mxu0 0.0
    %1097 = vmatpush1.xpose.msra.mxu0 0.0
    %1098 = vmatprep.subr.mxu0 0.0
    %1099 = vmatpush1.xpose.msra.mxu0 0.0
    %1100 = vmatprep.subr.mxu0 0.0
    %1101 = vmatpush1.xpose.msra.mxu0 0.0
    %1102 = vmatprep.subr.mxu0 0.0
    %1103 = vmatpush1.xpose.msra.mxu0 0.0
    %1104 = vmatprep.subr.mxu0 0.0
    %1105 = vmatpush1.xpose.msra.mxu0 0.0
    %1106 = vmatprep.subr.mxu0 0.0
    %1107 = vmatpush1.xpose.msra.mxu0 0.0
    %1108 = vmatprep.subr.mxu0 0.0
    %1109 = vmatpush1.xpose.msra.mxu0 0.0
    %1110 = vmatprep.subr.mxu0 0.0
    %1111 = vmatpush1.xpose.msra.mxu0 0.0
    %1112 = vmatprep.subr.mxu0 0.0
    %1113 = vmatpush1.xpose.msra.mxu0 0.0
    %1114 = vmatprep.subr.mxu0 0.0
    %1115 = vmatpush1.xpose.msra.mxu0 0.0
    %1116 = vmatprep.subr.mxu0 0.0
    %1117 = vmatpush1.xpose.msra.mxu0 0.0
    %1118 = vmatprep.subr.mxu0 0.0
    %1119 = vmatpush1.xpose.msra.mxu0 0.0
    %1120 = vmatprep.subr.mxu0 0.0
    %1121 = vmatpush1.xpose.msra.mxu0 0.0
    %1122 = vmatprep.subr.mxu0 0.0
    %1123 = vmatpush1.xpose.msra.mxu0 0.0
    %1124 = vmatprep.subr.mxu0 0.0
    %1125 = vmatpush1.xpose.msra.mxu0 0.0
    %1126 = vmatprep.subr.mxu0 0.0
    %1127 = vmatpush1.xpose.msra.mxu0 0.0
    %1128 = vmatprep.subr.mxu0 0.0
    %1129 = vmatpush1.xpose.msra.mxu0 0.0
    %1130 = vmatprep.subr.mxu0 0.0
    %1131 = vmatpush1.xpose.msra.mxu0 0.0
    %1132 = vmatprep.subr.mxu0 0.0
    %1133 = vmatpush1.xpose.msra.mxu0 0.0
    %1134 = vmatprep.subr.mxu0 0.0
    %1135 = vmatpush1.xpose.msra.mxu0 0.0
    %1136 = vmatprep.subr.mxu0 0.0
    %1137 = vmatpush1.xpose.msra.mxu0 0.0
    %1138 = vmatprep.subr.mxu0 0.0
    %1139 = vmatpush1.xpose.msra.mxu0 0.0
    %1140 = vmatprep.subr.mxu0 0.0
    %1141 = vmatpush1.xpose.msra.mxu0 0.0
    %1142 = vmatprep.subr.mxu0 0.0
    %1143 = vmatpush1.xpose.msra.mxu0 0.0
    %1144 = vmatprep.mubr.f32.mxu0 0.0
    %1145 = vmatmul.mubr.f32.gmra.mrb[0].mxu0 %v1056
    %v1146 = vpop.f32.mrb[0].mxu0
    %v1147 = vadd.f32 %v23, %v1146
    %v1148 = vpop.f32.mrb[0].mxu0
    %1149 = vmatprep.mubr.f32.mxu0 0.0
    %1150 = vmatmul.mubr.f32.gmra.mrb[0].mxu0 %v1058
    %v1151 = vpop.f32.mrb[0].mxu0
    %v1152 = vadd.f32 %v23, %v1151
    %v1153 = vpop.f32.mrb[0].mxu0
    %1154 = vmatprep.mubr.f32.mxu0 0.0
    %1155 = vmatmul.mubr.f32.gmra.mrb[0].mxu0 %v1060
    %v1156 = vpop.f32.mrb[0].mxu0
    %v1157 = vadd.f32 %v23, %v1156
    %v1158 = vpop.f32.mrb[0].mxu0
    %1159 = vmatprep.mubr.f32.mxu0 0.0
    %1160 = vmatmul.mubr.f32.gmra.mrb[0].mxu0 %v1062
    %v1161 = vpop.f32.mrb[0].mxu0
    %v1162 = vadd.f32 %v28, %v1161
    %v1163 = vpop.f32.mrb[0].mxu0
    %1164 = vmatprep.mubr.f32.mxu0 0.0
    %1165 = vmatmul.mubr.f32.gmra.mrb[0].mxu0 %v1064
    %v1166 = vpop.f32.mrb[0].mxu0
    %v1167 = vadd.f32 %v28, %v1166
    %v1168 = vpop.f32.mrb[0].mxu0
    %1169 = vmatprep.mubr.f32.mxu0 0.0
    %1170 = vmatmul.mubr.f32.gmra.mrb[0].mxu0 %v1066
    %v1171 = vpop.f32.mrb[0].mxu0
    %v1172 = vadd.f32 %v28, %v1171
    %v1173 = vpop.f32.mrb[0].mxu0
    %1174 = vdwg.mxu0
    %v1175 = vsel %vm494, %v1147, -inf
    %1176 = vmax.xlane.f32.xlu0 %v1175
    %v1177 = vpop.xlane.xlu0 %1176
    %v1178 = vsel %vm494, %v1152, -inf
    %1179 = vmax.xlane.f32.xlu0 %v1178
    %v1180 = vpop.xlane.xlu0 %1179
    %v1181 = vsel %vm494, %v1157, -inf
    %1182 = vmax.xlane.f32.xlu0 %v1181
    %v1183 = vpop.xlane.xlu0 %1182
    %v1184 = vsel %vm494, %v1162, -inf
    %1185 = vmax.xlane.f32.xlu0 %v1184
    %v1186 = vpop.xlane.xlu0 %1185
    %v1187 = vsel %vm494, %v1167, -inf
    %1188 = vmax.xlane.f32.xlu0 %v1187
    %v1189 = vpop.xlane.xlu0 %1188
    %v1190 = vsel %vm494, %v1172, -inf
    %1191 = vmax.xlane.f32.xlu0 %v1190
    %v1192 = vpop.xlane.xlu0 %1191
    %v1193 = vsub.f32 %v1147, %v1177
    %v1194 = vsub.f32 %v1152, %v1180
    %v1195 = vsub.f32 %v1157, %v1183
    %v1196 = vsub.f32 %v1162, %v1186
    %v1197 = vsub.f32 %v1167, %v1189
    %v1198 = vsub.f32 %v1172, %v1192
    %v1199 = vmul.f32 %v1193, 1.442695
    %v1200 = vpow.pop %v1199
    %v1201 = vmul.f32 %v1194, 1.442695
    %v1202 = vpow.pop %v1201
    %v1203 = vmul.f32 %v1195, 1.442695
    %v1204 = vpow.pop %v1203
    %v1205 = vmul.f32 %v1196, 1.442695
    %v1206 = vpow.pop %v1205
    %v1207 = vmul.f32 %v1197, 1.442695
    %v1208 = vpow.pop %v1207
    %v1209 = vmul.f32 %v1198, 1.442695
    %v1210 = vpow.pop %v1209
    %v1211 = vsel %vm494, %v1200, 0.0
    %1212 = vadd.xlane.f32.xlu0 %v1211
    %v1213 = vpop.xlane.xlu0 %1212
    %v1214 = vsel %vm494, %v1202, 0.0
    %1215 = vadd.xlane.f32.xlu0 %v1214
    %v1216 = vpop.xlane.xlu0 %1215
    %v1217 = vsel %vm494, %v1204, 0.0
    %1218 = vadd.xlane.f32.xlu0 %v1217
    %v1219 = vpop.xlane.xlu0 %1218
    %v1220 = vsel %vm494, %v1206, 0.0
    %1221 = vadd.xlane.f32.xlu0 %v1220
    %v1222 = vpop.xlane.xlu0 %1221
    %v1223 = vsel %vm494, %v1208, 0.0
    %1224 = vadd.xlane.f32.xlu0 %v1223
    %v1225 = vpop.xlane.xlu0 %1224
    %v1226 = vsel %vm494, %v1210, 0.0
    %1227 = vadd.xlane.f32.xlu0 %v1226
    %v1228 = vpop.xlane.xlu0 %1227
    %v1229 = vrcp.pop %v1213
    %v1230 = vrcp.pop %v1216
    %v1231 = vrcp.pop %v1219
    %v1232 = vrcp.pop %v1222
    %v1233 = vrcp.pop %v1225
    %v1234 = vrcp.pop %v1228
    %v1235 = vmul.f32 %v1200, %v1229
    %v1236 = vmul.f32 %v1202, %v1230
    %v1237 = vmul.f32 %v1204, %v1231
    %v1238 = vmul.f32 %v1206, %v1232
    %v1239 = vmul.f32 %v1208, %v1233
    %v1240 = vmul.f32 %v1210, %v1234
    %1241 = vrot.lane.b32.xlu0 %v322, 48
    %v1242 = vpop.permute.xlu0 %1241
    %1243 = vrot.lane.b32.xlu0 %v325, 48
    %v1244 = vpop.permute.xlu0 %1243
    %1245 = vrot.lane.b32.xlu0 %v330, 48
    %v1246 = vpop.permute.xlu0 %1245
    %1247 = vrot.lane.b32.xlu0 %v333, 48
    %v1248 = vpop.permute.xlu0 %1247
    %1249 = vrot.lane.b32.xlu0 %v338, 48
    %v1250 = vpop.permute.xlu0 %1249
    %1251 = vrot.lane.b32.xlu0 %v341, 48
    %v1252 = vpop.permute.xlu0 %1251
    %v1260 = vsel %vm494, %v1235, 0
    %v1263 = vsel %vm494, %v1236, 0
    %v1266 = vsel %vm494, %v1237, 0
    %v1269 = vsel %vm494, %v1238, 0
    %v1272 = vsel %vm494, %v1239, 0
    %v1275 = vsel %vm494, %v1240, 0
    %1277 = vmatprep.subr.mxu0 0.0
    %1278 = vmatpush1.msra.mxu0 %v1242
    %1279 = vmatprep.subr.mxu0 0.0
    %1280 = vmatpush1.msra.mxu0 %v1244
    %1281 = vmatprep.subr.mxu0 0.0
    %1282 = vmatpush1.msra.mxu0 %v1246
    %1283 = vmatprep.subr.mxu0 0.0
    %1284 = vmatpush1.msra.mxu0 %v1248
    %1285 = vmatprep.subr.mxu0 0.0
    %1286 = vmatpush1.msra.mxu0 %v1250
    %1287 = vmatprep.subr.mxu0 0.0
    %1288 = vmatpush1.msra.mxu0 %v1252
    %1289 = vmatprep.subr.mxu0 0.0
    %1290 = vmatpush1.msra.mxu0 0.0
    %1291 = vmatprep.subr.mxu0 0.0
    %1292 = vmatpush1.msra.mxu0 0.0
    %1293 = vmatprep.subr.mxu0 0.0
    %1294 = vmatpush1.msra.mxu0 0.0
    %1295 = vmatprep.subr.mxu0 0.0
    %1296 = vmatpush1.msra.mxu0 0.0
    %1297 = vmatprep.subr.mxu0 0.0
    %1298 = vmatpush1.msra.mxu0 0.0
    %1299 = vmatprep.subr.mxu0 0.0
    %1300 = vmatpush1.msra.mxu0 0.0
    %1301 = vmatprep.subr.mxu0 0.0
    %1302 = vmatpush1.msra.mxu0 0.0
    %1303 = vmatprep.subr.mxu0 0.0
    %1304 = vmatpush1.msra.mxu0 0.0
    %1305 = vmatprep.subr.mxu0 0.0
    %1306 = vmatpush1.msra.mxu0 0.0
    %1307 = vmatprep.subr.mxu0 0.0
    %1308 = vmatpush1.msra.mxu0 0.0
    %1309 = vmatprep.subr.mxu0 0.0
    %1310 = vmatpush1.msra.mxu0 0.0
    %1311 = vmatprep.subr.mxu0 0.0
    %1312 = vmatpush1.msra.mxu0 0.0
    %1313 = vmatprep.subr.mxu0 0.0
    %1314 = vmatpush1.msra.mxu0 0.0
    %1315 = vmatprep.subr.mxu0 0.0
    %1316 = vmatpush1.msra.mxu0 0.0
    %1317 = vmatprep.subr.mxu0 0.0
    %1318 = vmatpush1.msra.mxu0 0.0
    %1319 = vmatprep.subr.mxu0 0.0
    %1320 = vmatpush1.msra.mxu0 0.0
    %1321 = vmatprep.subr.mxu0 0.0
    %1322 = vmatpush1.msra.mxu0 0.0
    %1323 = vmatprep.subr.mxu0 0.0
    %1324 = vmatpush1.msra.mxu0 0.0
    %1325 = vmatprep.subr.mxu0 0.0
    %1326 = vmatpush1.msra.mxu0 0.0
    %1327 = vmatprep.subr.mxu0 0.0
    %1328 = vmatpush1.msra.mxu0 0.0
    %1329 = vmatprep.subr.mxu0 0.0
    %1330 = vmatpush1.msra.mxu0 0.0
    %1331 = vmatprep.subr.mxu0 0.0
    %1332 = vmatpush1.msra.mxu0 0.0
    %1333 = vmatprep.subr.mxu0 0.0
    %1334 = vmatpush1.msra.mxu0 0.0
    %1335 = vmatprep.subr.mxu0 0.0
    %1336 = vmatpush1.msra.mxu0 0.0
    %1337 = vmatprep.subr.mxu0 0.0
    %1338 = vmatpush1.msra.mxu0 0.0
    %1339 = vmatprep.subr.mxu0 0.0
    %1340 = vmatpush1.msra.mxu0 0.0
    %1341 = vmatprep.mubr.f32.mxu0 0.0
    %1342 = vmatmul.mubr.f32.gmra.mrb[0].mxu0 %v1260
    %v1343 = vpop.f32.mrb[0].mxu0
    %v1344 = vadd.f32 0.0, %v1343
    %v1345 = vpop.f32.mrb[0].mxu0
    %1346 = vmatprep.mubr.f32.mxu0 0.0
    %1347 = vmatmul.mubr.f32.gmra.mrb[0].mxu0 %v1263
    %v1348 = vpop.f32.mrb[0].mxu0
    %v1349 = vadd.f32 0.0, %v1348
    %v1350 = vpop.f32.mrb[0].mxu0
    %1351 = vmatprep.mubr.f32.mxu0 0.0
    %1352 = vmatmul.mubr.f32.gmra.mrb[0].mxu0 %v1266
    %v1353 = vpop.f32.mrb[0].mxu0
    %v1354 = vadd.f32 0.0, %v1353
    %v1355 = vpop.f32.mrb[0].mxu0
    %1356 = vmatprep.mubr.f32.mxu0 0.0
    %1357 = vmatmul.mubr.f32.gmra.mrb[0].mxu0 %v1269
    %v1358 = vpop.f32.mrb[0].mxu0
    %v1359 = vadd.f32 0.0, %v1358
    %v1360 = vpop.f32.mrb[0].mxu0
    %1361 = vmatprep.mubr.f32.mxu0 0.0
    %1362 = vmatmul.mubr.f32.gmra.mrb[0].mxu0 %v1272
    %v1363 = vpop.f32.mrb[0].mxu0
    %v1364 = vadd.f32 0.0, %v1363
    %v1365 = vpop.f32.mrb[0].mxu0
    %1366 = vmatprep.mubr.f32.mxu0 0.0
    %1367 = vmatmul.mubr.f32.gmra.mrb[0].mxu0 %v1275
    %v1368 = vpop.f32.mrb[0].mxu0
    %v1369 = vadd.f32 0.0, %v1368
    %v1370 = vpop.f32.mrb[0].mxu0
    %1371 = vdwg.mxu0
    %1372 = vrot.lane.b32.xlu0 %v344, 104
    %v1373 = vpop.permute.xlu0 %1372
    %1374 = vrot.lane.b32.xlu0 %v345, 104
    %v1375 = vpop.permute.xlu0 %1374
    %1376 = vrot.lane.b32.xlu0 %v346, 104
    %v1377 = vpop.permute.xlu0 %1376
    %1378 = vrot.lane.b32.xlu0 %v347, 104
    %v1379 = vpop.permute.xlu0 %1378
    %1380 = vrot.lane.b32.xlu0 %v348, 104
    %v1381 = vpop.permute.xlu0 %1380
    %1382 = vrot.lane.b32.xlu0 %v349, 104
    %v1383 = vpop.permute.xlu0 %1382
    %1384 = vrot.lane.b32.xlu0 %v322, 72
    %v1385 = vpop.permute.xlu0 %1384
    %1386 = vrot.lane.b32.xlu0 %v325, 72
    %v1387 = vpop.permute.xlu0 %1386
    %1388 = vrot.lane.b32.xlu0 %v330, 72
    %v1389 = vpop.permute.xlu0 %1388
    %1390 = vrot.lane.b32.xlu0 %v333, 72
    %v1391 = vpop.permute.xlu0 %1390
    %1392 = vrot.lane.b32.xlu0 %v338, 72
    %v1393 = vpop.permute.xlu0 %1392
    %1394 = vrot.lane.b32.xlu0 %v341, 72
    %v1395 = vpop.permute.xlu0 %1394
    %v1396 = vsel %vm368, %v1373, 0
    %v1398 = vsel %vm368, %v1375, 0
    %v1400 = vsel %vm368, %v1377, 0
    %v1402 = vsel %vm368, %v1379, 0
    %v1404 = vsel %vm368, %v1381, 0
    %v1406 = vsel %vm368, %v1383, 0
    %v1408 = vsel %vm368, %v1385, 0
    %v1410 = vsel %vm368, %v1387, 0
    %v1412 = vsel %vm368, %v1389, 0
    %v1414 = vsel %vm368, %v1391, 0
    %v1416 = vsel %vm368, %v1393, 0
    %v1418 = vsel %vm368, %v1395, 0
    %1420 = vmatprep.subr.mxu0 0.0
    %1421 = vmatpush1.xpose.msra.mxu0 %v1408
    %1422 = vmatprep.subr.mxu0 0.0
    %1423 = vmatpush1.xpose.msra.mxu0 %v1410
    %1424 = vmatprep.subr.mxu0 0.0
    %1425 = vmatpush1.xpose.msra.mxu0 %v1412
    %1426 = vmatprep.subr.mxu0 0.0
    %1427 = vmatpush1.xpose.msra.mxu0 %v1414
    %1428 = vmatprep.subr.mxu0 0.0
    %1429 = vmatpush1.xpose.msra.mxu0 %v1416
    %1430 = vmatprep.subr.mxu0 0.0
    %1431 = vmatpush1.xpose.msra.mxu0 %v1418
    %1432 = vmatprep.subr.mxu0 0.0
    %1433 = vmatpush1.xpose.msra.mxu0 0.0
    %1434 = vmatprep.subr.mxu0 0.0
    %1435 = vmatpush1.xpose.msra.mxu0 0.0
    %1436 = vmatprep.subr.mxu0 0.0
    %1437 = vmatpush1.xpose.msra.mxu0 0.0
    %1438 = vmatprep.subr.mxu0 0.0
    %1439 = vmatpush1.xpose.msra.mxu0 0.0
    %1440 = vmatprep.subr.mxu0 0.0
    %1441 = vmatpush1.xpose.msra.mxu0 0.0
    %1442 = vmatprep.subr.mxu0 0.0
    %1443 = vmatpush1.xpose.msra.mxu0 0.0
    %1444 = vmatprep.subr.mxu0 0.0
    %1445 = vmatpush1.xpose.msra.mxu0 0.0
    %1446 = vmatprep.subr.mxu0 0.0
    %1447 = vmatpush1.xpose.msra.mxu0 0.0
    %1448 = vmatprep.subr.mxu0 0.0
    %1449 = vmatpush1.xpose.msra.mxu0 0.0
    %1450 = vmatprep.subr.mxu0 0.0
    %1451 = vmatpush1.xpose.msra.mxu0 0.0
    %1452 = vmatprep.subr.mxu0 0.0
    %1453 = vmatpush1.xpose.msra.mxu0 0.0
    %1454 = vmatprep.subr.mxu0 0.0
    %1455 = vmatpush1.xpose.msra.mxu0 0.0
    %1456 = vmatprep.subr.mxu0 0.0
    %1457 = vmatpush1.xpose.msra.mxu0 0.0
    %1458 = vmatprep.subr.mxu0 0.0
    %1459 = vmatpush1.xpose.msra.mxu0 0.0
    %1460 = vmatprep.subr.mxu0 0.0
    %1461 = vmatpush1.xpose.msra.mxu0 0.0
    %1462 = vmatprep.subr.mxu0 0.0
    %1463 = vmatpush1.xpose.msra.mxu0 0.0
    %1464 = vmatprep.subr.mxu0 0.0
    %1465 = vmatpush1.xpose.msra.mxu0 0.0
    %1466 = vmatprep.subr.mxu0 0.0
    %1467 = vmatpush1.xpose.msra.mxu0 0.0
    %1468 = vmatprep.subr.mxu0 0.0
    %1469 = vmatpush1.xpose.msra.mxu0 0.0
    %1470 = vmatprep.subr.mxu0 0.0
    %1471 = vmatpush1.xpose.msra.mxu0 0.0
    %1472 = vmatprep.subr.mxu0 0.0
    %1473 = vmatpush1.xpose.msra.mxu0 0.0
    %1474 = vmatprep.subr.mxu0 0.0
    %1475 = vmatpush1.xpose.msra.mxu0 0.0
    %1476 = vmatprep.subr.mxu0 0.0
    %1477 = vmatpush1.xpose.msra.mxu0 0.0
    %1478 = vmatprep.subr.mxu0 0.0
    %1479 = vmatpush1.xpose.msra.mxu0 0.0
    %1480 = vmatprep.subr.mxu0 0.0
    %1481 = vmatpush1.xpose.msra.mxu0 0.0
    %1482 = vmatprep.subr.mxu0 0.0
    %1483 = vmatpush1.xpose.msra.mxu0 0.0
    %1484 = vmatprep.mubr.f32.mxu0 0.0
    %1485 = vmatmul.mubr.f32.gmra.mrb[0].mxu0 %v1396
    %v1486 = vpop.f32.mrb[0].mxu0
    %v1487 = vadd.f32 %v23, %v1486
    %v1488 = vpop.f32.mrb[0].mxu0
    %1489 = vmatprep.mubr.f32.mxu0 0.0
    %1490 = vmatmul.mubr.f32.gmra.mrb[0].mxu0 %v1398
    %v1491 = vpop.f32.mrb[0].mxu0
    %v1492 = vadd.f32 %v23, %v1491
    %v1493 = vpop.f32.mrb[0].mxu0
    %1494 = vmatprep.mubr.f32.mxu0 0.0
    %1495 = vmatmul.mubr.f32.gmra.mrb[0].mxu0 %v1400
    %v1496 = vpop.f32.mrb[0].mxu0
    %v1497 = vadd.f32 %v23, %v1496
    %v1498 = vpop.f32.mrb[0].mxu0
    %1499 = vmatprep.mubr.f32.mxu0 0.0
    %1500 = vmatmul.mubr.f32.gmra.mrb[0].mxu0 %v1402
    %v1501 = vpop.f32.mrb[0].mxu0
    %v1502 = vadd.f32 %v28, %v1501
    %v1503 = vpop.f32.mrb[0].mxu0
    %1504 = vmatprep.mubr.f32.mxu0 0.0
    %1505 = vmatmul.mubr.f32.gmra.mrb[0].mxu0 %v1404
    %v1506 = vpop.f32.mrb[0].mxu0
    %v1507 = vadd.f32 %v28, %v1506
    %v1508 = vpop.f32.mrb[0].mxu0
    %1509 = vmatprep.mubr.f32.mxu0 0.0
    %1510 = vmatmul.mubr.f32.gmra.mrb[0].mxu0 %v1406
    %v1511 = vpop.f32.mrb[0].mxu0
    %v1512 = vadd.f32 %v28, %v1511
    %v1513 = vpop.f32.mrb[0].mxu0
    %1514 = vdwg.mxu0
    %v1515 = vsel %vm494, %v1487, -inf
    %1516 = vmax.xlane.f32.xlu0 %v1515
    %v1517 = vpop.xlane.xlu0 %1516
    %v1518 = vsel %vm494, %v1492, -inf
    %1519 = vmax.xlane.f32.xlu0 %v1518
    %v1520 = vpop.xlane.xlu0 %1519
    %v1521 = vsel %vm494, %v1497, -inf
    %1522 = vmax.xlane.f32.xlu0 %v1521
    %v1523 = vpop.xlane.xlu0 %1522
    %v1524 = vsel %vm494, %v1502, -inf
    %1525 = vmax.xlane.f32.xlu0 %v1524
    %v1526 = vpop.xlane.xlu0 %1525
    %v1527 = vsel %vm494, %v1507, -inf
    %1528 = vmax.xlane.f32.xlu0 %v1527
    %v1529 = vpop.xlane.xlu0 %1528
    %v1530 = vsel %vm494, %v1512, -inf
    %1531 = vmax.xlane.f32.xlu0 %v1530
    %v1532 = vpop.xlane.xlu0 %1531
    %v1533 = vsub.f32 %v1487, %v1517
    %v1534 = vsub.f32 %v1492, %v1520
    %v1535 = vsub.f32 %v1497, %v1523
    %v1536 = vsub.f32 %v1502, %v1526
    %v1537 = vsub.f32 %v1507, %v1529
    %v1538 = vsub.f32 %v1512, %v1532
    %v1539 = vmul.f32 %v1533, 1.442695
    %v1540 = vpow.pop %v1539
    %v1541 = vmul.f32 %v1534, 1.442695
    %v1542 = vpow.pop %v1541
    %v1543 = vmul.f32 %v1535, 1.442695
    %v1544 = vpow.pop %v1543
    %v1545 = vmul.f32 %v1536, 1.442695
    %v1546 = vpow.pop %v1545
    %v1547 = vmul.f32 %v1537, 1.442695
    %v1548 = vpow.pop %v1547
    %v1549 = vmul.f32 %v1538, 1.442695
    %v1550 = vpow.pop %v1549
    %v1551 = vsel %vm494, %v1540, 0.0
    %1552 = vadd.xlane.f32.xlu0 %v1551
    %v1553 = vpop.xlane.xlu0 %1552
    %v1554 = vsel %vm494, %v1542, 0.0
    %1555 = vadd.xlane.f32.xlu0 %v1554
    %v1556 = vpop.xlane.xlu0 %1555
    %v1557 = vsel %vm494, %v1544, 0.0
    %1558 = vadd.xlane.f32.xlu0 %v1557
    %v1559 = vpop.xlane.xlu0 %1558
    %v1560 = vsel %vm494, %v1546, 0.0
    %1561 = vadd.xlane.f32.xlu0 %v1560
    %v1562 = vpop.xlane.xlu0 %1561
    %v1563 = vsel %vm494, %v1548, 0.0
    %1564 = vadd.xlane.f32.xlu0 %v1563
    %v1565 = vpop.xlane.xlu0 %1564
    %v1566 = vsel %vm494, %v1550, 0.0
    %1567 = vadd.xlane.f32.xlu0 %v1566
    %v1568 = vpop.xlane.xlu0 %1567
    %v1569 = vrcp.pop %v1553
    %v1570 = vrcp.pop %v1556
    %v1571 = vrcp.pop %v1559
    %v1572 = vrcp.pop %v1562
    %v1573 = vrcp.pop %v1565
    %v1574 = vrcp.pop %v1568
    %v1575 = vmul.f32 %v1540, %v1569
    %v1576 = vmul.f32 %v1542, %v1570
    %v1577 = vmul.f32 %v1544, %v1571
    %v1578 = vmul.f32 %v1546, %v1572
    %v1579 = vmul.f32 %v1548, %v1573
    %v1580 = vmul.f32 %v1550, %v1574
    %1581 = vrot.lane.b32.xlu0 %v322, 40
    %v1582 = vpop.permute.xlu0 %1581
    %1583 = vrot.lane.b32.xlu0 %v325, 40
    %v1584 = vpop.permute.xlu0 %1583
    %1585 = vrot.lane.b32.xlu0 %v330, 40
    %v1586 = vpop.permute.xlu0 %1585
    %1587 = vrot.lane.b32.xlu0 %v333, 40
    %v1588 = vpop.permute.xlu0 %1587
    %1589 = vrot.lane.b32.xlu0 %v338, 40
    %v1590 = vpop.permute.xlu0 %1589
    %1591 = vrot.lane.b32.xlu0 %v341, 40
    %v1592 = vpop.permute.xlu0 %1591
    %v1600 = vsel %vm494, %v1575, 0
    %v1603 = vsel %vm494, %v1576, 0
    %v1606 = vsel %vm494, %v1577, 0
    %v1609 = vsel %vm494, %v1578, 0
    %v1612 = vsel %vm494, %v1579, 0
    %v1615 = vsel %vm494, %v1580, 0
    %1617 = vmatprep.subr.mxu0 0.0
    %1618 = vmatpush1.msra.mxu0 %v1582
    %1619 = vmatprep.subr.mxu0 0.0
    %1620 = vmatpush1.msra.mxu0 %v1584
    %1621 = vmatprep.subr.mxu0 0.0
    %1622 = vmatpush1.msra.mxu0 %v1586
    %1623 = vmatprep.subr.mxu0 0.0
    %1624 = vmatpush1.msra.mxu0 %v1588
    %1625 = vmatprep.subr.mxu0 0.0
    %1626 = vmatpush1.msra.mxu0 %v1590
    %1627 = vmatprep.subr.mxu0 0.0
    %1628 = vmatpush1.msra.mxu0 %v1592
    %1629 = vmatprep.subr.mxu0 0.0
    %1630 = vmatpush1.msra.mxu0 0.0
    %1631 = vmatprep.subr.mxu0 0.0
    %1632 = vmatpush1.msra.mxu0 0.0
    %1633 = vmatprep.subr.mxu0 0.0
    %1634 = vmatpush1.msra.mxu0 0.0
    %1635 = vmatprep.subr.mxu0 0.0
    %1636 = vmatpush1.msra.mxu0 0.0
    %1637 = vmatprep.subr.mxu0 0.0
    %1638 = vmatpush1.msra.mxu0 0.0
    %1639 = vmatprep.subr.mxu0 0.0
    %1640 = vmatpush1.msra.mxu0 0.0
    %1641 = vmatprep.subr.mxu0 0.0
    %1642 = vmatpush1.msra.mxu0 0.0
    %1643 = vmatprep.subr.mxu0 0.0
    %1644 = vmatpush1.msra.mxu0 0.0
    %1645 = vmatprep.subr.mxu0 0.0
    %1646 = vmatpush1.msra.mxu0 0.0
    %1647 = vmatprep.subr.mxu0 0.0
    %1648 = vmatpush1.msra.mxu0 0.0
    %1649 = vmatprep.subr.mxu0 0.0
    %1650 = vmatpush1.msra.mxu0 0.0
    %1651 = vmatprep.subr.mxu0 0.0
    %1652 = vmatpush1.msra.mxu0 0.0
    %1653 = vmatprep.subr.mxu0 0.0
    %1654 = vmatpush1.msra.mxu0 0.0
    %1655 = vmatprep.subr.mxu0 0.0
    %1656 = vmatpush1.msra.mxu0 0.0
    %1657 = vmatprep.subr.mxu0 0.0
    %1658 = vmatpush1.msra.mxu0 0.0
    %1659 = vmatprep.subr.mxu0 0.0
    %1660 = vmatpush1.msra.mxu0 0.0
    %1661 = vmatprep.subr.mxu0 0.0
    %1662 = vmatpush1.msra.mxu0 0.0
    %1663 = vmatprep.subr.mxu0 0.0
    %1664 = vmatpush1.msra.mxu0 0.0
    %1665 = vmatprep.subr.mxu0 0.0
    %1666 = vmatpush1.msra.mxu0 0.0
    %1667 = vmatprep.subr.mxu0 0.0
    %1668 = vmatpush1.msra.mxu0 0.0
    %1669 = vmatprep.subr.mxu0 0.0
    %1670 = vmatpush1.msra.mxu0 0.0
    %1671 = vmatprep.subr.mxu0 0.0
    %1672 = vmatpush1.msra.mxu0 0.0
    %1673 = vmatprep.subr.mxu0 0.0
    %1674 = vmatpush1.msra.mxu0 0.0
    %1675 = vmatprep.subr.mxu0 0.0
    %1676 = vmatpush1.msra.mxu0 0.0
    %1677 = vmatprep.subr.mxu0 0.0
    %1678 = vmatpush1.msra.mxu0 0.0
    %1679 = vmatprep.subr.mxu0 0.0
    %1680 = vmatpush1.msra.mxu0 0.0
    %1681 = vmatprep.mubr.f32.mxu0 0.0
    %1682 = vmatmul.mubr.f32.gmra.mrb[0].mxu0 %v1600
    %v1683 = vpop.f32.mrb[0].mxu0
    %v1684 = vadd.f32 0.0, %v1683
    %v1685 = vpop.f32.mrb[0].mxu0
    %1686 = vmatprep.mubr.f32.mxu0 0.0
    %1687 = vmatmul.mubr.f32.gmra.mrb[0].mxu0 %v1603
    %v1688 = vpop.f32.mrb[0].mxu0
    %v1689 = vadd.f32 0.0, %v1688
    %v1690 = vpop.f32.mrb[0].mxu0
    %1691 = vmatprep.mubr.f32.mxu0 0.0
    %1692 = vmatmul.mubr.f32.gmra.mrb[0].mxu0 %v1606
    %v1693 = vpop.f32.mrb[0].mxu0
    %v1694 = vadd.f32 0.0, %v1693
    %v1695 = vpop.f32.mrb[0].mxu0
    %1696 = vmatprep.mubr.f32.mxu0 0.0
    %1697 = vmatmul.mubr.f32.gmra.mrb[0].mxu0 %v1609
    %v1698 = vpop.f32.mrb[0].mxu0
    %v1699 = vadd.f32 0.0, %v1698
    %v1700 = vpop.f32.mrb[0].mxu0
    %1701 = vmatprep.mubr.f32.mxu0 0.0
    %1702 = vmatmul.mubr.f32.gmra.mrb[0].mxu0 %v1612
    %v1703 = vpop.f32.mrb[0].mxu0
    %v1704 = vadd.f32 0.0, %v1703
    %v1705 = vpop.f32.mrb[0].mxu0
    %1706 = vmatprep.mubr.f32.mxu0 0.0
    %1707 = vmatmul.mubr.f32.gmra.mrb[0].mxu0 %v1615
    %v1708 = vpop.f32.mrb[0].mxu0
    %v1709 = vadd.f32 0.0, %v1708
    %v1710 = vpop.f32.mrb[0].mxu0
    %1711 = vdwg.mxu0
    %1718 = vrot.lane.b32.xlu0 %v1004, 8
    %v1719 = vpop.permute.xlu0 %1718
    %1720 = vrot.lane.b32.xlu0 %v1009, 8
    %v1721 = vpop.permute.xlu0 %1720
    %1722 = vrot.lane.b32.xlu0 %v1014, 8
    %v1723 = vpop.permute.xlu0 %1722
    %1724 = vrot.lane.b32.xlu0 %v1019, 8
    %v1725 = vpop.permute.xlu0 %1724
    %1726 = vrot.lane.b32.xlu0 %v1024, 8
    %v1727 = vpop.permute.xlu0 %1726
    %1728 = vrot.lane.b32.xlu0 %v1029, 8
    %v1729 = vpop.permute.xlu0 %1728
    %1742 = vrot.lane.b32.xlu0 %v1344, 16
    %v1743 = vpop.permute.xlu0 %1742
    %1744 = vrot.lane.b32.xlu0 %v1349, 16
    %v1745 = vpop.permute.xlu0 %1744
    %1746 = vrot.lane.b32.xlu0 %v1354, 16
    %v1747 = vpop.permute.xlu0 %1746
    %1748 = vrot.lane.b32.xlu0 %v1359, 16
    %v1749 = vpop.permute.xlu0 %1748
    %1750 = vrot.lane.b32.xlu0 %v1364, 16
    %v1751 = vpop.permute.xlu0 %1750
    %1752 = vrot.lane.b32.xlu0 %v1369, 16
    %v1753 = vpop.permute.xlu0 %1752
    %1766 = vrot.lane.b32.xlu0 %v1684, 24
    %v1767 = vpop.permute.xlu0 %1766
    %1768 = vrot.lane.b32.xlu0 %v1689, 24
    %v1769 = vpop.permute.xlu0 %1768
    %1770 = vrot.lane.b32.xlu0 %v1694, 24
    %v1771 = vpop.permute.xlu0 %1770
    %1772 = vrot.lane.b32.xlu0 %v1699, 24
    %v1773 = vpop.permute.xlu0 %1772
    %1774 = vrot.lane.b32.xlu0 %v1704, 24
    %v1775 = vpop.permute.xlu0 %1774
    %1776 = vrot.lane.b32.xlu0 %v1709, 24
    %v1777 = vpop.permute.xlu0 %1776
    %v1784 = vsel %vm368, %v664, %v1719
    %v1785 = vsel %vm368, %v669, %v1721
    %v1786 = vsel %vm368, %v674, %v1723
    %v1787 = vsel %vm368, %v679, %v1725
    %v1788 = vsel %vm368, %v684, %v1727
    %v1789 = vsel %vm368, %v689, %v1729
    %vm1790 = vcmask 130048
    %v1791 = vsel %vm1790, %v1784, %v1743
    %v1792 = vsel %vm1790, %v1785, %v1745
    %v1793 = vsel %vm1790, %v1786, %v1747
    %v1794 = vsel %vm1790, %v1787, %v1749
    %v1795 = vsel %vm1790, %v1788, %v1751
    %v1796 = vsel %vm1790, %v1789, %v1753
    %v1797 = vsel %vm22, %v1791, %v1767
    %v1798 = vsel %vm22, %v1792, %v1769
    %v1799 = vsel %vm22, %v1793, %v1771
    %v1800 = vsel %vm22, %v1794, %v1773
    %v1801 = vsel %vm22, %v1795, %v1775
    %v1802 = vsel %vm22, %v1796, %v1777
    %v1803 = vpack.c.bf16 %v1798, %v1797
    %v1804 = vpack.c.bf16 %v1800, %v1799
    %v1805 = vpack.c.bf16 %v1802, %v1801
    %v1806 = vld [vmem:[%s1 + $0x30] sm:$0xf]
    %v1807 = vld [vmem:[%s1 + $0x34] sm:$0xf]
    %v1808 = vld [vmem:[%s1 + $0x38] sm:$0xf]
    %v1809 = vld [vmem:[%s1 + $0x3c] sm:$0xf]
    %v1810 = vld [vmem:[%s2 + $0x1b] sm:$0x1]
    %v1811 = vlaneseq
    %v1812 = vshrl.u32 %v1811, 7
    %v1813 = vsub.s32 0, %v1812
    %v1814 = vrot.slane %v1810, %v1813
    %v1819 = vunpack.c.l.b16 %v1806
    %v1820 = vunpack.c.l.b16 %v1807
    %v1821 = vunpack.c.l.b16 %v1808
    %v1822 = vunpack.c.l.b16 %v1809
    %v1823 = vpack.c.b16 %v1820, %v1819
    %v1824 = vpack.c.b16 %v1822, %v1821
    %v1828 = vsel %vm154, %v1803, 0
    %v1831 = vsel %vm154, %v1804, 0
    %v1834 = vsel %vm154, %v1805, 0
    %1836 = vmatprep.subr.bf16.mxu0 0
    %1837 = vmatpush1.bf16.msra.mxu0 %v1823
    %1838 = vmatprep.subr.bf16.mxu0 0
    %1839 = vmatpush1.bf16.msra.mxu0 %v1824
    %1840 = vmatprep.subr.bf16.mxu0 0
    %1841 = vmatpush1.bf16.msra.mxu0 0
    %1842 = vmatprep.subr.bf16.mxu0 0
    %1843 = vmatpush1.bf16.msra.mxu0 0
    %1844 = vmatprep.subr.bf16.mxu0 0
    %1845 = vmatpush1.bf16.msra.mxu0 0
    %1846 = vmatprep.subr.bf16.mxu0 0
    %1847 = vmatpush1.bf16.msra.mxu0 0
    %1848 = vmatprep.subr.bf16.mxu0 0
    %1849 = vmatpush1.bf16.msra.mxu0 0
    %1850 = vmatprep.subr.bf16.mxu0 0
    %1851 = vmatpush1.bf16.msra.mxu0 0
    %1852 = vmatprep.subr.bf16.mxu0 0
    %1853 = vmatpush1.bf16.msra.mxu0 0
    %1854 = vmatprep.subr.bf16.mxu0 0
    %1855 = vmatpush1.bf16.msra.mxu0 0
    %1856 = vmatprep.subr.bf16.mxu0 0
    %1857 = vmatpush1.bf16.msra.mxu0 0
    %1858 = vmatprep.subr.bf16.mxu0 0
    %1859 = vmatpush1.bf16.msra.mxu0 0
    %1860 = vmatprep.subr.bf16.mxu0 0
    %1861 = vmatpush1.bf16.msra.mxu0 0
    %1862 = vmatprep.subr.bf16.mxu0 0
    %1863 = vmatpush1.bf16.msra.mxu0 0
    %1864 = vmatprep.subr.bf16.mxu0 0
    %1865 = vmatpush1.bf16.msra.mxu0 0
    %1866 = vmatprep.subr.bf16.mxu0 0
    %1867 = vmatpush1.bf16.msra.mxu0 0
    %1868 = vmatprep.mubr.bf16.mxu0 0
    %1869 = vmatmul.mubr.bf16.gmra.mrb[0].mxu0 %v1828
    %v1870 = vpop.f32.mrb[0].mxu0
    %v1871 = vadd.f32 %v1814, %v1870
    %v1872 = vpop.f32.mrb[0].mxu0
    %v1873 = vpop.f32.mrb[0].mxu0
    %v1874 = vadd.f32 %v1814, %v1873
    %v1875 = vpop.f32.mrb[0].mxu0
    %1876 = vmatprep.mubr.bf16.mxu0 0
    %1877 = vmatmul.mubr.bf16.gmra.mrb[0].mxu0 %v1831
    %v1878 = vpop.f32.mrb[0].mxu0
    %v1879 = vadd.f32 %v1814, %v1878
    %v1880 = vpop.f32.mrb[0].mxu0
    %v1881 = vpop.f32.mrb[0].mxu0
    %v1882 = vadd.f32 %v1814, %v1881
    %v1883 = vpop.f32.mrb[0].mxu0
    %1884 = vmatprep.mubr.bf16.mxu0 0
    %1885 = vmatmul.mubr.bf16.gmra.mrb[0].mxu0 %v1834
    %v1886 = vpop.f32.mrb[0].mxu0
    %v1887 = vadd.f32 %v1814, %v1886
    %v1888 = vpop.f32.mrb[0].mxu0
    %v1889 = vpop.f32.mrb[0].mxu0
    %v1890 = vadd.f32 %v1814, %v1889
    %v1891 = vpop.f32.mrb[0].mxu0
    %1892 = vdwg.mxu0
    %v1893 = vadd.f32 %v130, %v1871
    %v1894 = vadd.f32 %v133, %v1874
    %v1895 = vadd.f32 %v138, %v1879
    %v1896 = vadd.f32 %v141, %v1882
    %v1897 = vadd.f32 %v146, %v1887
    %v1898 = vadd.f32 %v149, %v1890
    %v1899 = vld [vmem:[%s2 + $0x1c] sm:$0x1]
    %v1900 = vld [vmem:[%s2 + $0x1d] sm:$0x1]
    %v1901 = vsel %vm154, %v1893, 0.0
    %1902 = vadd.xlane.f32.xlu0 %v1901
    %v1903 = vpop.xlane.xlu0 %1902
    %v1904 = vsel %vm154, %v1894, 0.0
    %1905 = vadd.xlane.f32.xlu0 %v1904
    %v1906 = vpop.xlane.xlu0 %1905
    %v1907 = vsel %vm154, %v1895, 0.0
    %1908 = vadd.xlane.f32.xlu0 %v1907
    %v1909 = vpop.xlane.xlu0 %1908
    %v1910 = vsel %vm154, %v1896, 0.0
    %1911 = vadd.xlane.f32.xlu0 %v1910
    %v1912 = vpop.xlane.xlu0 %1911
    %v1913 = vsel %vm154, %v1897, 0.0
    %1914 = vadd.xlane.f32.xlu0 %v1913
    %v1915 = vpop.xlane.xlu0 %1914
    %v1916 = vsel %vm154, %v1898, 0.0
    %1917 = vadd.xlane.f32.xlu0 %v1916
    %v1918 = vpop.xlane.xlu0 %1917
    %v1919 = vmul.f32 %v1903, %v173
    %v1920 = vmul.f32 %v1906, %v173
    %v1921 = vmul.f32 %v1909, %v173
    %v1922 = vmul.f32 %v1912, %v173
    %v1923 = vmul.f32 %v1915, %v173
    %v1924 = vmul.f32 %v1918, %v173
    %v1925 = vsub.f32 %v1893, %v1919
    %v1926 = vsub.f32 %v1894, %v1920
    %v1927 = vsub.f32 %v1895, %v1921
    %v1928 = vsub.f32 %v1896, %v1922
    %v1929 = vsub.f32 %v1897, %v1923
    %v1930 = vsub.f32 %v1898, %v1924
    %v1931 = vmul.f32 %v1925, %v1925
    %v1932 = vmul.f32 %v1926, %v1926
    %v1933 = vmul.f32 %v1927, %v1927
    %v1934 = vmul.f32 %v1928, %v1928
    %v1935 = vmul.f32 %v1929, %v1929
    %v1936 = vmul.f32 %v1930, %v1930
    %v1937 = vsel %vm154, %v1931, 0.0
    %1938 = vadd.xlane.f32.xlu0 %v1937
    %v1939 = vpop.xlane.xlu0 %1938
    %v1940 = vsel %vm154, %v1932, 0.0
    %1941 = vadd.xlane.f32.xlu0 %v1940
    %v1942 = vpop.xlane.xlu0 %1941
    %v1943 = vsel %vm154, %v1933, 0.0
    %1944 = vadd.xlane.f32.xlu0 %v1943
    %v1945 = vpop.xlane.xlu0 %1944
    %v1946 = vsel %vm154, %v1934, 0.0
    %1947 = vadd.xlane.f32.xlu0 %v1946
    %v1948 = vpop.xlane.xlu0 %1947
    %v1949 = vsel %vm154, %v1935, 0.0
    %1950 = vadd.xlane.f32.xlu0 %v1949
    %v1951 = vpop.xlane.xlu0 %1950
    %v1952 = vsel %vm154, %v1936, 0.0
    %1953 = vadd.xlane.f32.xlu0 %v1952
    %v1954 = vpop.xlane.xlu0 %1953
    %v1955 = vmul.f32 %v1939, %v173
    %v1956 = vmul.f32 %v1942, %v173
    %v1957 = vmul.f32 %v1945, %v173
    %v1958 = vmul.f32 %v1948, %v173
    %v1959 = vmul.f32 %v1951, %v173
    %v1960 = vmul.f32 %v1954, %v173
    %v1961 = vadd.f32 %v1955, 1e-05
    %v1962 = vadd.f32 %v1956, 1e-05
    %v1963 = vadd.f32 %v1957, 1e-05
    %v1964 = vadd.f32 %v1958, 1e-05
    %v1965 = vadd.f32 %v1959, 1e-05
    %v1966 = vadd.f32 %v1960, 1e-05
    %v1967 = vrsqrt.pop %v1961
    %v1968 = vrsqrt.pop %v1962
    %v1969 = vrsqrt.pop %v1963
    %v1970 = vrsqrt.pop %v1964
    %v1971 = vrsqrt.pop %v1965
    %v1972 = vrsqrt.pop %v1966
    %v1973 = vmul.f32 %v1925, %v1967
    %v1974 = vmul.f32 %v1926, %v1968
    %v1975 = vmul.f32 %v1927, %v1969
    %v1976 = vmul.f32 %v1928, %v1970
    %v1977 = vmul.f32 %v1929, %v1971
    %v1978 = vmul.f32 %v1930, %v1972
    %v1979 = vlaneseq
    %v1980 = vshrl.u32 %v1979, 7
    %v1981 = vsub.s32 0, %v1980
    %v1982 = vrot.slane %v1899, %v1981
    %v1983 = vmul.f32 %v1973, %v1982
    %v1984 = vmul.f32 %v1974, %v1982
    %v1985 = vmul.f32 %v1975, %v1982
    %v1986 = vmul.f32 %v1976, %v1982
    %v1987 = vmul.f32 %v1977, %v1982
    %v1988 = vmul.f32 %v1978, %v1982
    %v1989 = vlaneseq
    %v1990 = vshrl.u32 %v1989, 7
    %v1991 = vsub.s32 0, %v1990
    %v1992 = vrot.slane %v1900, %v1991
    %v1993 = vadd.f32 %v1983, %v1992
    %v1994 = vadd.f32 %v1984, %v1992
    %v1995 = vadd.f32 %v1985, %v1992
    %v1996 = vadd.f32 %v1986, %v1992
    %v1997 = vadd.f32 %v1987, %v1992
    %v1998 = vadd.f32 %v1988, %v1992
    %v1999 = vpack.c.bf16 %v1994, %v1993
    %v2000 = vpack.c.bf16 %v1996, %v1995
    %v2001 = vpack.c.bf16 %v1998, %v1997
    %v2002 = vld [vmem:[%s1 + $0x40] sm:$0xf]
    %v2003 = vld [vmem:[%s1 + $0x44] sm:$0xf]
    %v2004 = vld [vmem:[%s1 + $0x48] sm:$0xf]
    %v2005 = vld [vmem:[%s1 + $0x4c] sm:$0xf]
    %v2006 = vld [vmem:[%s2 + $0x1e] sm:$0x1]
    %v2007 = vlaneseq
    %v2008 = vshrl.u32 %v2007, 7
    %v2009 = vsub.s32 0, %v2008
    %v2010 = vrot.slane %v2006, %v2009
    %v2015 = vunpack.c.l.b16 %v2002
    %v2016 = vunpack.c.l.b16 %v2003
    %v2017 = vunpack.c.l.b16 %v2004
    %v2018 = vunpack.c.l.b16 %v2005
    %v2019 = vpack.c.b16 %v2016, %v2015
    %v2020 = vpack.c.b16 %v2018, %v2017
    %v2024 = vsel %vm154, %v1999, 0
    %v2027 = vsel %vm154, %v2000, 0
    %v2030 = vsel %vm154, %v2001, 0
    %2032 = vmatprep.subr.bf16.mxu0 0
    %2033 = vmatpush1.bf16.msra.mxu0 %v2019
    %2034 = vmatprep.subr.bf16.mxu0 0
    %2035 = vmatpush1.bf16.msra.mxu0 %v2020
    %2036 = vmatprep.subr.bf16.mxu0 0
    %2037 = vmatpush1.bf16.msra.mxu0 0
    %2038 = vmatprep.subr.bf16.mxu0 0
    %2039 = vmatpush1.bf16.msra.mxu0 0
    %2040 = vmatprep.subr.bf16.mxu0 0
    %2041 = vmatpush1.bf16.msra.mxu0 0
    %2042 = vmatprep.subr.bf16.mxu0 0
    %2043 = vmatpush1.bf16.msra.mxu0 0
    %2044 = vmatprep.subr.bf16.mxu0 0
    %2045 = vmatpush1.bf16.msra.mxu0 0
    %2046 = vmatprep.subr.bf16.mxu0 0
    %2047 = vmatpush1.bf16.msra.mxu0 0
    %2048 = vmatprep.subr.bf16.mxu0 0
    %2049 = vmatpush1.bf16.msra.mxu0 0
    %2050 = vmatprep.subr.bf16.mxu0 0
    %2051 = vmatpush1.bf16.msra.mxu0 0
    %2052 = vmatprep.subr.bf16.mxu0 0
    %2053 = vmatpush1.bf16.msra.mxu0 0
    %2054 = vmatprep.subr.bf16.mxu0 0
    %2055 = vmatpush1.bf16.msra.mxu0 0
    %2056 = vmatprep.subr.bf16.mxu0 0
    %2057 = vmatpush1.bf16.msra.mxu0 0
    %2058 = vmatprep.subr.bf16.mxu0 0
    %2059 = vmatpush1.bf16.msra.mxu0 0
    %2060 = vmatprep.subr.bf16.mxu0 0
    %2061 = vmatpush1.bf16.msra.mxu0 0
    %2062 = vmatprep.subr.bf16.mxu0 0
    %2063 = vmatpush1.bf16.msra.mxu0 0
    %2064 = vmatprep.mubr.bf16.mxu0 0
    %2065 = vmatmul.mubr.bf16.gmra.mrb[0].mxu0 %v2024
    %v2066 = vpop.f32.mrb[0].mxu0
    %v2067 = vadd.f32 %v2010, %v2066
    %v2068 = vpop.f32.mrb[0].mxu0
    %v2069 = vpop.f32.mrb[0].mxu0
    %v2070 = vadd.f32 %v2010, %v2069
    %v2071 = vpop.f32.mrb[0].mxu0
    %2072 = vmatprep.mubr.bf16.mxu0 0
    %2073 = vmatmul.mubr.bf16.gmra.mrb[0].mxu0 %v2027
    %v2074 = vpop.f32.mrb[0].mxu0
    %v2075 = vadd.f32 %v2010, %v2074
    %v2076 = vpop.f32.mrb[0].mxu0
    %v2077 = vpop.f32.mrb[0].mxu0
    %v2078 = vadd.f32 %v2010, %v2077
    %v2079 = vpop.f32.mrb[0].mxu0
    %2080 = vmatprep.mubr.bf16.mxu0 0
    %2081 = vmatmul.mubr.bf16.gmra.mrb[0].mxu0 %v2030
    %v2082 = vpop.f32.mrb[0].mxu0
    %v2083 = vadd.f32 %v2010, %v2082
    %v2084 = vpop.f32.mrb[0].mxu0
    %v2085 = vpop.f32.mrb[0].mxu0
    %v2086 = vadd.f32 %v2010, %v2085
    %v2087 = vpop.f32.mrb[0].mxu0
    %2088 = vdwg.mxu0
    %v2089 = vmul.f32 %v2067, %v2067
    %v2090 = vmul.f32 %v2070, %v2070
    %v2091 = vmul.f32 %v2075, %v2075
    %v2092 = vmul.f32 %v2078, %v2078
    %v2093 = vmul.f32 %v2083, %v2083
    %v2094 = vmul.f32 %v2086, %v2086
    %v2095 = vmul.f32 %v2067, %v2089
    %v2096 = vmul.f32 %v2070, %v2090
    %v2097 = vmul.f32 %v2075, %v2091
    %v2098 = vmul.f32 %v2078, %v2092
    %v2099 = vmul.f32 %v2083, %v2093
    %v2100 = vmul.f32 %v2086, %v2094
    %v2101 = vmul.f32 %v2095, 0.044715
    %v2102 = vmul.f32 %v2096, 0.044715
    %v2103 = vmul.f32 %v2097, 0.044715
    %v2104 = vmul.f32 %v2098, 0.044715
    %v2105 = vmul.f32 %v2099, 0.044715
    %v2106 = vmul.f32 %v2100, 0.044715
    %v2107 = vadd.f32 %v2067, %v2101
    %v2108 = vadd.f32 %v2070, %v2102
    %v2109 = vadd.f32 %v2075, %v2103
    %v2110 = vadd.f32 %v2078, %v2104
    %v2111 = vadd.f32 %v2083, %v2105
    %v2112 = vadd.f32 %v2086, %v2106
    %v2113 = vmul.f32 %v2107, 0.7978846
    %v2114 = vmul.f32 %v2108, 0.7978846
    %v2115 = vmul.f32 %v2109, 0.7978846
    %v2116 = vmul.f32 %v2110, 0.7978846
    %v2117 = vmul.f32 %v2111, 0.7978846
    %v2118 = vmul.f32 %v2112, 0.7978846
    %v2119 = vtanh.pop %v2113
    %v2120 = vtanh.pop %v2114
    %v2121 = vtanh.pop %v2115
    %v2122 = vtanh.pop %v2116
    %v2123 = vtanh.pop %v2117
    %v2124 = vtanh.pop %v2118
    %v2125 = vadd.f32 %v2119, 1.0
    %v2126 = vadd.f32 %v2120, 1.0
    %v2127 = vadd.f32 %v2121, 1.0
    %v2128 = vadd.f32 %v2122, 1.0
    %v2129 = vadd.f32 %v2123, 1.0
    %v2130 = vadd.f32 %v2124, 1.0
    %v2131 = vmul.f32 %v2125, 0.5
    %v2132 = vmul.f32 %v2126, 0.5
    %v2133 = vmul.f32 %v2127, 0.5
    %v2134 = vmul.f32 %v2128, 0.5
    %v2135 = vmul.f32 %v2129, 0.5
    %v2136 = vmul.f32 %v2130, 0.5
    %v2137 = vmul.f32 %v2067, %v2131
    %v2138 = vmul.f32 %v2070, %v2132
    %v2139 = vmul.f32 %v2075, %v2133
    %v2140 = vmul.f32 %v2078, %v2134
    %v2141 = vmul.f32 %v2083, %v2135
    %v2142 = vmul.f32 %v2086, %v2136
    %v2143 = vpack.c.bf16 %v2138, %v2137
    %v2144 = vpack.c.bf16 %v2140, %v2139
    %v2145 = vpack.c.bf16 %v2142, %v2141
    %v2146 = vld [vmem:[%s1 + $0x50] sm:$0xf]
    %v2147 = vld [vmem:[%s1 + $0x54] sm:$0xf]
    %v2148 = vld [vmem:[%s1 + $0x58] sm:$0xf]
    %v2149 = vld [vmem:[%s1 + $0x5c] sm:$0xf]
    %v2150 = vld [vmem:[%s1 + $0x60] sm:$0xf]
    %v2151 = vld [vmem:[%s1 + $0x64] sm:$0xf]
    %v2152 = vld [vmem:[%s1 + $0x68] sm:$0xf]
    %v2153 = vld [vmem:[%s1 + $0x6c] sm:$0xf]
    %v2154 = vld [vmem:[%s1 + $0x70] sm:$0xf]
    %v2155 = vld [vmem:[%s1 + $0x74] sm:$0xf]
    %v2156 = vld [vmem:[%s1 + $0x78] sm:$0xf]
    %v2157 = vld [vmem:[%s1 + $0x7c] sm:$0xf]
    %v2158 = vld [vmem:[%s1 + $0x80] sm:$0xf]
    %v2159 = vld [vmem:[%s1 + $0x84] sm:$0xf]
    %v2160 = vld [vmem:[%s1 + $0x88] sm:$0xf]
    %v2161 = vld [vmem:[%s1 + $0x8c] sm:$0xf]
    %v2162 = vld [vmem:[%s2 + $0x1f] sm:$0x1]
    %v2163 = vlaneseq
    %v2164 = vshrl.u32 %v2163, 7
    %v2165 = vsub.s32 0, %v2164
    %v2166 = vrot.slane %v2162, %v2165
    %v2183 = vunpack.c.l.b16 %v2146
    %v2184 = vunpack.c.l.b16 %v2147
    %v2185 = vunpack.c.l.b16 %v2148
    %v2186 = vunpack.c.l.b16 %v2149
    %v2187 = vunpack.c.l.b16 %v2150
    %v2188 = vunpack.c.l.b16 %v2151
    %v2189 = vunpack.c.l.b16 %v2152
    %v2190 = vunpack.c.l.b16 %v2153
    %v2191 = vunpack.c.l.b16 %v2154
    %v2192 = vunpack.c.l.b16 %v2155
    %v2193 = vunpack.c.l.b16 %v2156
    %v2194 = vunpack.c.l.b16 %v2157
    %v2195 = vunpack.c.l.b16 %v2158
    %v2196 = vunpack.c.l.b16 %v2159
    %v2197 = vunpack.c.l.b16 %v2160
    %v2198 = vunpack.c.l.b16 %v2161
    %v2199 = vpack.c.b16 %v2184, %v2183
    %v2200 = vpack.c.b16 %v2186, %v2185
    %v2201 = vpack.c.b16 %v2188, %v2187
    %v2202 = vpack.c.b16 %v2190, %v2189
    %v2203 = vpack.c.b16 %v2192, %v2191
    %v2204 = vpack.c.b16 %v2194, %v2193
    %v2205 = vpack.c.b16 %v2196, %v2195
    %v2206 = vpack.c.b16 %v2198, %v2197
    %2215 = vmatprep.subr.bf16.mxu0 0
    %2216 = vmatpush1.bf16.msra.mxu0 %v2199
    %2217 = vmatprep.subr.bf16.mxu0 0
    %2218 = vmatpush1.bf16.msra.mxu0 %v2200
    %2219 = vmatprep.subr.bf16.mxu0 0
    %2220 = vmatpush1.bf16.msra.mxu0 %v2201
    %2221 = vmatprep.subr.bf16.mxu0 0
    %2222 = vmatpush1.bf16.msra.mxu0 %v2202
    %2223 = vmatprep.subr.bf16.mxu0 0
    %2224 = vmatpush1.bf16.msra.mxu0 %v2203
    %2225 = vmatprep.subr.bf16.mxu0 0
    %2226 = vmatpush1.bf16.msra.mxu0 %v2204
    %2227 = vmatprep.subr.bf16.mxu0 0
    %2228 = vmatpush1.bf16.msra.mxu0 %v2205
    %2229 = vmatprep.subr.bf16.mxu0 0
    %2230 = vmatpush1.bf16.msra.mxu0 %v2206
    %2231 = vmatprep.subr.bf16.mxu0 0
    %2232 = vmatpush1.bf16.msra.mxu0 0
    %2233 = vmatprep.subr.bf16.mxu0 0
    %2234 = vmatpush1.bf16.msra.mxu0 0
    %2235 = vmatprep.subr.bf16.mxu0 0
    %2236 = vmatpush1.bf16.msra.mxu0 0
    %2237 = vmatprep.subr.bf16.mxu0 0
    %2238 = vmatpush1.bf16.msra.mxu0 0
    %2239 = vmatprep.subr.bf16.mxu0 0
    %2240 = vmatpush1.bf16.msra.mxu0 0
    %2241 = vmatprep.subr.bf16.mxu0 0
    %2242 = vmatpush1.bf16.msra.mxu0 0
    %2243 = vmatprep.subr.bf16.mxu0 0
    %2244 = vmatpush1.bf16.msra.mxu0 0
    %2245 = vmatprep.subr.bf16.mxu0 0
    %2246 = vmatpush1.bf16.msra.mxu0 0
    %2247 = vmatprep.mubr.bf16.mxu0 0
    %2248 = vmatmul.mubr.bf16.gmra.mrb[0].mxu0 %v2143
    %v2249 = vpop.f32.mrb[0].mxu0
    %v2250 = vadd.f32 %v2166, %v2249
    %v2251 = vpop.f32.mrb[0].mxu0
    %v2252 = vpop.f32.mrb[0].mxu0
    %v2253 = vadd.f32 %v2166, %v2252
    %v2254 = vpop.f32.mrb[0].mxu0
    %2255 = vmatprep.mubr.bf16.mxu0 0
    %2256 = vmatmul.mubr.bf16.gmra.mrb[0].mxu0 %v2144
    %v2257 = vpop.f32.mrb[0].mxu0
    %v2258 = vadd.f32 %v2166, %v2257
    %v2259 = vpop.f32.mrb[0].mxu0
    %v2260 = vpop.f32.mrb[0].mxu0
    %v2261 = vadd.f32 %v2166, %v2260
    %v2262 = vpop.f32.mrb[0].mxu0
    %2263 = vmatprep.mubr.bf16.mxu0 0
    %2264 = vmatmul.mubr.bf16.gmra.mrb[0].mxu0 %v2145
    %v2265 = vpop.f32.mrb[0].mxu0
    %v2266 = vadd.f32 %v2166, %v2265
    %v2267 = vpop.f32.mrb[0].mxu0
    %v2268 = vpop.f32.mrb[0].mxu0
    %v2269 = vadd.f32 %v2166, %v2268
    %v2270 = vpop.f32.mrb[0].mxu0
    %2271 = vdwg.mxu0
    %v2272 = vadd.f32 %v1893, %v2250
    %v2273 = vadd.f32 %v1894, %v2253
    %v2274 = vadd.f32 %v1895, %v2258
    %v2275 = vadd.f32 %v1896, %v2261
    %v2276 = vadd.f32 %v1897, %v2266
    %v2277 = vadd.f32 %v1898, %v2269
    %v2278 = vld [vmem:[%s2 + $0x20] sm:$0x1]
    %v2279 = vld [vmem:[%s2 + $0x21] sm:$0x1]
    %v2280 = vsel %vm154, %v2272, 0.0
    %2281 = vadd.xlane.f32.xlu0 %v2280
    %v2282 = vpop.xlane.xlu0 %2281
    %v2283 = vsel %vm154, %v2273, 0.0
    %2284 = vadd.xlane.f32.xlu0 %v2283
    %v2285 = vpop.xlane.xlu0 %2284
    %v2286 = vsel %vm154, %v2274, 0.0
    %2287 = vadd.xlane.f32.xlu0 %v2286
    %v2288 = vpop.xlane.xlu0 %2287
    %v2289 = vsel %vm154, %v2275, 0.0
    %2290 = vadd.xlane.f32.xlu0 %v2289
    %v2291 = vpop.xlane.xlu0 %2290
    %v2292 = vsel %vm154, %v2276, 0.0
    %2293 = vadd.xlane.f32.xlu0 %v2292
    %v2294 = vpop.xlane.xlu0 %2293
    %v2295 = vsel %vm154, %v2277, 0.0
    %2296 = vadd.xlane.f32.xlu0 %v2295
    %v2297 = vpop.xlane.xlu0 %2296
    %v2298 = vmul.f32 %v2282, %v173
    %v2299 = vmul.f32 %v2285, %v173
    %v2300 = vmul.f32 %v2288, %v173
    %v2301 = vmul.f32 %v2291, %v173
    %v2302 = vmul.f32 %v2294, %v173
    %v2303 = vmul.f32 %v2297, %v173
    %v2304 = vsub.f32 %v2272, %v2298
    %v2305 = vsub.f32 %v2273, %v2299
    %v2306 = vsub.f32 %v2274, %v2300
    %v2307 = vsub.f32 %v2275, %v2301
    %v2308 = vsub.f32 %v2276, %v2302
    %v2309 = vsub.f32 %v2277, %v2303
    %v2310 = vmul.f32 %v2304, %v2304
    %v2311 = vmul.f32 %v2305, %v2305
    %v2312 = vmul.f32 %v2306, %v2306
    %v2313 = vmul.f32 %v2307, %v2307
    %v2314 = vmul.f32 %v2308, %v2308
    %v2315 = vmul.f32 %v2309, %v2309
    %v2316 = vsel %vm154, %v2310, 0.0
    %2317 = vadd.xlane.f32.xlu0 %v2316
    %v2318 = vpop.xlane.xlu0 %2317
    %v2319 = vsel %vm154, %v2311, 0.0
    %2320 = vadd.xlane.f32.xlu0 %v2319
    %v2321 = vpop.xlane.xlu0 %2320
    %v2322 = vsel %vm154, %v2312, 0.0
    %2323 = vadd.xlane.f32.xlu0 %v2322
    %v2324 = vpop.xlane.xlu0 %2323
    %v2325 = vsel %vm154, %v2313, 0.0
    %2326 = vadd.xlane.f32.xlu0 %v2325
    %v2327 = vpop.xlane.xlu0 %2326
    %v2328 = vsel %vm154, %v2314, 0.0
    %2329 = vadd.xlane.f32.xlu0 %v2328
    %v2330 = vpop.xlane.xlu0 %2329
    %v2331 = vsel %vm154, %v2315, 0.0
    %2332 = vadd.xlane.f32.xlu0 %v2331
    %v2333 = vpop.xlane.xlu0 %2332
    %v2334 = vmul.f32 %v2318, %v173
    %v2335 = vmul.f32 %v2321, %v173
    %v2336 = vmul.f32 %v2324, %v173
    %v2337 = vmul.f32 %v2327, %v173
    %v2338 = vmul.f32 %v2330, %v173
    %v2339 = vmul.f32 %v2333, %v173
    %v2340 = vadd.f32 %v2334, 1e-05
    %v2341 = vadd.f32 %v2335, 1e-05
    %v2342 = vadd.f32 %v2336, 1e-05
    %v2343 = vadd.f32 %v2337, 1e-05
    %v2344 = vadd.f32 %v2338, 1e-05
    %v2345 = vadd.f32 %v2339, 1e-05
    %v2346 = vrsqrt.pop %v2340
    %v2347 = vrsqrt.pop %v2341
    %v2348 = vrsqrt.pop %v2342
    %v2349 = vrsqrt.pop %v2343
    %v2350 = vrsqrt.pop %v2344
    %v2351 = vrsqrt.pop %v2345
    %v2352 = vmul.f32 %v2304, %v2346
    %v2353 = vmul.f32 %v2305, %v2347
    %v2354 = vmul.f32 %v2306, %v2348
    %v2355 = vmul.f32 %v2307, %v2349
    %v2356 = vmul.f32 %v2308, %v2350
    %v2357 = vmul.f32 %v2309, %v2351
    %v2358 = vlaneseq
    %v2359 = vshrl.u32 %v2358, 7
    %v2360 = vsub.s32 0, %v2359
    %v2361 = vrot.slane %v2278, %v2360
    %v2362 = vmul.f32 %v2352, %v2361
    %v2363 = vmul.f32 %v2353, %v2361
    %v2364 = vmul.f32 %v2354, %v2361
    %v2365 = vmul.f32 %v2355, %v2361
    %v2366 = vmul.f32 %v2356, %v2361
    %v2367 = vmul.f32 %v2357, %v2361
    %v2368 = vlaneseq
    %v2369 = vshrl.u32 %v2368, 7
    %v2370 = vsub.s32 0, %v2369
    %v2371 = vrot.slane %v2279, %v2370
    %v2372 = vadd.f32 %v2362, %v2371
    %v2373 = vadd.f32 %v2363, %v2371
    %v2374 = vadd.f32 %v2364, %v2371
    %v2375 = vadd.f32 %v2365, %v2371
    %v2376 = vadd.f32 %v2366, %v2371
    %v2377 = vadd.f32 %v2367, %v2371
    %v2378 = vpack.c.bf16 %v2373, %v2372
    %v2379 = vpack.c.bf16 %v2375, %v2374
    %v2380 = vpack.c.bf16 %v2377, %v2376
    %v2381 = vld [vmem:[%s1 + $0x90] sm:$0xf]
    %v2382 = vld [vmem:[%s1 + $0x94] sm:$0xf]
    %v2383 = vld [vmem:[%s1 + $0x98] sm:$0xf]
    %v2384 = vld [vmem:[%s1 + $0x9c] sm:$0xf]
    %v2385 = vld [vmem:[%s2 + $0x22] sm:$0x1]
    %v2386 = vlaneseq
    %v2387 = vshrl.u32 %v2386, 7
    %v2388 = vsub.s32 0, %v2387
    %v2389 = vrot.slane %v2385, %v2388
    %v2394 = vunpack.c.l.b16 %v2381
    %v2395 = vunpack.c.l.b16 %v2382
    %v2396 = vunpack.c.l.b16 %v2383
    %v2397 = vunpack.c.l.b16 %v2384
    %v2398 = vpack.c.b16 %v2395, %v2394
    %v2399 = vpack.c.b16 %v2397, %v2396
    %v2403 = vsel %vm154, %v2378, 0
    %v2406 = vsel %vm154, %v2379, 0
    %v2409 = vsel %vm154, %v2380, 0
    %2411 = vmatprep.subr.bf16.mxu0 0
    %2412 = vmatpush1.bf16.msra.mxu0 %v2398
    %2413 = vmatprep.subr.bf16.mxu0 0
    %2414 = vmatpush1.bf16.msra.mxu0 %v2399
    %2415 = vmatprep.subr.bf16.mxu0 0
    %2416 = vmatpush1.bf16.msra.mxu0 0
    %2417 = vmatprep.subr.bf16.mxu0 0
    %2418 = vmatpush1.bf16.msra.mxu0 0
    %2419 = vmatprep.subr.bf16.mxu0 0
    %2420 = vmatpush1.bf16.msra.mxu0 0
    %2421 = vmatprep.subr.bf16.mxu0 0
    %2422 = vmatpush1.bf16.msra.mxu0 0
    %2423 = vmatprep.subr.bf16.mxu0 0
    %2424 = vmatpush1.bf16.msra.mxu0 0
    %2425 = vmatprep.subr.bf16.mxu0 0
    %2426 = vmatpush1.bf16.msra.mxu0 0
    %2427 = vmatprep.subr.bf16.mxu0 0
    %2428 = vmatpush1.bf16.msra.mxu0 0
    %2429 = vmatprep.subr.bf16.mxu0 0
    %2430 = vmatpush1.bf16.msra.mxu0 0
    %2431 = vmatprep.subr.bf16.mxu0 0
    %2432 = vmatpush1.bf16.msra.mxu0 0
    %2433 = vmatprep.subr.bf16.mxu0 0
    %2434 = vmatpush1.bf16.msra.mxu0 0
    %2435 = vmatprep.subr.bf16.mxu0 0
    %2436 = vmatpush1.bf16.msra.mxu0 0
    %2437 = vmatprep.subr.bf16.mxu0 0
    %2438 = vmatpush1.bf16.msra.mxu0 0
    %2439 = vmatprep.subr.bf16.mxu0 0
    %2440 = vmatpush1.bf16.msra.mxu0 0
    %2441 = vmatprep.subr.bf16.mxu0 0
    %2442 = vmatpush1.bf16.msra.mxu0 0
    %2443 = vmatprep.mubr.bf16.mxu0 0
    %2444 = vmatmul.mubr.bf16.gmra.mrb[0].mxu0 %v2403
    %v2445 = vpop.f32.mrb[0].mxu0
    %v2446 = vadd.f32 %v2389, %v2445
    %v2447 = vpop.f32.mrb[0].mxu0
    %v2448 = vpop.f32.mrb[0].mxu0
    %v2449 = vadd.f32 %v2389, %v2448
    %v2450 = vpop.f32.mrb[0].mxu0
    %2451 = vmatprep.mubr.bf16.mxu0 0
    %2452 = vmatmul.mubr.bf16.gmra.mrb[0].mxu0 %v2406
    %v2453 = vpop.f32.mrb[0].mxu0
    %v2454 = vadd.f32 %v2389, %v2453
    %v2455 = vpop.f32.mrb[0].mxu0
    %v2456 = vpop.f32.mrb[0].mxu0
    %v2457 = vadd.f32 %v2389, %v2456
    %v2458 = vpop.f32.mrb[0].mxu0
    %2459 = vmatprep.mubr.bf16.mxu0 0
    %2460 = vmatmul.mubr.bf16.gmra.mrb[0].mxu0 %v2409
    %v2461 = vpop.f32.mrb[0].mxu0
    %v2462 = vadd.f32 %v2389, %v2461
    %v2463 = vpop.f32.mrb[0].mxu0
    %v2464 = vpop.f32.mrb[0].mxu0
    %v2465 = vadd.f32 %v2389, %v2464
    %v2466 = vpop.f32.mrb[0].mxu0
    %2467 = vdwg.mxu0
    %v2468 = vmul.f32 %v2446, 0.35355338
    %v2469 = vmul.f32 %v2449, 0.35355338
    %v2470 = vmul.f32 %v2454, 0.35355338
    %v2471 = vmul.f32 %v2457, 0.35355338
    %v2472 = vmul.f32 %v2462, 0.35355338
    %v2473 = vmul.f32 %v2465, 0.35355338
    %2480 = vrot.lane.b32.xlu0 %v2446, 96
    %v2481 = vpop.permute.xlu0 %2480
    %2482 = vrot.lane.b32.xlu0 %v2449, 96
    %v2483 = vpop.permute.xlu0 %2482
    %2484 = vrot.lane.b32.xlu0 %v2454, 96
    %v2485 = vpop.permute.xlu0 %2484
    %2486 = vrot.lane.b32.xlu0 %v2457, 96
    %v2487 = vpop.permute.xlu0 %2486
    %2488 = vrot.lane.b32.xlu0 %v2462, 96
    %v2489 = vpop.permute.xlu0 %2488
    %2490 = vrot.lane.b32.xlu0 %v2465, 96
    %v2491 = vpop.permute.xlu0 %2490
    %v2493 = vsel %vm368, %v2468, 0
    %v2496 = vsel %vm368, %v2469, 0
    %v2499 = vsel %vm368, %v2470, 0
    %v2502 = vsel %vm368, %v2471, 0
    %v2505 = vsel %vm368, %v2472, 0
    %v2508 = vsel %vm368, %v2473, 0
    %v2510 = vsel %vm368, %v2481, 0
    %v2512 = vsel %vm368, %v2483, 0
    %v2514 = vsel %vm368, %v2485, 0
    %v2516 = vsel %vm368, %v2487, 0
    %v2518 = vsel %vm368, %v2489, 0
    %v2520 = vsel %vm368, %v2491, 0
    %2522 = vmatprep.subr.mxu0 0.0
    %2523 = vmatpush1.xpose.msra.mxu0 %v2510
    %2524 = vmatprep.subr.mxu0 0.0
    %2525 = vmatpush1.xpose.msra.mxu0 %v2512
    %2526 = vmatprep.subr.mxu0 0.0
    %2527 = vmatpush1.xpose.msra.mxu0 %v2514
    %2528 = vmatprep.subr.mxu0 0.0
    %2529 = vmatpush1.xpose.msra.mxu0 %v2516
    %2530 = vmatprep.subr.mxu0 0.0
    %2531 = vmatpush1.xpose.msra.mxu0 %v2518
    %2532 = vmatprep.subr.mxu0 0.0
    %2533 = vmatpush1.xpose.msra.mxu0 %v2520
    %2534 = vmatprep.subr.mxu0 0.0
    %2535 = vmatpush1.xpose.msra.mxu0 0.0
    %2536 = vmatprep.subr.mxu0 0.0
    %2537 = vmatpush1.xpose.msra.mxu0 0.0
    %2538 = vmatprep.subr.mxu0 0.0
    %2539 = vmatpush1.xpose.msra.mxu0 0.0
    %2540 = vmatprep.subr.mxu0 0.0
    %2541 = vmatpush1.xpose.msra.mxu0 0.0
    %2542 = vmatprep.subr.mxu0 0.0
    %2543 = vmatpush1.xpose.msra.mxu0 0.0
    %2544 = vmatprep.subr.mxu0 0.0
    %2545 = vmatpush1.xpose.msra.mxu0 0.0
    %2546 = vmatprep.subr.mxu0 0.0
    %2547 = vmatpush1.xpose.msra.mxu0 0.0
    %2548 = vmatprep.subr.mxu0 0.0
    %2549 = vmatpush1.xpose.msra.mxu0 0.0
    %2550 = vmatprep.subr.mxu0 0.0
    %2551 = vmatpush1.xpose.msra.mxu0 0.0
    %2552 = vmatprep.subr.mxu0 0.0
    %2553 = vmatpush1.xpose.msra.mxu0 0.0
    %2554 = vmatprep.subr.mxu0 0.0
    %2555 = vmatpush1.xpose.msra.mxu0 0.0
    %2556 = vmatprep.subr.mxu0 0.0
    %2557 = vmatpush1.xpose.msra.mxu0 0.0
    %2558 = vmatprep.subr.mxu0 0.0
    %2559 = vmatpush1.xpose.msra.mxu0 0.0
    %2560 = vmatprep.subr.mxu0 0.0
    %2561 = vmatpush1.xpose.msra.mxu0 0.0
    %2562 = vmatprep.subr.mxu0 0.0
    %2563 = vmatpush1.xpose.msra.mxu0 0.0
    %2564 = vmatprep.subr.mxu0 0.0
    %2565 = vmatpush1.xpose.msra.mxu0 0.0
    %2566 = vmatprep.subr.mxu0 0.0
    %2567 = vmatpush1.xpose.msra.mxu0 0.0
    %2568 = vmatprep.subr.mxu0 0.0
    %2569 = vmatpush1.xpose.msra.mxu0 0.0
    %2570 = vmatprep.subr.mxu0 0.0
    %2571 = vmatpush1.xpose.msra.mxu0 0.0
    %2572 = vmatprep.subr.mxu0 0.0
    %2573 = vmatpush1.xpose.msra.mxu0 0.0
    %2574 = vmatprep.subr.mxu0 0.0
    %2575 = vmatpush1.xpose.msra.mxu0 0.0
    %2576 = vmatprep.subr.mxu0 0.0
    %2577 = vmatpush1.xpose.msra.mxu0 0.0
    %2578 = vmatprep.subr.mxu0 0.0
    %2579 = vmatpush1.xpose.msra.mxu0 0.0
    %2580 = vmatprep.subr.mxu0 0.0
    %2581 = vmatpush1.xpose.msra.mxu0 0.0
    %2582 = vmatprep.subr.mxu0 0.0
    %2583 = vmatpush1.xpose.msra.mxu0 0.0
    %2584 = vmatprep.subr.mxu0 0.0
    %2585 = vmatpush1.xpose.msra.mxu0 0.0
    %2586 = vmatprep.mubr.f32.mxu0 0.0
    %2587 = vmatmul.mubr.f32.gmra.mrb[0].mxu0 %v2493
    %v2588 = vpop.f32.mrb[0].mxu0
    %v2589 = vadd.f32 %v23, %v2588
    %v2590 = vpop.f32.mrb[0].mxu0
    %2591 = vmatprep.mubr.f32.mxu0 0.0
    %2592 = vmatmul.mubr.f32.gmra.mrb[0].mxu0 %v2496
    %v2593 = vpop.f32.mrb[0].mxu0
    %v2594 = vadd.f32 %v23, %v2593
    %v2595 = vpop.f32.mrb[0].mxu0
    %2596 = vmatprep.mubr.f32.mxu0 0.0
    %2597 = vmatmul.mubr.f32.gmra.mrb[0].mxu0 %v2499
    %v2598 = vpop.f32.mrb[0].mxu0
    %v2599 = vadd.f32 %v23, %v2598
    %v2600 = vpop.f32.mrb[0].mxu0
    %2601 = vmatprep.mubr.f32.mxu0 0.0
    %2602 = vmatmul.mubr.f32.gmra.mrb[0].mxu0 %v2502
    %v2603 = vpop.f32.mrb[0].mxu0
    %v2604 = vadd.f32 %v28, %v2603
    %v2605 = vpop.f32.mrb[0].mxu0
    %2606 = vmatprep.mubr.f32.mxu0 0.0
    %2607 = vmatmul.mubr.f32.gmra.mrb[0].mxu0 %v2505
    %v2608 = vpop.f32.mrb[0].mxu0
    %v2609 = vadd.f32 %v28, %v2608
    %v2610 = vpop.f32.mrb[0].mxu0
    %2611 = vmatprep.mubr.f32.mxu0 0.0
    %2612 = vmatmul.mubr.f32.gmra.mrb[0].mxu0 %v2508
    %v2613 = vpop.f32.mrb[0].mxu0
    %v2614 = vadd.f32 %v28, %v2613
    %v2615 = vpop.f32.mrb[0].mxu0
    %2616 = vdwg.mxu0
    %v2617 = vsel %vm494, %v2589, -inf
    %2618 = vmax.xlane.f32.xlu0 %v2617
    %v2619 = vpop.xlane.xlu0 %2618
    %v2620 = vsel %vm494, %v2594, -inf
    %2621 = vmax.xlane.f32.xlu0 %v2620
    %v2622 = vpop.xlane.xlu0 %2621
    %v2623 = vsel %vm494, %v2599, -inf
    %2624 = vmax.xlane.f32.xlu0 %v2623
    %v2625 = vpop.xlane.xlu0 %2624
    %v2626 = vsel %vm494, %v2604, -inf
    %2627 = vmax.xlane.f32.xlu0 %v2626
    %v2628 = vpop.xlane.xlu0 %2627
    %v2629 = vsel %vm494, %v2609, -inf
    %2630 = vmax.xlane.f32.xlu0 %v2629
    %v2631 = vpop.xlane.xlu0 %2630
    %v2632 = vsel %vm494, %v2614, -inf
    %2633 = vmax.xlane.f32.xlu0 %v2632
    %v2634 = vpop.xlane.xlu0 %2633
    %v2635 = vsub.f32 %v2589, %v2619
    %v2636 = vsub.f32 %v2594, %v2622
    %v2637 = vsub.f32 %v2599, %v2625
    %v2638 = vsub.f32 %v2604, %v2628
    %v2639 = vsub.f32 %v2609, %v2631
    %v2640 = vsub.f32 %v2614, %v2634
    %v2641 = vmul.f32 %v2635, 1.442695
    %v2642 = vpow.pop %v2641
    %v2643 = vmul.f32 %v2636, 1.442695
    %v2644 = vpow.pop %v2643
    %v2645 = vmul.f32 %v2637, 1.442695
    %v2646 = vpow.pop %v2645
    %v2647 = vmul.f32 %v2638, 1.442695
    %v2648 = vpow.pop %v2647
    %v2649 = vmul.f32 %v2639, 1.442695
    %v2650 = vpow.pop %v2649
    %v2651 = vmul.f32 %v2640, 1.442695
    %v2652 = vpow.pop %v2651
    %v2653 = vsel %vm494, %v2642, 0.0
    %2654 = vadd.xlane.f32.xlu0 %v2653
    %v2655 = vpop.xlane.xlu0 %2654
    %v2656 = vsel %vm494, %v2644, 0.0
    %2657 = vadd.xlane.f32.xlu0 %v2656
    %v2658 = vpop.xlane.xlu0 %2657
    %v2659 = vsel %vm494, %v2646, 0.0
    %2660 = vadd.xlane.f32.xlu0 %v2659
    %v2661 = vpop.xlane.xlu0 %2660
    %v2662 = vsel %vm494, %v2648, 0.0
    %2663 = vadd.xlane.f32.xlu0 %v2662
    %v2664 = vpop.xlane.xlu0 %2663
    %v2665 = vsel %vm494, %v2650, 0.0
    %2666 = vadd.xlane.f32.xlu0 %v2665
    %v2667 = vpop.xlane.xlu0 %2666
    %v2668 = vsel %vm494, %v2652, 0.0
    %2669 = vadd.xlane.f32.xlu0 %v2668
    %v2670 = vpop.xlane.xlu0 %2669
    %v2671 = vrcp.pop %v2655
    %v2672 = vrcp.pop %v2658
    %v2673 = vrcp.pop %v2661
    %v2674 = vrcp.pop %v2664
    %v2675 = vrcp.pop %v2667
    %v2676 = vrcp.pop %v2670
    %v2677 = vmul.f32 %v2642, %v2671
    %v2678 = vmul.f32 %v2644, %v2672
    %v2679 = vmul.f32 %v2646, %v2673
    %v2680 = vmul.f32 %v2648, %v2674
    %v2681 = vmul.f32 %v2650, %v2675
    %v2682 = vmul.f32 %v2652, %v2676
    %2683 = vrot.lane.b32.xlu0 %v2446, 64
    %v2684 = vpop.permute.xlu0 %2683
    %2685 = vrot.lane.b32.xlu0 %v2449, 64
    %v2686 = vpop.permute.xlu0 %2685
    %2687 = vrot.lane.b32.xlu0 %v2454, 64
    %v2688 = vpop.permute.xlu0 %2687
    %2689 = vrot.lane.b32.xlu0 %v2457, 64
    %v2690 = vpop.permute.xlu0 %2689
    %2691 = vrot.lane.b32.xlu0 %v2462, 64
    %v2692 = vpop.permute.xlu0 %2691
    %2693 = vrot.lane.b32.xlu0 %v2465, 64
    %v2694 = vpop.permute.xlu0 %2693
    %v2702 = vsel %vm494, %v2677, 0
    %v2705 = vsel %vm494, %v2678, 0
    %v2708 = vsel %vm494, %v2679, 0
    %v2711 = vsel %vm494, %v2680, 0
    %v2714 = vsel %vm494, %v2681, 0
    %v2717 = vsel %vm494, %v2682, 0
    %2719 = vmatprep.subr.mxu0 0.0
    %2720 = vmatpush1.msra.mxu0 %v2684
    %2721 = vmatprep.subr.mxu0 0.0
    %2722 = vmatpush1.msra.mxu0 %v2686
    %2723 = vmatprep.subr.mxu0 0.0
    %2724 = vmatpush1.msra.mxu0 %v2688
    %2725 = vmatprep.subr.mxu0 0.0
    %2726 = vmatpush1.msra.mxu0 %v2690
    %2727 = vmatprep.subr.mxu0 0.0
    %2728 = vmatpush1.msra.mxu0 %v2692
    %2729 = vmatprep.subr.mxu0 0.0
    %2730 = vmatpush1.msra.mxu0 %v2694
    %2731 = vmatprep.subr.mxu0 0.0
    %2732 = vmatpush1.msra.mxu0 0.0
    %2733 = vmatprep.subr.mxu0 0.0
    %2734 = vmatpush1.msra.mxu0 0.0
    %2735 = vmatprep.subr.mxu0 0.0
    %2736 = vmatpush1.msra.mxu0 0.0
    %2737 = vmatprep.subr.mxu0 0.0
    %2738 = vmatpush1.msra.mxu0 0.0
    %2739 = vmatprep.subr.mxu0 0.0
    %2740 = vmatpush1.msra.mxu0 0.0
    %2741 = vmatprep.subr.mxu0 0.0
    %2742 = vmatpush1.msra.mxu0 0.0
    %2743 = vmatprep.subr.mxu0 0.0
    %2744 = vmatpush1.msra.mxu0 0.0
    %2745 = vmatprep.subr.mxu0 0.0
    %2746 = vmatpush1.msra.mxu0 0.0
    %2747 = vmatprep.subr.mxu0 0.0
    %2748 = vmatpush1.msra.mxu0 0.0
    %2749 = vmatprep.subr.mxu0 0.0
    %2750 = vmatpush1.msra.mxu0 0.0
    %2751 = vmatprep.subr.mxu0 0.0
    %2752 = vmatpush1.msra.mxu0 0.0
    %2753 = vmatprep.subr.mxu0 0.0
    %2754 = vmatpush1.msra.mxu0 0.0
    %2755 = vmatprep.subr.mxu0 0.0
    %2756 = vmatpush1.msra.mxu0 0.0
    %2757 = vmatprep.subr.mxu0 0.0
    %2758 = vmatpush1.msra.mxu0 0.0
    %2759 = vmatprep.subr.mxu0 0.0
    %2760 = vmatpush1.msra.mxu0 0.0
    %2761 = vmatprep.subr.mxu0 0.0
    %2762 = vmatpush1.msra.mxu0 0.0
    %2763 = vmatprep.subr.mxu0 0.0
    %2764 = vmatpush1.msra.mxu0 0.0
    %2765 = vmatprep.subr.mxu0 0.0
    %2766 = vmatpush1.msra.mxu0 0.0
    %2767 = vmatprep.subr.mxu0 0.0
    %2768 = vmatpush1.msra.mxu0 0.0
    %2769 = vmatprep.subr.mxu0 0.0
    %2770 = vmatpush1.msra.mxu0 0.0
    %2771 = vmatprep.subr.mxu0 0.0
    %2772 = vmatpush1.msra.mxu0 0.0
    %2773 = vmatprep.subr.mxu0 0.0
    %2774 = vmatpush1.msra.mxu0 0.0
    %2775 = vmatprep.subr.mxu0 0.0
    %2776 = vmatpush1.msra.mxu0 0.0
    %2777 = vmatprep.subr.mxu0 0.0
    %2778 = vmatpush1.msra.mxu0 0.0
    %2779 = vmatprep.subr.mxu0 0.0
    %2780 = vmatpush1.msra.mxu0 0.0
    %2781 = vmatprep.subr.mxu0 0.0
    %2782 = vmatpush1.msra.mxu0 0.0
    %2783 = vmatprep.mubr.f32.mxu0 0.0
    %2784 = vmatmul.mubr.f32.gmra.mrb[0].mxu0 %v2702
    %v2785 = vpop.f32.mrb[0].mxu0
    %v2786 = vadd.f32 0.0, %v2785
    %v2787 = vpop.f32.mrb[0].mxu0
    %2788 = vmatprep.mubr.f32.mxu0 0.0
    %2789 = vmatmul.mubr.f32.gmra.mrb[0].mxu0 %v2705
    %v2790 = vpop.f32.mrb[0].mxu0
    %v2791 = vadd.f32 0.0, %v2790
    %v2792 = vpop.f32.mrb[0].mxu0
    %2793 = vmatprep.mubr.f32.mxu0 0.0
    %2794 = vmatmul.mubr.f32.gmra.mrb[0].mxu0 %v2708
    %v2795 = vpop.f32.mrb[0].mxu0
    %v2796 = vadd.f32 0.0, %v2795
    %v2797 = vpop.f32.mrb[0].mxu0
    %2798 = vmatprep.mubr.f32.mxu0 0.0
    %2799 = vmatmul.mubr.f32.gmra.mrb[0].mxu0 %v2711
    %v2800 = vpop.f32.mrb[0].mxu0
    %v2801 = vadd.f32 0.0, %v2800
    %v2802 = vpop.f32.mrb[0].mxu0
    %2803 = vmatprep.mubr.f32.mxu0 0.0
    %2804 = vmatmul.mubr.f32.gmra.mrb[0].mxu0 %v2714
    %v2805 = vpop.f32.mrb[0].mxu0
    %v2806 = vadd.f32 0.0, %v2805
    %v2807 = vpop.f32.mrb[0].mxu0
    %2808 = vmatprep.mubr.f32.mxu0 0.0
    %2809 = vmatmul.mubr.f32.gmra.mrb[0].mxu0 %v2717
    %v2810 = vpop.f32.mrb[0].mxu0
    %v2811 = vadd.f32 0.0, %v2810
    %v2812 = vpop.f32.mrb[0].mxu0
    %2813 = vdwg.mxu0
    %2814 = vrot.lane.b32.xlu0 %v2468, 120
    %v2815 = vpop.permute.xlu0 %2814
    %2816 = vrot.lane.b32.xlu0 %v2469, 120
    %v2817 = vpop.permute.xlu0 %2816
    %2818 = vrot.lane.b32.xlu0 %v2470, 120
    %v2819 = vpop.permute.xlu0 %2818
    %2820 = vrot.lane.b32.xlu0 %v2471, 120
    %v2821 = vpop.permute.xlu0 %2820
    %2822 = vrot.lane.b32.xlu0 %v2472, 120
    %v2823 = vpop.permute.xlu0 %2822
    %2824 = vrot.lane.b32.xlu0 %v2473, 120
    %v2825 = vpop.permute.xlu0 %2824
    %2826 = vrot.lane.b32.xlu0 %v2446, 88
    %v2827 = vpop.permute.xlu0 %2826
    %2828 = vrot.lane.b32.xlu0 %v2449, 88
    %v2829 = vpop.permute.xlu0 %2828
    %2830 = vrot.lane.b32.xlu0 %v2454, 88
    %v2831 = vpop.permute.xlu0 %2830
    %2832 = vrot.lane.b32.xlu0 %v2457, 88
    %v2833 = vpop.permute.xlu0 %2832
    %2834 = vrot.lane.b32.xlu0 %v2462, 88
    %v2835 = vpop.permute.xlu0 %2834
    %2836 = vrot.lane.b32.xlu0 %v2465, 88
    %v2837 = vpop.permute.xlu0 %2836
    %v2838 = vsel %vm368, %v2815, 0
    %v2840 = vsel %vm368, %v2817, 0
    %v2842 = vsel %vm368, %v2819, 0
    %v2844 = vsel %vm368, %v2821, 0
    %v2846 = vsel %vm368, %v2823, 0
    %v2848 = vsel %vm368, %v2825, 0
    %v2850 = vsel %vm368, %v2827, 0
    %v2852 = vsel %vm368, %v2829, 0
    %v2854 = vsel %vm368, %v2831, 0
    %v2856 = vsel %vm368, %v2833, 0
    %v2858 = vsel %vm368, %v2835, 0
    %v2860 = vsel %vm368, %v2837, 0
    %2862 = vmatprep.subr.mxu0 0.0
    %2863 = vmatpush1.xpose.msra.mxu0 %v2850
    %2864 = vmatprep.subr.mxu0 0.0
    %2865 = vmatpush1.xpose.msra.mxu0 %v2852
    %2866 = vmatprep.subr.mxu0 0.0
    %2867 = vmatpush1.xpose.msra.mxu0 %v2854
    %2868 = vmatprep.subr.mxu0 0.0
    %2869 = vmatpush1.xpose.msra.mxu0 %v2856
    %2870 = vmatprep.subr.mxu0 0.0
    %2871 = vmatpush1.xpose.msra.mxu0 %v2858
    %2872 = vmatprep.subr.mxu0 0.0
    %2873 = vmatpush1.xpose.msra.mxu0 %v2860
    %2874 = vmatprep.subr.mxu0 0.0
    %2875 = vmatpush1.xpose.msra.mxu0 0.0
    %2876 = vmatprep.subr.mxu0 0.0
    %2877 = vmatpush1.xpose.msra.mxu0 0.0
    %2878 = vmatprep.subr.mxu0 0.0
    %2879 = vmatpush1.xpose.msra.mxu0 0.0
    %2880 = vmatprep.subr.mxu0 0.0
    %2881 = vmatpush1.xpose.msra.mxu0 0.0
    %2882 = vmatprep.subr.mxu0 0.0
    %2883 = vmatpush1.xpose.msra.mxu0 0.0
    %2884 = vmatprep.subr.mxu0 0.0
    %2885 = vmatpush1.xpose.msra.mxu0 0.0
    %2886 = vmatprep.subr.mxu0 0.0
    %2887 = vmatpush1.xpose.msra.mxu0 0.0
    %2888 = vmatprep.subr.mxu0 0.0
    %2889 = vmatpush1.xpose.msra.mxu0 0.0
    %2890 = vmatprep.subr.mxu0 0.0
    %2891 = vmatpush1.xpose.msra.mxu0 0.0
    %2892 = vmatprep.subr.mxu0 0.0
    %2893 = vmatpush1.xpose.msra.mxu0 0.0
    %2894 = vmatprep.subr.mxu0 0.0
    %2895 = vmatpush1.xpose.msra.mxu0 0.0
    %2896 = vmatprep.subr.mxu0 0.0
    %2897 = vmatpush1.xpose.msra.mxu0 0.0
    %2898 = vmatprep.subr.mxu0 0.0
    %2899 = vmatpush1.xpose.msra.mxu0 0.0
    %2900 = vmatprep.subr.mxu0 0.0
    %2901 = vmatpush1.xpose.msra.mxu0 0.0
    %2902 = vmatprep.subr.mxu0 0.0
    %2903 = vmatpush1.xpose.msra.mxu0 0.0
    %2904 = vmatprep.subr.mxu0 0.0
    %2905 = vmatpush1.xpose.msra.mxu0 0.0
    %2906 = vmatprep.subr.mxu0 0.0
    %2907 = vmatpush1.xpose.msra.mxu0 0.0
    %2908 = vmatprep.subr.mxu0 0.0
    %2909 = vmatpush1.xpose.msra.mxu0 0.0
    %2910 = vmatprep.subr.mxu0 0.0
    %2911 = vmatpush1.xpose.msra.mxu0 0.0
    %2912 = vmatprep.subr.mxu0 0.0
    %2913 = vmatpush1.xpose.msra.mxu0 0.0
    %2914 = vmatprep.subr.mxu0 0.0
    %2915 = vmatpush1.xpose.msra.mxu0 0.0
    %2916 = vmatprep.subr.mxu0 0.0
    %2917 = vmatpush1.xpose.msra.mxu0 0.0
    %2918 = vmatprep.subr.mxu0 0.0
    %2919 = vmatpush1.xpose.msra.mxu0 0.0
    %2920 = vmatprep.subr.mxu0 0.0
    %2921 = vmatpush1.xpose.msra.mxu0 0.0
    %2922 = vmatprep.subr.mxu0 0.0
    %2923 = vmatpush1.xpose.msra.mxu0 0.0
    %2924 = vmatprep.subr.mxu0 0.0
    %2925 = vmatpush1.xpose.msra.mxu0 0.0
    %2926 = vmatprep.mubr.f32.mxu0 0.0
    %2927 = vmatmul.mubr.f32.gmra.mrb[0].mxu0 %v2838
    %v2928 = vpop.f32.mrb[0].mxu0
    %v2929 = vadd.f32 %v23, %v2928
    %v2930 = vpop.f32.mrb[0].mxu0
    %2931 = vmatprep.mubr.f32.mxu0 0.0
    %2932 = vmatmul.mubr.f32.gmra.mrb[0].mxu0 %v2840
    %v2933 = vpop.f32.mrb[0].mxu0
    %v2934 = vadd.f32 %v23, %v2933
    %v2935 = vpop.f32.mrb[0].mxu0
    %2936 = vmatprep.mubr.f32.mxu0 0.0
    %2937 = vmatmul.mubr.f32.gmra.mrb[0].mxu0 %v2842
    %v2938 = vpop.f32.mrb[0].mxu0
    %v2939 = vadd.f32 %v23, %v2938
    %v2940 = vpop.f32.mrb[0].mxu0
    %2941 = vmatprep.mubr.f32.mxu0 0.0
    %2942 = vmatmul.mubr.f32.gmra.mrb[0].mxu0 %v2844
    %v2943 = vpop.f32.mrb[0].mxu0
    %v2944 = vadd.f32 %v28, %v2943
    %v2945 = vpop.f32.mrb[0].mxu0
    %2946 = vmatprep.mubr.f32.mxu0 0.0
    %2947 = vmatmul.mubr.f32.gmra.mrb[0].mxu0 %v2846
    %v2948 = vpop.f32.mrb[0].mxu0
    %v2949 = vadd.f32 %v28, %v2948
    %v2950 = vpop.f32.mrb[0].mxu0
    %2951 = vmatprep.mubr.f32.mxu0 0.0
    %2952 = vmatmul.mubr.f32.gmra.mrb[0].mxu0 %v2848
    %v2953 = vpop.f32.mrb[0].mxu0
    %v2954 = vadd.f32 %v28, %v2953
    %v2955 = vpop.f32.mrb[0].mxu0
    %2956 = vdwg.mxu0
    %v2957 = vsel %vm494, %v2929, -inf
    %2958 = vmax.xlane.f32.xlu0 %v2957
    %v2959 = vpop.xlane.xlu0 %2958
    %v2960 = vsel %vm494, %v2934, -inf
    %2961 = vmax.xlane.f32.xlu0 %v2960
    %v2962 = vpop.xlane.xlu0 %2961
    %v2963 = vsel %vm494, %v2939, -inf
    %2964 = vmax.xlane.f32.xlu0 %v2963
    %v2965 = vpop.xlane.xlu0 %2964
    %v2966 = vsel %vm494, %v2944, -inf
    %2967 = vmax.xlane.f32.xlu0 %v2966
    %v2968 = vpop.xlane.xlu0 %2967
    %v2969 = vsel %vm494, %v2949, -inf
    %2970 = vmax.xlane.f32.xlu0 %v2969
    %v2971 = vpop.xlane.xlu0 %2970
    %v2972 = vsel %vm494, %v2954, -inf
    %2973 = vmax.xlane.f32.xlu0 %v2972
    %v2974 = vpop.xlane.xlu0 %2973
    %v2975 = vsub.f32 %v2929, %v2959
    %v2976 = vsub.f32 %v2934, %v2962
    %v2977 = vsub.f32 %v2939, %v2965
    %v2978 = vsub.f32 %v2944, %v2968
    %v2979 = vsub.f32 %v2949, %v2971
    %v2980 = vsub.f32 %v2954, %v2974
    %v2981 = vmul.f32 %v2975, 1.442695
    %v2982 = vpow.pop %v2981
    %v2983 = vmul.f32 %v2976, 1.442695
    %v2984 = vpow.pop %v2983
    %v2985 = vmul.f32 %v2977, 1.442695
    %v2986 = vpow.pop %v2985
    %v2987 = vmul.f32 %v2978, 1.442695
    %v2988 = vpow.pop %v2987
    %v2989 = vmul.f32 %v2979, 1.442695
    %v2990 = vpow.pop %v2989
    %v2991 = vmul.f32 %v2980, 1.442695
    %v2992 = vpow.pop %v2991
    %v2993 = vsel %vm494, %v2982, 0.0
    %2994 = vadd.xlane.f32.xlu0 %v2993
    %v2995 = vpop.xlane.xlu0 %2994
    %v2996 = vsel %vm494, %v2984, 0.0
    %2997 = vadd.xlane.f32.xlu0 %v2996
    %v2998 = vpop.xlane.xlu0 %2997
    %v2999 = vsel %vm494, %v2986, 0.0
    %3000 = vadd.xlane.f32.xlu0 %v2999
    %v3001 = vpop.xlane.xlu0 %3000
    %v3002 = vsel %vm494, %v2988, 0.0
    %3003 = vadd.xlane.f32.xlu0 %v3002
    %v3004 = vpop.xlane.xlu0 %3003
    %v3005 = vsel %vm494, %v2990, 0.0
    %3006 = vadd.xlane.f32.xlu0 %v3005
    %v3007 = vpop.xlane.xlu0 %3006
    %v3008 = vsel %vm494, %v2992, 0.0
    %3009 = vadd.xlane.f32.xlu0 %v3008
    %v3010 = vpop.xlane.xlu0 %3009
    %v3011 = vrcp.pop %v2995
    %v3012 = vrcp.pop %v2998
    %v3013 = vrcp.pop %v3001
    %v3014 = vrcp.pop %v3004
    %v3015 = vrcp.pop %v3007
    %v3016 = vrcp.pop %v3010
    %v3017 = vmul.f32 %v2982, %v3011
    %v3018 = vmul.f32 %v2984, %v3012
    %v3019 = vmul.f32 %v2986, %v3013
    %v3020 = vmul.f32 %v2988, %v3014
    %v3021 = vmul.f32 %v2990, %v3015
    %v3022 = vmul.f32 %v2992, %v3016
    %3023 = vrot.lane.b32.xlu0 %v2446, 56
    %v3024 = vpop.permute.xlu0 %3023
    %3025 = vrot.lane.b32.xlu0 %v2449, 56
    %v3026 = vpop.permute.xlu0 %3025
    %3027 = vrot.lane.b32.xlu0 %v2454, 56
    %v3028 = vpop.permute.xlu0 %3027
    %3029 = vrot.lane.b32.xlu0 %v2457, 56
    %v3030 = vpop.permute.xlu0 %3029
    %3031 = vrot.lane.b32.xlu0 %v2462, 56
    %v3032 = vpop.permute.xlu0 %3031
    %3033 = vrot.lane.b32.xlu0 %v2465, 56
    %v3034 = vpop.permute.xlu0 %3033
    %v3042 = vsel %vm494, %v3017, 0
    %v3045 = vsel %vm494, %v3018, 0
    %v3048 = vsel %vm494, %v3019, 0
    %v3051 = vsel %vm494, %v3020, 0
    %v3054 = vsel %vm494, %v3021, 0
    %v3057 = vsel %vm494, %v3022, 0
    %3059 = vmatprep.subr.mxu0 0.0
    %3060 = vmatpush1.msra.mxu0 %v3024
    %3061 = vmatprep.subr.mxu0 0.0
    %3062 = vmatpush1.msra.mxu0 %v3026
    %3063 = vmatprep.subr.mxu0 0.0
    %3064 = vmatpush1.msra.mxu0 %v3028
    %3065 = vmatprep.subr.mxu0 0.0
    %3066 = vmatpush1.msra.mxu0 %v3030
    %3067 = vmatprep.subr.mxu0 0.0
    %3068 = vmatpush1.msra.mxu0 %v3032
    %3069 = vmatprep.subr.mxu0 0.0
    %3070 = vmatpush1.msra.mxu0 %v3034
    %3071 = vmatprep.subr.mxu0 0.0
    %3072 = vmatpush1.msra.mxu0 0.0
    %3073 = vmatprep.subr.mxu0 0.0
    %3074 = vmatpush1.msra.mxu0 0.0
    %3075 = vmatprep.subr.mxu0 0.0
    %3076 = vmatpush1.msra.mxu0 0.0
    %3077 = vmatprep.subr.mxu0 0.0
    %3078 = vmatpush1.msra.mxu0 0.0
    %3079 = vmatprep.subr.mxu0 0.0
    %3080 = vmatpush1.msra.mxu0 0.0
    %3081 = vmatprep.subr.mxu0 0.0
    %3082 = vmatpush1.msra.mxu0 0.0
    %3083 = vmatprep.subr.mxu0 0.0
    %3084 = vmatpush1.msra.mxu0 0.0
    %3085 = vmatprep.subr.mxu0 0.0
    %3086 = vmatpush1.msra.mxu0 0.0
    %3087 = vmatprep.subr.mxu0 0.0
    %3088 = vmatpush1.msra.mxu0 0.0
    %3089 = vmatprep.subr.mxu0 0.0
    %3090 = vmatpush1.msra.mxu0 0.0
    %3091 = vmatprep.subr.mxu0 0.0
    %3092 = vmatpush1.msra.mxu0 0.0
    %3093 = vmatprep.subr.mxu0 0.0
    %3094 = vmatpush1.msra.mxu0 0.0
    %3095 = vmatprep.subr.mxu0 0.0
    %3096 = vmatpush1.msra.mxu0 0.0
    %3097 = vmatprep.subr.mxu0 0.0
    %3098 = vmatpush1.msra.mxu0 0.0
    %3099 = vmatprep.subr.mxu0 0.0
    %3100 = vmatpush1.msra.mxu0 0.0
    %3101 = vmatprep.subr.mxu0 0.0
    %3102 = vmatpush1.msra.mxu0 0.0
    %3103 = vmatprep.subr.mxu0 0.0
    %3104 = vmatpush1.msra.mxu0 0.0
    %3105 = vmatprep.subr.mxu0 0.0
    %3106 = vmatpush1.msra.mxu0 0.0
    %3107 = vmatprep.subr.mxu0 0.0
    %3108 = vmatpush1.msra.mxu0 0.0
    %3109 = vmatprep.subr.mxu0 0.0
    %3110 = vmatpush1.msra.mxu0 0.0
    %3111 = vmatprep.subr.mxu0 0.0
    %3112 = vmatpush1.msra.mxu0 0.0
    %3113 = vmatprep.subr.mxu0 0.0
    %3114 = vmatpush1.msra.mxu0 0.0
    %3115 = vmatprep.subr.mxu0 0.0
    %3116 = vmatpush1.msra.mxu0 0.0
    %3117 = vmatprep.subr.mxu0 0.0
    %3118 = vmatpush1.msra.mxu0 0.0
    %3119 = vmatprep.subr.mxu0 0.0
    %3120 = vmatpush1.msra.mxu0 0.0
    %3121 = vmatprep.subr.mxu0 0.0
    %3122 = vmatpush1.msra.mxu0 0.0
    %3123 = vmatprep.mubr.f32.mxu0 0.0
    %3124 = vmatmul.mubr.f32.gmra.mrb[0].mxu0 %v3042
    %v3125 = vpop.f32.mrb[0].mxu0
    %v3126 = vadd.f32 0.0, %v3125
    %v3127 = vpop.f32.mrb[0].mxu0
    %3128 = vmatprep.mubr.f32.mxu0 0.0
    %3129 = vmatmul.mubr.f32.gmra.mrb[0].mxu0 %v3045
    %v3130 = vpop.f32.mrb[0].mxu0
    %v3131 = vadd.f32 0.0, %v3130
    %v3132 = vpop.f32.mrb[0].mxu0
    %3133 = vmatprep.mubr.f32.mxu0 0.0
    %3134 = vmatmul.mubr.f32.gmra.mrb[0].mxu0 %v3048
    %v3135 = vpop.f32.mrb[0].mxu0
    %v3136 = vadd.f32 0.0, %v3135
    %v3137 = vpop.f32.mrb[0].mxu0
    %3138 = vmatprep.mubr.f32.mxu0 0.0
    %3139 = vmatmul.mubr.f32.gmra.mrb[0].mxu0 %v3051
    %v3140 = vpop.f32.mrb[0].mxu0
    %v3141 = vadd.f32 0.0, %v3140
    %v3142 = vpop.f32.mrb[0].mxu0
    %3143 = vmatprep.mubr.f32.mxu0 0.0
    %3144 = vmatmul.mubr.f32.gmra.mrb[0].mxu0 %v3054
    %v3145 = vpop.f32.mrb[0].mxu0
    %v3146 = vadd.f32 0.0, %v3145
    %v3147 = vpop.f32.mrb[0].mxu0
    %3148 = vmatprep.mubr.f32.mxu0 0.0
    %3149 = vmatmul.mubr.f32.gmra.mrb[0].mxu0 %v3057
    %v3150 = vpop.f32.mrb[0].mxu0
    %v3151 = vadd.f32 0.0, %v3150
    %v3152 = vpop.f32.mrb[0].mxu0
    %3153 = vdwg.mxu0
    %3154 = vrot.lane.b32.xlu0 %v2468, 112
    %v3155 = vpop.permute.xlu0 %3154
    %3156 = vrot.lane.b32.xlu0 %v2469, 112
    %v3157 = vpop.permute.xlu0 %3156
    %3158 = vrot.lane.b32.xlu0 %v2470, 112
    %v3159 = vpop.permute.xlu0 %3158
    %3160 = vrot.lane.b32.xlu0 %v2471, 112
    %v3161 = vpop.permute.xlu0 %3160
    %3162 = vrot.lane.b32.xlu0 %v2472, 112
    %v3163 = vpop.permute.xlu0 %3162
    %3164 = vrot.lane.b32.xlu0 %v2473, 112
    %v3165 = vpop.permute.xlu0 %3164
    %3166 = vrot.lane.b32.xlu0 %v2446, 80
    %v3167 = vpop.permute.xlu0 %3166
    %3168 = vrot.lane.b32.xlu0 %v2449, 80
    %v3169 = vpop.permute.xlu0 %3168
    %3170 = vrot.lane.b32.xlu0 %v2454, 80
    %v3171 = vpop.permute.xlu0 %3170
    %3172 = vrot.lane.b32.xlu0 %v2457, 80
    %v3173 = vpop.permute.xlu0 %3172
    %3174 = vrot.lane.b32.xlu0 %v2462, 80
    %v3175 = vpop.permute.xlu0 %3174
    %3176 = vrot.lane.b32.xlu0 %v2465, 80
    %v3177 = vpop.permute.xlu0 %3176
    %v3178 = vsel %vm368, %v3155, 0
    %v3180 = vsel %vm368, %v3157, 0
    %v3182 = vsel %vm368, %v3159, 0
    %v3184 = vsel %vm368, %v3161, 0
    %v3186 = vsel %vm368, %v3163, 0
    %v3188 = vsel %vm368, %v3165, 0
    %v3190 = vsel %vm368, %v3167, 0
    %v3192 = vsel %vm368, %v3169, 0
    %v3194 = vsel %vm368, %v3171, 0
    %v3196 = vsel %vm368, %v3173, 0
    %v3198 = vsel %vm368, %v3175, 0
    %v3200 = vsel %vm368, %v3177, 0
    %3202 = vmatprep.subr.mxu0 0.0
    %3203 = vmatpush1.xpose.msra.mxu0 %v3190
    %3204 = vmatprep.subr.mxu0 0.0
    %3205 = vmatpush1.xpose.msra.mxu0 %v3192
    %3206 = vmatprep.subr.mxu0 0.0
    %3207 = vmatpush1.xpose.msra.mxu0 %v3194
    %3208 = vmatprep.subr.mxu0 0.0
    %3209 = vmatpush1.xpose.msra.mxu0 %v3196
    %3210 = vmatprep.subr.mxu0 0.0
    %3211 = vmatpush1.xpose.msra.mxu0 %v3198
    %3212 = vmatprep.subr.mxu0 0.0
    %3213 = vmatpush1.xpose.msra.mxu0 %v3200
    %3214 = vmatprep.subr.mxu0 0.0
    %3215 = vmatpush1.xpose.msra.mxu0 0.0
    %3216 = vmatprep.subr.mxu0 0.0
    %3217 = vmatpush1.xpose.msra.mxu0 0.0
    %3218 = vmatprep.subr.mxu0 0.0
    %3219 = vmatpush1.xpose.msra.mxu0 0.0
    %3220 = vmatprep.subr.mxu0 0.0
    %3221 = vmatpush1.xpose.msra.mxu0 0.0
    %3222 = vmatprep.subr.mxu0 0.0
    %3223 = vmatpush1.xpose.msra.mxu0 0.0
    %3224 = vmatprep.subr.mxu0 0.0
    %3225 = vmatpush1.xpose.msra.mxu0 0.0
    %3226 = vmatprep.subr.mxu0 0.0
    %3227 = vmatpush1.xpose.msra.mxu0 0.0
    %3228 = vmatprep.subr.mxu0 0.0
    %3229 = vmatpush1.xpose.msra.mxu0 0.0
    %3230 = vmatprep.subr.mxu0 0.0
    %3231 = vmatpush1.xpose.msra.mxu0 0.0
    %3232 = vmatprep.subr.mxu0 0.0
    %3233 = vmatpush1.xpose.msra.mxu0 0.0
    %3234 = vmatprep.subr.mxu0 0.0
    %3235 = vmatpush1.xpose.msra.mxu0 0.0
    %3236 = vmatprep.subr.mxu0 0.0
    %3237 = vmatpush1.xpose.msra.mxu0 0.0
    %3238 = vmatprep.subr.mxu0 0.0
    %3239 = vmatpush1.xpose.msra.mxu0 0.0
    %3240 = vmatprep.subr.mxu0 0.0
    %3241 = vmatpush1.xpose.msra.mxu0 0.0
    %3242 = vmatprep.subr.mxu0 0.0
    %3243 = vmatpush1.xpose.msra.mxu0 0.0
    %3244 = vmatprep.subr.mxu0 0.0
    %3245 = vmatpush1.xpose.msra.mxu0 0.0
    %3246 = vmatprep.subr.mxu0 0.0
    %3247 = vmatpush1.xpose.msra.mxu0 0.0
    %3248 = vmatprep.subr.mxu0 0.0
    %3249 = vmatpush1.xpose.msra.mxu0 0.0
    %3250 = vmatprep.subr.mxu0 0.0
    %3251 = vmatpush1.xpose.msra.mxu0 0.0
    %3252 = vmatprep.subr.mxu0 0.0
    %3253 = vmatpush1.xpose.msra.mxu0 0.0
    %3254 = vmatprep.subr.mxu0 0.0
    %3255 = vmatpush1.xpose.msra.mxu0 0.0
    %3256 = vmatprep.subr.mxu0 0.0
    %3257 = vmatpush1.xpose.msra.mxu0 0.0
    %3258 = vmatprep.subr.mxu0 0.0
    %3259 = vmatpush1.xpose.msra.mxu0 0.0
    %3260 = vmatprep.subr.mxu0 0.0
    %3261 = vmatpush1.xpose.msra.mxu0 0.0
    %3262 = vmatprep.subr.mxu0 0.0
    %3263 = vmatpush1.xpose.msra.mxu0 0.0
    %3264 = vmatprep.subr.mxu0 0.0
    %3265 = vmatpush1.xpose.msra.mxu0 0.0
    %3266 = vmatprep.mubr.f32.mxu0 0.0
    %3267 = vmatmul.mubr.f32.gmra.mrb[0].mxu0 %v3178
    %v3268 = vpop.f32.mrb[0].mxu0
    %v3269 = vadd.f32 %v23, %v3268
    %v3270 = vpop.f32.mrb[0].mxu0
    %3271 = vmatprep.mubr.f32.mxu0 0.0
    %3272 = vmatmul.mubr.f32.gmra.mrb[0].mxu0 %v3180
    %v3273 = vpop.f32.mrb[0].mxu0
    %v3274 = vadd.f32 %v23, %v3273
    %v3275 = vpop.f32.mrb[0].mxu0
    %3276 = vmatprep.mubr.f32.mxu0 0.0
    %3277 = vmatmul.mubr.f32.gmra.mrb[0].mxu0 %v3182
    %v3278 = vpop.f32.mrb[0].mxu0
    %v3279 = vadd.f32 %v23, %v3278
    %v3280 = vpop.f32.mrb[0].mxu0
    %3281 = vmatprep.mubr.f32.mxu0 0.0
    %3282 = vmatmul.mubr.f32.gmra.mrb[0].mxu0 %v3184
    %v3283 = vpop.f32.mrb[0].mxu0
    %v3284 = vadd.f32 %v28, %v3283
    %v3285 = vpop.f32.mrb[0].mxu0
    %3286 = vmatprep.mubr.f32.mxu0 0.0
    %3287 = vmatmul.mubr.f32.gmra.mrb[0].mxu0 %v3186
    %v3288 = vpop.f32.mrb[0].mxu0
    %v3289 = vadd.f32 %v28, %v3288
    %v3290 = vpop.f32.mrb[0].mxu0
    %3291 = vmatprep.mubr.f32.mxu0 0.0
    %3292 = vmatmul.mubr.f32.gmra.mrb[0].mxu0 %v3188
    %v3293 = vpop.f32.mrb[0].mxu0
    %v3294 = vadd.f32 %v28, %v3293
    %v3295 = vpop.f32.mrb[0].mxu0
    %3296 = vdwg.mxu0
    %v3297 = vsel %vm494, %v3269, -inf
    %3298 = vmax.xlane.f32.xlu0 %v3297
    %v3299 = vpop.xlane.xlu0 %3298
    %v3300 = vsel %vm494, %v3274, -inf
    %3301 = vmax.xlane.f32.xlu0 %v3300
    %v3302 = vpop.xlane.xlu0 %3301
    %v3303 = vsel %vm494, %v3279, -inf
    %3304 = vmax.xlane.f32.xlu0 %v3303
    %v3305 = vpop.xlane.xlu0 %3304
    %v3306 = vsel %vm494, %v3284, -inf
    %3307 = vmax.xlane.f32.xlu0 %v3306
    %v3308 = vpop.xlane.xlu0 %3307
    %v3309 = vsel %vm494, %v3289, -inf
    %3310 = vmax.xlane.f32.xlu0 %v3309
    %v3311 = vpop.xlane.xlu0 %3310
    %v3312 = vsel %vm494, %v3294, -inf
    %3313 = vmax.xlane.f32.xlu0 %v3312
    %v3314 = vpop.xlane.xlu0 %3313
    %v3315 = vsub.f32 %v3269, %v3299
    %v3316 = vsub.f32 %v3274, %v3302
    %v3317 = vsub.f32 %v3279, %v3305
    %v3318 = vsub.f32 %v3284, %v3308
    %v3319 = vsub.f32 %v3289, %v3311
    %v3320 = vsub.f32 %v3294, %v3314
    %v3321 = vmul.f32 %v3315, 1.442695
    %v3322 = vpow.pop %v3321
    %v3323 = vmul.f32 %v3316, 1.442695
    %v3324 = vpow.pop %v3323
    %v3325 = vmul.f32 %v3317, 1.442695
    %v3326 = vpow.pop %v3325
    %v3327 = vmul.f32 %v3318, 1.442695
    %v3328 = vpow.pop %v3327
    %v3329 = vmul.f32 %v3319, 1.442695
    %v3330 = vpow.pop %v3329
    %v3331 = vmul.f32 %v3320, 1.442695
    %v3332 = vpow.pop %v3331
    %v3333 = vsel %vm494, %v3322, 0.0
    %3334 = vadd.xlane.f32.xlu0 %v3333
    %v3335 = vpop.xlane.xlu0 %3334
    %v3336 = vsel %vm494, %v3324, 0.0
    %3337 = vadd.xlane.f32.xlu0 %v3336
    %v3338 = vpop.xlane.xlu0 %3337
    %v3339 = vsel %vm494, %v3326, 0.0
    %3340 = vadd.xlane.f32.xlu0 %v3339
    %v3341 = vpop.xlane.xlu0 %3340
    %v3342 = vsel %vm494, %v3328, 0.0
    %3343 = vadd.xlane.f32.xlu0 %v3342
    %v3344 = vpop.xlane.xlu0 %3343
    %v3345 = vsel %vm494, %v3330, 0.0
    %3346 = vadd.xlane.f32.xlu0 %v3345
    %v3347 = vpop.xlane.xlu0 %3346
    %v3348 = vsel %vm494, %v3332, 0.0
    %3349 = vadd.xlane.f32.xlu0 %v3348
    %v3350 = vpop.xlane.xlu0 %3349
    %v3351 = vrcp.pop %v3335
    %v3352 = vrcp.pop %v3338
    %v3353 = vrcp.pop %v3341
    %v3354 = vrcp.pop %v3344
    %v3355 = vrcp.pop %v3347
    %v3356 = vrcp.pop %v3350
    %v3357 = vmul.f32 %v3322, %v3351
    %v3358 = vmul.f32 %v3324, %v3352
    %v3359 = vmul.f32 %v3326, %v3353
    %v3360 = vmul.f32 %v3328, %v3354
    %v3361 = vmul.f32 %v3330, %v3355
    %v3362 = vmul.f32 %v3332, %v3356
    %3363 = vrot.lane.b32.xlu0 %v2446, 48
    %v3364 = vpop.permute.xlu0 %3363
    %3365 = vrot.lane.b32.xlu0 %v2449, 48
    %v3366 = vpop.permute.xlu0 %3365
    %3367 = vrot.lane.b32.xlu0 %v2454, 48
    %v3368 = vpop.permute.xlu0 %3367
    %3369 = vrot.lane.b32.xlu0 %v2457, 48
    %v3370 = vpop.permute.xlu0 %3369
    %3371 = vrot.lane.b32.xlu0 %v2462, 48
    %v3372 = vpop.permute.xlu0 %3371
    %3373 = vrot.lane.b32.xlu0 %v2465, 48
    %v3374 = vpop.permute.xlu0 %3373
    %v3382 = vsel %vm494, %v3357, 0
    %v3385 = vsel %vm494, %v3358, 0
    %v3388 = vsel %vm494, %v3359, 0
    %v3391 = vsel %vm494, %v3360, 0
    %v3394 = vsel %vm494, %v3361, 0
    %v3397 = vsel %vm494, %v3362, 0
    %3399 = vmatprep.subr.mxu0 0.0
    %3400 = vmatpush1.msra.mxu0 %v3364
    %3401 = vmatprep.subr.mxu0 0.0
    %3402 = vmatpush1.msra.mxu0 %v3366
    %3403 = vmatprep.subr.mxu0 0.0
    %3404 = vmatpush1.msra.mxu0 %v3368
    %3405 = vmatprep.subr.mxu0 0.0
    %3406 = vmatpush1.msra.mxu0 %v3370
    %3407 = vmatprep.subr.mxu0 0.0
    %3408 = vmatpush1.msra.mxu0 %v3372
    %3409 = vmatprep.subr.mxu0 0.0
    %3410 = vmatpush1.msra.mxu0 %v3374
    %3411 = vmatprep.subr.mxu0 0.0
    %3412 = vmatpush1.msra.mxu0 0.0
    %3413 = vmatprep.subr.mxu0 0.0
    %3414 = vmatpush1.msra.mxu0 0.0
    %3415 = vmatprep.subr.mxu0 0.0
    %3416 = vmatpush1.msra.mxu0 0.0
    %3417 = vmatprep.subr.mxu0 0.0
    %3418 = vmatpush1.msra.mxu0 0.0
    %3419 = vmatprep.subr.mxu0 0.0
    %3420 = vmatpush1.msra.mxu0 0.0
    %3421 = vmatprep.subr.mxu0 0.0
    %3422 = vmatpush1.msra.mxu0 0.0
    %3423 = vmatprep.subr.mxu0 0.0
    %3424 = vmatpush1.msra.mxu0 0.0
    %3425 = vmatprep.subr.mxu0 0.0
    %3426 = vmatpush1.msra.mxu0 0.0
    %3427 = vmatprep.subr.mxu0 0.0
    %3428 = vmatpush1.msra.mxu0 0.0
    %3429 = vmatprep.subr.mxu0 0.0
    %3430 = vmatpush1.msra.mxu0 0.0
    %3431 = vmatprep.subr.mxu0 0.0
    %3432 = vmatpush1.msra.mxu0 0.0
    %3433 = vmatprep.subr.mxu0 0.0
    %3434 = vmatpush1.msra.mxu0 0.0
    %3435 = vmatprep.subr.mxu0 0.0
    %3436 = vmatpush1.msra.mxu0 0.0
    %3437 = vmatprep.subr.mxu0 0.0
    %3438 = vmatpush1.msra.mxu0 0.0
    %3439 = vmatprep.subr.mxu0 0.0
    %3440 = vmatpush1.msra.mxu0 0.0
    %3441 = vmatprep.subr.mxu0 0.0
    %3442 = vmatpush1.msra.mxu0 0.0
    %3443 = vmatprep.subr.mxu0 0.0
    %3444 = vmatpush1.msra.mxu0 0.0
    %3445 = vmatprep.subr.mxu0 0.0
    %3446 = vmatpush1.msra.mxu0 0.0
    %3447 = vmatprep.subr.mxu0 0.0
    %3448 = vmatpush1.msra.mxu0 0.0
    %3449 = vmatprep.subr.mxu0 0.0
    %3450 = vmatpush1.msra.mxu0 0.0
    %3451 = vmatprep.subr.mxu0 0.0
    %3452 = vmatpush1.msra.mxu0 0.0
    %3453 = vmatprep.subr.mxu0 0.0
    %3454 = vmatpush1.msra.mxu0 0.0
    %3455 = vmatprep.subr.mxu0 0.0
    %3456 = vmatpush1.msra.mxu0 0.0
    %3457 = vmatprep.subr.mxu0 0.0
    %3458 = vmatpush1.msra.mxu0 0.0
    %3459 = vmatprep.subr.mxu0 0.0
    %3460 = vmatpush1.msra.mxu0 0.0
    %3461 = vmatprep.subr.mxu0 0.0
    %3462 = vmatpush1.msra.mxu0 0.0
    %3463 = vmatprep.mubr.f32.mxu0 0.0
    %3464 = vmatmul.mubr.f32.gmra.mrb[0].mxu0 %v3382
    %v3465 = vpop.f32.mrb[0].mxu0
    %v3466 = vadd.f32 0.0, %v3465
    %v3467 = vpop.f32.mrb[0].mxu0
    %3468 = vmatprep.mubr.f32.mxu0 0.0
    %3469 = vmatmul.mubr.f32.gmra.mrb[0].mxu0 %v3385
    %v3470 = vpop.f32.mrb[0].mxu0
    %v3471 = vadd.f32 0.0, %v3470
    %v3472 = vpop.f32.mrb[0].mxu0
    %3473 = vmatprep.mubr.f32.mxu0 0.0
    %3474 = vmatmul.mubr.f32.gmra.mrb[0].mxu0 %v3388
    %v3475 = vpop.f32.mrb[0].mxu0
    %v3476 = vadd.f32 0.0, %v3475
    %v3477 = vpop.f32.mrb[0].mxu0
    %3478 = vmatprep.mubr.f32.mxu0 0.0
    %3479 = vmatmul.mubr.f32.gmra.mrb[0].mxu0 %v3391
    %v3480 = vpop.f32.mrb[0].mxu0
    %v3481 = vadd.f32 0.0, %v3480
    %v3482 = vpop.f32.mrb[0].mxu0
    %3483 = vmatprep.mubr.f32.mxu0 0.0
    %3484 = vmatmul.mubr.f32.gmra.mrb[0].mxu0 %v3394
    %v3485 = vpop.f32.mrb[0].mxu0
    %v3486 = vadd.f32 0.0, %v3485
    %v3487 = vpop.f32.mrb[0].mxu0
    %3488 = vmatprep.mubr.f32.mxu0 0.0
    %3489 = vmatmul.mubr.f32.gmra.mrb[0].mxu0 %v3397
    %v3490 = vpop.f32.mrb[0].mxu0
    %v3491 = vadd.f32 0.0, %v3490
    %v3492 = vpop.f32.mrb[0].mxu0
    %3493 = vdwg.mxu0
    %3494 = vrot.lane.b32.xlu0 %v2468, 104
    %v3495 = vpop.permute.xlu0 %3494
    %3496 = vrot.lane.b32.xlu0 %v2469, 104
    %v3497 = vpop.permute.xlu0 %3496
    %3498 = vrot.lane.b32.xlu0 %v2470, 104
    %v3499 = vpop.permute.xlu0 %3498
    %3500 = vrot.lane.b32.xlu0 %v2471, 104
    %v3501 = vpop.permute.xlu0 %3500
    %3502 = vrot.lane.b32.xlu0 %v2472, 104
    %v3503 = vpop.permute.xlu0 %3502
    %3504 = vrot.lane.b32.xlu0 %v2473, 104
    %v3505 = vpop.permute.xlu0 %3504
    %3506 = vrot.lane.b32.xlu0 %v2446, 72
    %v3507 = vpop.permute.xlu0 %3506
    %3508 = vrot.lane.b32.xlu0 %v2449, 72
    %v3509 = vpop.permute.xlu0 %3508
    %3510 = vrot.lane.b32.xlu0 %v2454, 72
    %v3511 = vpop.permute.xlu0 %3510
    %3512 = vrot.lane.b32.xlu0 %v2457, 72
    %v3513 = vpop.permute.xlu0 %3512
    %3514 = vrot.lane.b32.xlu0 %v2462, 72
    %v3515 = vpop.permute.xlu0 %3514
    %3516 = vrot.lane.b32.xlu0 %v2465, 72
    %v3517 = vpop.permute.xlu0 %3516
    %v3518 = vsel %vm368, %v3495, 0
    %v3520 = vsel %vm368, %v3497, 0
    %v3522 = vsel %vm368, %v3499, 0
    %v3524 = vsel %vm368, %v3501, 0
    %v3526 = vsel %vm368, %v3503, 0
    %v3528 = vsel %vm368, %v3505, 0
    %v3530 = vsel %vm368, %v3507, 0
    %v3532 = vsel %vm368, %v3509, 0
    %v3534 = vsel %vm368, %v3511, 0
    %v3536 = vsel %vm368, %v3513, 0
    %v3538 = vsel %vm368, %v3515, 0
    %v3540 = vsel %vm368, %v3517, 0
    %3542 = vmatprep.subr.mxu0 0.0
    %3543 = vmatpush1.xpose.msra.mxu0 %v3530
    %3544 = vmatprep.subr.mxu0 0.0
    %3545 = vmatpush1.xpose.msra.mxu0 %v3532
    %3546 = vmatprep.subr.mxu0 0.0
    %3547 = vmatpush1.xpose.msra.mxu0 %v3534
    %3548 = vmatprep.subr.mxu0 0.0
    %3549 = vmatpush1.xpose.msra.mxu0 %v3536
    %3550 = vmatprep.subr.mxu0 0.0
    %3551 = vmatpush1.xpose.msra.mxu0 %v3538
    %3552 = vmatprep.subr.mxu0 0.0
    %3553 = vmatpush1.xpose.msra.mxu0 %v3540
    %3554 = vmatprep.subr.mxu0 0.0
    %3555 = vmatpush1.xpose.msra.mxu0 0.0
    %3556 = vmatprep.subr.mxu0 0.0
    %3557 = vmatpush1.xpose.msra.mxu0 0.0
    %3558 = vmatprep.subr.mxu0 0.0
    %3559 = vmatpush1.xpose.msra.mxu0 0.0
    %3560 = vmatprep.subr.mxu0 0.0
    %3561 = vmatpush1.xpose.msra.mxu0 0.0
    %3562 = vmatprep.subr.mxu0 0.0
    %3563 = vmatpush1.xpose.msra.mxu0 0.0
    %3564 = vmatprep.subr.mxu0 0.0
    %3565 = vmatpush1.xpose.msra.mxu0 0.0
    %3566 = vmatprep.subr.mxu0 0.0
    %3567 = vmatpush1.xpose.msra.mxu0 0.0
    %3568 = vmatprep.subr.mxu0 0.0
    %3569 = vmatpush1.xpose.msra.mxu0 0.0
    %3570 = vmatprep.subr.mxu0 0.0
    %3571 = vmatpush1.xpose.msra.mxu0 0.0
    %3572 = vmatprep.subr.mxu0 0.0
    %3573 = vmatpush1.xpose.msra.mxu0 0.0
    %3574 = vmatprep.subr.mxu0 0.0
    %3575 = vmatpush1.xpose.msra.mxu0 0.0
    %3576 = vmatprep.subr.mxu0 0.0
    %3577 = vmatpush1.xpose.msra.mxu0 0.0
    %3578 = vmatprep.subr.mxu0 0.0
    %3579 = vmatpush1.xpose.msra.mxu0 0.0
    %3580 = vmatprep.subr.mxu0 0.0
    %3581 = vmatpush1.xpose.msra.mxu0 0.0
    %3582 = vmatprep.subr.mxu0 0.0
    %3583 = vmatpush1.xpose.msra.mxu0 0.0
    %3584 = vmatprep.subr.mxu0 0.0
    %3585 = vmatpush1.xpose.msra.mxu0 0.0
    %3586 = vmatprep.subr.mxu0 0.0
    %3587 = vmatpush1.xpose.msra.mxu0 0.0
    %3588 = vmatprep.subr.mxu0 0.0
    %3589 = vmatpush1.xpose.msra.mxu0 0.0
    %3590 = vmatprep.subr.mxu0 0.0
    %3591 = vmatpush1.xpose.msra.mxu0 0.0
    %3592 = vmatprep.subr.mxu0 0.0
    %3593 = vmatpush1.xpose.msra.mxu0 0.0
    %3594 = vmatprep.subr.mxu0 0.0
    %3595 = vmatpush1.xpose.msra.mxu0 0.0
    %3596 = vmatprep.subr.mxu0 0.0
    %3597 = vmatpush1.xpose.msra.mxu0 0.0
    %3598 = vmatprep.subr.mxu0 0.0
    %3599 = vmatpush1.xpose.msra.mxu0 0.0
    %3600 = vmatprep.subr.mxu0 0.0
    %3601 = vmatpush1.xpose.msra.mxu0 0.0
    %3602 = vmatprep.subr.mxu0 0.0
    %3603 = vmatpush1.xpose.msra.mxu0 0.0
    %3604 = vmatprep.subr.mxu0 0.0
    %3605 = vmatpush1.xpose.msra.mxu0 0.0
    %3606 = vmatprep.mubr.f32.mxu0 0.0
    %3607 = vmatmul.mubr.f32.gmra.mrb[0].mxu0 %v3518
    %v3608 = vpop.f32.mrb[0].mxu0
    %v3609 = vadd.f32 %v23, %v3608
    %v3610 = vpop.f32.mrb[0].mxu0
    %3611 = vmatprep.mubr.f32.mxu0 0.0
    %3612 = vmatmul.mubr.f32.gmra.mrb[0].mxu0 %v3520
    %v3613 = vpop.f32.mrb[0].mxu0
    %v3614 = vadd.f32 %v23, %v3613
    %v3615 = vpop.f32.mrb[0].mxu0
    %3616 = vmatprep.mubr.f32.mxu0 0.0
    %3617 = vmatmul.mubr.f32.gmra.mrb[0].mxu0 %v3522
    %v3618 = vpop.f32.mrb[0].mxu0
    %v3619 = vadd.f32 %v23, %v3618
    %v3620 = vpop.f32.mrb[0].mxu0
    %3621 = vmatprep.mubr.f32.mxu0 0.0
    %3622 = vmatmul.mubr.f32.gmra.mrb[0].mxu0 %v3524
    %v3623 = vpop.f32.mrb[0].mxu0
    %v3624 = vadd.f32 %v28, %v3623
    %v3625 = vpop.f32.mrb[0].mxu0
    %3626 = vmatprep.mubr.f32.mxu0 0.0
    %3627 = vmatmul.mubr.f32.gmra.mrb[0].mxu0 %v3526
    %v3628 = vpop.f32.mrb[0].mxu0
    %v3629 = vadd.f32 %v28, %v3628
    %v3630 = vpop.f32.mrb[0].mxu0
    %3631 = vmatprep.mubr.f32.mxu0 0.0
    %3632 = vmatmul.mubr.f32.gmra.mrb[0].mxu0 %v3528
    %v3633 = vpop.f32.mrb[0].mxu0
    %v3634 = vadd.f32 %v28, %v3633
    %v3635 = vpop.f32.mrb[0].mxu0
    %3636 = vdwg.mxu0
    %v3637 = vsel %vm494, %v3609, -inf
    %3638 = vmax.xlane.f32.xlu0 %v3637
    %v3639 = vpop.xlane.xlu0 %3638
    %v3640 = vsel %vm494, %v3614, -inf
    %3641 = vmax.xlane.f32.xlu0 %v3640
    %v3642 = vpop.xlane.xlu0 %3641
    %v3643 = vsel %vm494, %v3619, -inf
    %3644 = vmax.xlane.f32.xlu0 %v3643
    %v3645 = vpop.xlane.xlu0 %3644
    %v3646 = vsel %vm494, %v3624, -inf
    %3647 = vmax.xlane.f32.xlu0 %v3646
    %v3648 = vpop.xlane.xlu0 %3647
    %v3649 = vsel %vm494, %v3629, -inf
    %3650 = vmax.xlane.f32.xlu0 %v3649
    %v3651 = vpop.xlane.xlu0 %3650
    %v3652 = vsel %vm494, %v3634, -inf
    %3653 = vmax.xlane.f32.xlu0 %v3652
    %v3654 = vpop.xlane.xlu0 %3653
    %v3655 = vsub.f32 %v3609, %v3639
    %v3656 = vsub.f32 %v3614, %v3642
    %v3657 = vsub.f32 %v3619, %v3645
    %v3658 = vsub.f32 %v3624, %v3648
    %v3659 = vsub.f32 %v3629, %v3651
    %v3660 = vsub.f32 %v3634, %v3654
    %v3661 = vmul.f32 %v3655, 1.442695
    %v3662 = vpow.pop %v3661
    %v3663 = vmul.f32 %v3656, 1.442695
    %v3664 = vpow.pop %v3663
    %v3665 = vmul.f32 %v3657, 1.442695
    %v3666 = vpow.pop %v3665
    %v3667 = vmul.f32 %v3658, 1.442695
    %v3668 = vpow.pop %v3667
    %v3669 = vmul.f32 %v3659, 1.442695
    %v3670 = vpow.pop %v3669
    %v3671 = vmul.f32 %v3660, 1.442695
    %v3672 = vpow.pop %v3671
    %v3673 = vsel %vm494, %v3662, 0.0
    %3674 = vadd.xlane.f32.xlu0 %v3673
    %v3675 = vpop.xlane.xlu0 %3674
    %v3676 = vsel %vm494, %v3664, 0.0
    %3677 = vadd.xlane.f32.xlu0 %v3676
    %v3678 = vpop.xlane.xlu0 %3677
    %v3679 = vsel %vm494, %v3666, 0.0
    %3680 = vadd.xlane.f32.xlu0 %v3679
    %v3681 = vpop.xlane.xlu0 %3680
    %v3682 = vsel %vm494, %v3668, 0.0
    %3683 = vadd.xlane.f32.xlu0 %v3682
    %v3684 = vpop.xlane.xlu0 %3683
    %v3685 = vsel %vm494, %v3670, 0.0
    %3686 = vadd.xlane.f32.xlu0 %v3685
    %v3687 = vpop.xlane.xlu0 %3686
    %v3688 = vsel %vm494, %v3672, 0.0
    %3689 = vadd.xlane.f32.xlu0 %v3688
    %v3690 = vpop.xlane.xlu0 %3689
    %v3691 = vrcp.pop %v3675
    %v3692 = vrcp.pop %v3678
    %v3693 = vrcp.pop %v3681
    %v3694 = vrcp.pop %v3684
    %v3695 = vrcp.pop %v3687
    %v3696 = vrcp.pop %v3690
    %v3697 = vmul.f32 %v3662, %v3691
    %v3698 = vmul.f32 %v3664, %v3692
    %v3699 = vmul.f32 %v3666, %v3693
    %v3700 = vmul.f32 %v3668, %v3694
    %v3701 = vmul.f32 %v3670, %v3695
    %v3702 = vmul.f32 %v3672, %v3696
    %3703 = vrot.lane.b32.xlu0 %v2446, 40
    %v3704 = vpop.permute.xlu0 %3703
    %3705 = vrot.lane.b32.xlu0 %v2449, 40
    %v3706 = vpop.permute.xlu0 %3705
    %3707 = vrot.lane.b32.xlu0 %v2454, 40
    %v3708 = vpop.permute.xlu0 %3707
    %3709 = vrot.lane.b32.xlu0 %v2457, 40
    %v3710 = vpop.permute.xlu0 %3709
    %3711 = vrot.lane.b32.xlu0 %v2462, 40
    %v3712 = vpop.permute.xlu0 %3711
    %3713 = vrot.lane.b32.xlu0 %v2465, 40
    %v3714 = vpop.permute.xlu0 %3713
    %v3722 = vsel %vm494, %v3697, 0
    %v3725 = vsel %vm494, %v3698, 0
    %v3728 = vsel %vm494, %v3699, 0
    %v3731 = vsel %vm494, %v3700, 0
    %v3734 = vsel %vm494, %v3701, 0
    %v3737 = vsel %vm494, %v3702, 0
    %3739 = vmatprep.subr.mxu0 0.0
    %3740 = vmatpush1.msra.mxu0 %v3704
    %3741 = vmatprep.subr.mxu0 0.0
    %3742 = vmatpush1.msra.mxu0 %v3706
    %3743 = vmatprep.subr.mxu0 0.0
    %3744 = vmatpush1.msra.mxu0 %v3708
    %3745 = vmatprep.subr.mxu0 0.0
    %3746 = vmatpush1.msra.mxu0 %v3710
    %3747 = vmatprep.subr.mxu0 0.0
    %3748 = vmatpush1.msra.mxu0 %v3712
    %3749 = vmatprep.subr.mxu0 0.0
    %3750 = vmatpush1.msra.mxu0 %v3714
    %3751 = vmatprep.subr.mxu0 0.0
    %3752 = vmatpush1.msra.mxu0 0.0
    %3753 = vmatprep.subr.mxu0 0.0
    %3754 = vmatpush1.msra.mxu0 0.0
    %3755 = vmatprep.subr.mxu0 0.0
    %3756 = vmatpush1.msra.mxu0 0.0
    %3757 = vmatprep.subr.mxu0 0.0
    %3758 = vmatpush1.msra.mxu0 0.0
    %3759 = vmatprep.subr.mxu0 0.0
    %3760 = vmatpush1.msra.mxu0 0.0
    %3761 = vmatprep.subr.mxu0 0.0
    %3762 = vmatpush1.msra.mxu0 0.0
    %3763 = vmatprep.subr.mxu0 0.0
    %3764 = vmatpush1.msra.mxu0 0.0
    %3765 = vmatprep.subr.mxu0 0.0
    %3766 = vmatpush1.msra.mxu0 0.0
    %3767 = vmatprep.subr.mxu0 0.0
    %3768 = vmatpush1.msra.mxu0 0.0
    %3769 = vmatprep.subr.mxu0 0.0
    %3770 = vmatpush1.msra.mxu0 0.0
    %3771 = vmatprep.subr.mxu0 0.0
    %3772 = vmatpush1.msra.mxu0 0.0
    %3773 = vmatprep.subr.mxu0 0.0
    %3774 = vmatpush1.msra.mxu0 0.0
    %3775 = vmatprep.subr.mxu0 0.0
    %3776 = vmatpush1.msra.mxu0 0.0
    %3777 = vmatprep.subr.mxu0 0.0
    %3778 = vmatpush1.msra.mxu0 0.0
    %3779 = vmatprep.subr.mxu0 0.0
    %3780 = vmatpush1.msra.mxu0 0.0
    %3781 = vmatprep.subr.mxu0 0.0
    %3782 = vmatpush1.msra.mxu0 0.0
    %3783 = vmatprep.subr.mxu0 0.0
    %3784 = vmatpush1.msra.mxu0 0.0
    %3785 = vmatprep.subr.mxu0 0.0
    %3786 = vmatpush1.msra.mxu0 0.0
    %3787 = vmatprep.subr.mxu0 0.0
    %3788 = vmatpush1.msra.mxu0 0.0
    %3789 = vmatprep.subr.mxu0 0.0
    %3790 = vmatpush1.msra.mxu0 0.0
    %3791 = vmatprep.subr.mxu0 0.0
    %3792 = vmatpush1.msra.mxu0 0.0
    %3793 = vmatprep.subr.mxu0 0.0
    %3794 = vmatpush1.msra.mxu0 0.0
    %3795 = vmatprep.subr.mxu0 0.0
    %3796 = vmatpush1.msra.mxu0 0.0
    %3797 = vmatprep.subr.mxu0 0.0
    %3798 = vmatpush1.msra.mxu0 0.0
    %3799 = vmatprep.subr.mxu0 0.0
    %3800 = vmatpush1.msra.mxu0 0.0
    %3801 = vmatprep.subr.mxu0 0.0
    %3802 = vmatpush1.msra.mxu0 0.0
    %3803 = vmatprep.mubr.f32.mxu0 0.0
    %3804 = vmatmul.mubr.f32.gmra.mrb[0].mxu0 %v3722
    %v3805 = vpop.f32.mrb[0].mxu0
    %v3806 = vadd.f32 0.0, %v3805
    %v3807 = vpop.f32.mrb[0].mxu0
    %3808 = vmatprep.mubr.f32.mxu0 0.0
    %3809 = vmatmul.mubr.f32.gmra.mrb[0].mxu0 %v3725
    %v3810 = vpop.f32.mrb[0].mxu0
    %v3811 = vadd.f32 0.0, %v3810
    %v3812 = vpop.f32.mrb[0].mxu0
    %3813 = vmatprep.mubr.f32.mxu0 0.0
    %3814 = vmatmul.mubr.f32.gmra.mrb[0].mxu0 %v3728
    %v3815 = vpop.f32.mrb[0].mxu0
    %v3816 = vadd.f32 0.0, %v3815
    %v3817 = vpop.f32.mrb[0].mxu0
    %3818 = vmatprep.mubr.f32.mxu0 0.0
    %3819 = vmatmul.mubr.f32.gmra.mrb[0].mxu0 %v3731
    %v3820 = vpop.f32.mrb[0].mxu0
    %v3821 = vadd.f32 0.0, %v3820
    %v3822 = vpop.f32.mrb[0].mxu0
    %3823 = vmatprep.mubr.f32.mxu0 0.0
    %3824 = vmatmul.mubr.f32.gmra.mrb[0].mxu0 %v3734
    %v3825 = vpop.f32.mrb[0].mxu0
    %v3826 = vadd.f32 0.0, %v3825
    %v3827 = vpop.f32.mrb[0].mxu0
    %3828 = vmatprep.mubr.f32.mxu0 0.0
    %3829 = vmatmul.mubr.f32.gmra.mrb[0].mxu0 %v3737
    %v3830 = vpop.f32.mrb[0].mxu0
    %v3831 = vadd.f32 0.0, %v3830
    %v3832 = vpop.f32.mrb[0].mxu0
    %3833 = vdwg.mxu0
    %3840 = vrot.lane.b32.xlu0 %v3126, 8
    %v3841 = vpop.permute.xlu0 %3840
    %3842 = vrot.lane.b32.xlu0 %v3131, 8
    %v3843 = vpop.permute.xlu0 %3842
    %3844 = vrot.lane.b32.xlu0 %v3136, 8
    %v3845 = vpop.permute.xlu0 %3844
    %3846 = vrot.lane.b32.xlu0 %v3141, 8
    %v3847 = vpop.permute.xlu0 %3846
    %3848 = vrot.lane.b32.xlu0 %v3146, 8
    %v3849 = vpop.permute.xlu0 %3848
    %3850 = vrot.lane.b32.xlu0 %v3151, 8
    %v3851 = vpop.permute.xlu0 %3850
    %3864 = vrot.lane.b32.xlu0 %v3466, 16
    %v3865 = vpop.permute.xlu0 %3864
    %3866 = vrot.lane.b32.xlu0 %v3471, 16
    %v3867 = vpop.permute.xlu0 %3866
    %3868 = vrot.lane.b32.xlu0 %v3476, 16
    %v3869 = vpop.permute.xlu0 %3868
    %3870 = vrot.lane.b32.xlu0 %v3481, 16
    %v3871 = vpop.permute.xlu0 %3870
    %3872 = vrot.lane.b32.xlu0 %v3486, 16
    %v3873 = vpop.permute.xlu0 %3872
    %3874 = vrot.lane.b32.xlu0 %v3491, 16
    %v3875 = vpop.permute.xlu0 %3874
    %3888 = vrot.lane.b32.xlu0 %v3806, 24
    %v3889 = vpop.permute.xlu0 %3888
    %3890 = vrot.lane.b32.xlu0 %v3811, 24
    %v3891 = vpop.permute.xlu0 %3890
    %3892 = vrot.lane.b32.xlu0 %v3816, 24
    %v3893 = vpop.permute.xlu0 %3892
    %3894 = vrot.lane.b32.xlu0 %v3821, 24
    %v3895 = vpop.permute.xlu0 %3894
    %3896 = vrot.lane.b32.xlu0 %v3826, 24
    %v3897 = vpop.permute.xlu0 %3896
    %3898 = vrot.lane.b32.xlu0 %v3831, 24
    %v3899 = vpop.permute.xlu0 %3898
    %v3906 = vsel %vm368, %v2786, %v3841
    %v3907 = vsel %vm368, %v2791, %v3843
    %v3908 = vsel %vm368, %v2796, %v3845
    %v3909 = vsel %vm368, %v2801, %v3847
    %v3910 = vsel %vm368, %v2806, %v3849
    %v3911 = vsel %vm368, %v2811, %v3851
    %v3912 = vsel %vm1790, %v3906, %v3865
    %v3913 = vsel %vm1790, %v3907, %v3867
    %v3914 = vsel %vm1790, %v3908, %v3869
    %v3915 = vsel %vm1790, %v3909, %v3871
    %v3916 = vsel %vm1790, %v3910, %v3873
    %v3917 = vsel %vm1790, %v3911, %v3875
    %v3918 = vsel %vm22, %v3912, %v3889
    %v3919 = vsel %vm22, %v3913, %v3891
    %v3920 = vsel %vm22, %v3914, %v3893
    %v3921 = vsel %vm22, %v3915, %v3895
    %v3922 = vsel %vm22, %v3916, %v3897
    %v3923 = vsel %vm22, %v3917, %v3899
    %v3924 = vpack.c.bf16 %v3919, %v3918
    %v3925 = vpack.c.bf16 %v3921, %v3920
    %v3926 = vpack.c.bf16 %v3923, %v3922
    %v3927 = vld [vmem:[%s1 + $0xa0] sm:$0xf]
    %v3928 = vld [vmem:[%s1 + $0xa4] sm:$0xf]
    %v3929 = vld [vmem:[%s1 + $0xa8] sm:$0xf]
    %v3930 = vld [vmem:[%s1 + $0xac] sm:$0xf]
    %v3931 = vld [vmem:[%s2 + $0x23] sm:$0x1]
    %v3932 = vlaneseq
    %v3933 = vshrl.u32 %v3932, 7
    %v3934 = vsub.s32 0, %v3933
    %v3935 = vrot.slane %v3931, %v3934
    %v3940 = vunpack.c.l.b16 %v3927
    %v3941 = vunpack.c.l.b16 %v3928
    %v3942 = vunpack.c.l.b16 %v3929
    %v3943 = vunpack.c.l.b16 %v3930
    %v3944 = vpack.c.b16 %v3941, %v3940
    %v3945 = vpack.c.b16 %v3943, %v3942
    %v3949 = vsel %vm154, %v3924, 0
    %v3952 = vsel %vm154, %v3925, 0
    %v3955 = vsel %vm154, %v3926, 0
    %3957 = vmatprep.subr.bf16.mxu0 0
    %3958 = vmatpush1.bf16.msra.mxu0 %v3944
    %3959 = vmatprep.subr.bf16.mxu0 0
    %3960 = vmatpush1.bf16.msra.mxu0 %v3945
    %3961 = vmatprep.subr.bf16.mxu0 0
    %3962 = vmatpush1.bf16.msra.mxu0 0
    %3963 = vmatprep.subr.bf16.mxu0 0
    %3964 = vmatpush1.bf16.msra.mxu0 0
    %3965 = vmatprep.subr.bf16.mxu0 0
    %3966 = vmatpush1.bf16.msra.mxu0 0
    %3967 = vmatprep.subr.bf16.mxu0 0
    %3968 = vmatpush1.bf16.msra.mxu0 0
    %3969 = vmatprep.subr.bf16.mxu0 0
    %3970 = vmatpush1.bf16.msra.mxu0 0
    %3971 = vmatprep.subr.bf16.mxu0 0
    %3972 = vmatpush1.bf16.msra.mxu0 0
    %3973 = vmatprep.subr.bf16.mxu0 0
    %3974 = vmatpush1.bf16.msra.mxu0 0
    %3975 = vmatprep.subr.bf16.mxu0 0
    %3976 = vmatpush1.bf16.msra.mxu0 0
    %3977 = vmatprep.subr.bf16.mxu0 0
    %3978 = vmatpush1.bf16.msra.mxu0 0
    %3979 = vmatprep.subr.bf16.mxu0 0
    %3980 = vmatpush1.bf16.msra.mxu0 0
    %3981 = vmatprep.subr.bf16.mxu0 0
    %3982 = vmatpush1.bf16.msra.mxu0 0
    %3983 = vmatprep.subr.bf16.mxu0 0
    %3984 = vmatpush1.bf16.msra.mxu0 0
    %3985 = vmatprep.subr.bf16.mxu0 0
    %3986 = vmatpush1.bf16.msra.mxu0 0
    %3987 = vmatprep.subr.bf16.mxu0 0
    %3988 = vmatpush1.bf16.msra.mxu0 0
    %3989 = vmatprep.mubr.bf16.mxu0 0
    %3990 = vmatmul.mubr.bf16.gmra.mrb[0].mxu0 %v3949
    %v3991 = vpop.f32.mrb[0].mxu0
    %v3992 = vadd.f32 %v3935, %v3991
    %v3993 = vpop.f32.mrb[0].mxu0
    %v3994 = vpop.f32.mrb[0].mxu0
    %v3995 = vadd.f32 %v3935, %v3994
    %v3996 = vpop.f32.mrb[0].mxu0
    %3997 = vmatprep.mubr.bf16.mxu0 0
    %3998 = vmatmul.mubr.bf16.gmra.mrb[0].mxu0 %v3952
    %v3999 = vpop.f32.mrb[0].mxu0
    %v4000 = vadd.f32 %v3935, %v3999
    %v4001 = vpop.f32.mrb[0].mxu0
    %v4002 = vpop.f32.mrb[0].mxu0
    %v4003 = vadd.f32 %v3935, %v4002
    %v4004 = vpop.f32.mrb[0].mxu0
    %4005 = vmatprep.mubr.bf16.mxu0 0
    %4006 = vmatmul.mubr.bf16.gmra.mrb[0].mxu0 %v3955
    %v4007 = vpop.f32.mrb[0].mxu0
    %v4008 = vadd.f32 %v3935, %v4007
    %v4009 = vpop.f32.mrb[0].mxu0
    %v4010 = vpop.f32.mrb[0].mxu0
    %v4011 = vadd.f32 %v3935, %v4010
    %v4012 = vpop.f32.mrb[0].mxu0
    %4013 = vdwg.mxu0
    %v4014 = vadd.f32 %v2272, %v3992
    %v4015 = vadd.f32 %v2273, %v3995
    %v4016 = vadd.f32 %v2274, %v4000
    %v4017 = vadd.f32 %v2275, %v4003
    %v4018 = vadd.f32 %v2276, %v4008
    %v4019 = vadd.f32 %v2277, %v4011
    %v4020 = vld [vmem:[%s2 + $0x24] sm:$0x1]
    %v4021 = vld [vmem:[%s2 + $0x25] sm:$0x1]
    %v4022 = vsel %vm154, %v4014, 0.0
    %4023 = vadd.xlane.f32.xlu0 %v4022
    %v4024 = vpop.xlane.xlu0 %4023
    %v4025 = vsel %vm154, %v4015, 0.0
    %4026 = vadd.xlane.f32.xlu0 %v4025
    %v4027 = vpop.xlane.xlu0 %4026
    %v4028 = vsel %vm154, %v4016, 0.0
    %4029 = vadd.xlane.f32.xlu0 %v4028
    %v4030 = vpop.xlane.xlu0 %4029
    %v4031 = vsel %vm154, %v4017, 0.0
    %4032 = vadd.xlane.f32.xlu0 %v4031
    %v4033 = vpop.xlane.xlu0 %4032
    %v4034 = vsel %vm154, %v4018, 0.0
    %4035 = vadd.xlane.f32.xlu0 %v4034
    %v4036 = vpop.xlane.xlu0 %4035
    %v4037 = vsel %vm154, %v4019, 0.0
    %4038 = vadd.xlane.f32.xlu0 %v4037
    %v4039 = vpop.xlane.xlu0 %4038
    %v4040 = vmul.f32 %v4024, %v173
    %v4041 = vmul.f32 %v4027, %v173
    %v4042 = vmul.f32 %v4030, %v173
    %v4043 = vmul.f32 %v4033, %v173
    %v4044 = vmul.f32 %v4036, %v173
    %v4045 = vmul.f32 %v4039, %v173
    %v4046 = vsub.f32 %v4014, %v4040
    %v4047 = vsub.f32 %v4015, %v4041
    %v4048 = vsub.f32 %v4016, %v4042
    %v4049 = vsub.f32 %v4017, %v4043
    %v4050 = vsub.f32 %v4018, %v4044
    %v4051 = vsub.f32 %v4019, %v4045
    %v4052 = vmul.f32 %v4046, %v4046
    %v4053 = vmul.f32 %v4047, %v4047
    %v4054 = vmul.f32 %v4048, %v4048
    %v4055 = vmul.f32 %v4049, %v4049
    %v4056 = vmul.f32 %v4050, %v4050
    %v4057 = vmul.f32 %v4051, %v4051
    %v4058 = vsel %vm154, %v4052, 0.0
    %4059 = vadd.xlane.f32.xlu0 %v4058
    %v4060 = vpop.xlane.xlu0 %4059
    %v4061 = vsel %vm154, %v4053, 0.0
    %4062 = vadd.xlane.f32.xlu0 %v4061
    %v4063 = vpop.xlane.xlu0 %4062
    %v4064 = vsel %vm154, %v4054, 0.0
    %4065 = vadd.xlane.f32.xlu0 %v4064
    %v4066 = vpop.xlane.xlu0 %4065
    %v4067 = vsel %vm154, %v4055, 0.0
    %4068 = vadd.xlane.f32.xlu0 %v4067
    %v4069 = vpop.xlane.xlu0 %4068
    %v4070 = vsel %vm154, %v4056, 0.0
    %4071 = vadd.xlane.f32.xlu0 %v4070
    %v4072 = vpop.xlane.xlu0 %4071
    %v4073 = vsel %vm154, %v4057, 0.0
    %4074 = vadd.xlane.f32.xlu0 %v4073
    %v4075 = vpop.xlane.xlu0 %4074
    %v4076 = vmul.f32 %v4060, %v173
    %v4077 = vmul.f32 %v4063, %v173
    %v4078 = vmul.f32 %v4066, %v173
    %v4079 = vmul.f32 %v4069, %v173
    %v4080 = vmul.f32 %v4072, %v173
    %v4081 = vmul.f32 %v4075, %v173
    %v4082 = vadd.f32 %v4076, 1e-05
    %v4083 = vadd.f32 %v4077, 1e-05
    %v4084 = vadd.f32 %v4078, 1e-05
    %v4085 = vadd.f32 %v4079, 1e-05
    %v4086 = vadd.f32 %v4080, 1e-05
    %v4087 = vadd.f32 %v4081, 1e-05
    %v4088 = vrsqrt.pop %v4082
    %v4089 = vrsqrt.pop %v4083
    %v4090 = vrsqrt.pop %v4084
    %v4091 = vrsqrt.pop %v4085
    %v4092 = vrsqrt.pop %v4086
    %v4093 = vrsqrt.pop %v4087
    %v4094 = vmul.f32 %v4046, %v4088
    %v4095 = vmul.f32 %v4047, %v4089
    %v4096 = vmul.f32 %v4048, %v4090
    %v4097 = vmul.f32 %v4049, %v4091
    %v4098 = vmul.f32 %v4050, %v4092
    %v4099 = vmul.f32 %v4051, %v4093
    %v4100 = vlaneseq
    %v4101 = vshrl.u32 %v4100, 7
    %v4102 = vsub.s32 0, %v4101
    %v4103 = vrot.slane %v4020, %v4102
    %v4104 = vmul.f32 %v4094, %v4103
    %v4105 = vmul.f32 %v4095, %v4103
    %v4106 = vmul.f32 %v4096, %v4103
    %v4107 = vmul.f32 %v4097, %v4103
    %v4108 = vmul.f32 %v4098, %v4103
    %v4109 = vmul.f32 %v4099, %v4103
    %v4110 = vlaneseq
    %v4111 = vshrl.u32 %v4110, 7
    %v4112 = vsub.s32 0, %v4111
    %v4113 = vrot.slane %v4021, %v4112
    %v4114 = vadd.f32 %v4104, %v4113
    %v4115 = vadd.f32 %v4105, %v4113
    %v4116 = vadd.f32 %v4106, %v4113
    %v4117 = vadd.f32 %v4107, %v4113
    %v4118 = vadd.f32 %v4108, %v4113
    %v4119 = vadd.f32 %v4109, %v4113
    %v4120 = vpack.c.bf16 %v4115, %v4114
    %v4121 = vpack.c.bf16 %v4117, %v4116
    %v4122 = vpack.c.bf16 %v4119, %v4118
    %v4123 = vld [vmem:[%s1 + $0xb0] sm:$0xf]
    %v4124 = vld [vmem:[%s1 + $0xb4] sm:$0xf]
    %v4125 = vld [vmem:[%s1 + $0xb8] sm:$0xf]
    %v4126 = vld [vmem:[%s1 + $0xbc] sm:$0xf]
    %v4127 = vld [vmem:[%s2 + $0x26] sm:$0x1]
    %v4128 = vlaneseq
    %v4129 = vshrl.u32 %v4128, 7
    %v4130 = vsub.s32 0, %v4129
    %v4131 = vrot.slane %v4127, %v4130
    %v4136 = vunpack.c.l.b16 %v4123
    %v4137 = vunpack.c.l.b16 %v4124
    %v4138 = vunpack.c.l.b16 %v4125
    %v4139 = vunpack.c.l.b16 %v4126
    %v4140 = vpack.c.b16 %v4137, %v4136
    %v4141 = vpack.c.b16 %v4139, %v4138
    %v4145 = vsel %vm154, %v4120, 0
    %v4148 = vsel %vm154, %v4121, 0
    %v4151 = vsel %vm154, %v4122, 0
    %4153 = vmatprep.subr.bf16.mxu0 0
    %4154 = vmatpush1.bf16.msra.mxu0 %v4140
    %4155 = vmatprep.subr.bf16.mxu0 0
    %4156 = vmatpush1.bf16.msra.mxu0 %v4141
    %4157 = vmatprep.subr.bf16.mxu0 0
    %4158 = vmatpush1.bf16.msra.mxu0 0
    %4159 = vmatprep.subr.bf16.mxu0 0
    %4160 = vmatpush1.bf16.msra.mxu0 0
    %4161 = vmatprep.subr.bf16.mxu0 0
    %4162 = vmatpush1.bf16.msra.mxu0 0
    %4163 = vmatprep.subr.bf16.mxu0 0
    %4164 = vmatpush1.bf16.msra.mxu0 0
    %4165 = vmatprep.subr.bf16.mxu0 0
    %4166 = vmatpush1.bf16.msra.mxu0 0
    %4167 = vmatprep.subr.bf16.mxu0 0
    %4168 = vmatpush1.bf16.msra.mxu0 0
    %4169 = vmatprep.subr.bf16.mxu0 0
    %4170 = vmatpush1.bf16.msra.mxu0 0
    %4171 = vmatprep.subr.bf16.mxu0 0
    %4172 = vmatpush1.bf16.msra.mxu0 0
    %4173 = vmatprep.subr.bf16.mxu0 0
    %4174 = vmatpush1.bf16.msra.mxu0 0
    %4175 = vmatprep.subr.bf16.mxu0 0
    %4176 = vmatpush1.bf16.msra.mxu0 0
    %4177 = vmatprep.subr.bf16.mxu0 0
    %4178 = vmatpush1.bf16.msra.mxu0 0
    %4179 = vmatprep.subr.bf16.mxu0 0
    %4180 = vmatpush1.bf16.msra.mxu0 0
    %4181 = vmatprep.subr.bf16.mxu0 0
    %4182 = vmatpush1.bf16.msra.mxu0 0
    %4183 = vmatprep.subr.bf16.mxu0 0
    %4184 = vmatpush1.bf16.msra.mxu0 0
    %4185 = vmatprep.mubr.bf16.mxu0 0
    %4186 = vmatmul.mubr.bf16.gmra.mrb[0].mxu0 %v4145
    %v4187 = vpop.f32.mrb[0].mxu0
    %v4188 = vadd.f32 %v4131, %v4187
    %v4189 = vpop.f32.mrb[0].mxu0
    %v4190 = vpop.f32.mrb[0].mxu0
    %v4191 = vadd.f32 %v4131, %v4190
    %v4192 = vpop.f32.mrb[0].mxu0
    %4193 = vmatprep.mubr.bf16.mxu0 0
    %4194 = vmatmul.mubr.bf16.gmra.mrb[0].mxu0 %v4148
    %v4195 = vpop.f32.mrb[0].mxu0
    %v4196 = vadd.f32 %v4131, %v4195
    %v4197 = vpop.f32.mrb[0].mxu0
    %v4198 = vpop.f32.mrb[0].mxu0
    %v4199 = vadd.f32 %v4131, %v4198
    %v4200 = vpop.f32.mrb[0].mxu0
    %4201 = vmatprep.mubr.bf16.mxu0 0
    %4202 = vmatmul.mubr.bf16.gmra.mrb[0].mxu0 %v4151
    %v4203 = vpop.f32.mrb[0].mxu0
    %v4204 = vadd.f32 %v4131, %v4203
    %v4205 = vpop.f32.mrb[0].mxu0
    %v4206 = vpop.f32.mrb[0].mxu0
    %v4207 = vadd.f32 %v4131, %v4206
    %v4208 = vpop.f32.mrb[0].mxu0
    %4209 = vdwg.mxu0
    %v4210 = vmul.f32 %v4188, %v4188
    %v4211 = vmul.f32 %v4191, %v4191
    %v4212 = vmul.f32 %v4196, %v4196
    %v4213 = vmul.f32 %v4199, %v4199
    %v4214 = vmul.f32 %v4204, %v4204
    %v4215 = vmul.f32 %v4207, %v4207
    %v4216 = vmul.f32 %v4188, %v4210
    %v4217 = vmul.f32 %v4191, %v4211
    %v4218 = vmul.f32 %v4196, %v4212
    %v4219 = vmul.f32 %v4199, %v4213
    %v4220 = vmul.f32 %v4204, %v4214
    %v4221 = vmul.f32 %v4207, %v4215
    %v4222 = vmul.f32 %v4216, 0.044715
    %v4223 = vmul.f32 %v4217, 0.044715
    %v4224 = vmul.f32 %v4218, 0.044715
    %v4225 = vmul.f32 %v4219, 0.044715
    %v4226 = vmul.f32 %v4220, 0.044715
    %v4227 = vmul.f32 %v4221, 0.044715
    %v4228 = vadd.f32 %v4188, %v4222
    %v4229 = vadd.f32 %v4191, %v4223
    %v4230 = vadd.f32 %v4196, %v4224
    %v4231 = vadd.f32 %v4199, %v4225
    %v4232 = vadd.f32 %v4204, %v4226
    %v4233 = vadd.f32 %v4207, %v4227
    %v4234 = vmul.f32 %v4228, 0.7978846
    %v4235 = vmul.f32 %v4229, 0.7978846
    %v4236 = vmul.f32 %v4230, 0.7978846
    %v4237 = vmul.f32 %v4231, 0.7978846
    %v4238 = vmul.f32 %v4232, 0.7978846
    %v4239 = vmul.f32 %v4233, 0.7978846
    %v4240 = vtanh.pop %v4234
    %v4241 = vtanh.pop %v4235
    %v4242 = vtanh.pop %v4236
    %v4243 = vtanh.pop %v4237
    %v4244 = vtanh.pop %v4238
    %v4245 = vtanh.pop %v4239
    %v4246 = vadd.f32 %v4240, 1.0
    %v4247 = vadd.f32 %v4241, 1.0
    %v4248 = vadd.f32 %v4242, 1.0
    %v4249 = vadd.f32 %v4243, 1.0
    %v4250 = vadd.f32 %v4244, 1.0
    %v4251 = vadd.f32 %v4245, 1.0
    %v4252 = vmul.f32 %v4246, 0.5
    %v4253 = vmul.f32 %v4247, 0.5
    %v4254 = vmul.f32 %v4248, 0.5
    %v4255 = vmul.f32 %v4249, 0.5
    %v4256 = vmul.f32 %v4250, 0.5
    %v4257 = vmul.f32 %v4251, 0.5
    %v4258 = vmul.f32 %v4188, %v4252
    %v4259 = vmul.f32 %v4191, %v4253
    %v4260 = vmul.f32 %v4196, %v4254
    %v4261 = vmul.f32 %v4199, %v4255
    %v4262 = vmul.f32 %v4204, %v4256
    %v4263 = vmul.f32 %v4207, %v4257
    %v4264 = vpack.c.bf16 %v4259, %v4258
    %v4265 = vpack.c.bf16 %v4261, %v4260
    %v4266 = vpack.c.bf16 %v4263, %v4262
    %v4267 = vld [vmem:[%s1 + $0xc0] sm:$0xf]
    %v4268 = vld [vmem:[%s1 + $0xc4] sm:$0xf]
    %v4269 = vld [vmem:[%s1 + $0xc8] sm:$0xf]
    %v4270 = vld [vmem:[%s1 + $0xcc] sm:$0xf]
    %v4271 = vld [vmem:[%s1 + $0xd0] sm:$0xf]
    %v4272 = vld [vmem:[%s1 + $0xd4] sm:$0xf]
    %v4273 = vld [vmem:[%s1 + $0xd8] sm:$0xf]
    %v4274 = vld [vmem:[%s1 + $0xdc] sm:$0xf]
    %v4275 = vld [vmem:[%s1 + $0xe0] sm:$0xf]
    %v4276 = vld [vmem:[%s1 + $0xe4] sm:$0xf]
    %v4277 = vld [vmem:[%s1 + $0xe8] sm:$0xf]
    %v4278 = vld [vmem:[%s1 + $0xec] sm:$0xf]
    %v4279 = vld [vmem:[%s1 + $0xf0] sm:$0xf]
    %v4280 = vld [vmem:[%s1 + $0xf4] sm:$0xf]
    %v4281 = vld [vmem:[%s1 + $0xf8] sm:$0xf]
    %v4282 = vld [vmem:[%s1 + $0xfc] sm:$0xf]
    %v4283 = vld [vmem:[%s2 + $0x27] sm:$0x1]
    %v4284 = vlaneseq
    %v4285 = vshrl.u32 %v4284, 7
    %v4286 = vsub.s32 0, %v4285
    %v4287 = vrot.slane %v4283, %v4286
    %v4304 = vunpack.c.l.b16 %v4267
    %v4305 = vunpack.c.l.b16 %v4268
    %v4306 = vunpack.c.l.b16 %v4269
    %v4307 = vunpack.c.l.b16 %v4270
    %v4308 = vunpack.c.l.b16 %v4271
    %v4309 = vunpack.c.l.b16 %v4272
    %v4310 = vunpack.c.l.b16 %v4273
    %v4311 = vunpack.c.l.b16 %v4274
    %v4312 = vunpack.c.l.b16 %v4275
    %v4313 = vunpack.c.l.b16 %v4276
    %v4314 = vunpack.c.l.b16 %v4277
    %v4315 = vunpack.c.l.b16 %v4278
    %v4316 = vunpack.c.l.b16 %v4279
    %v4317 = vunpack.c.l.b16 %v4280
    %v4318 = vunpack.c.l.b16 %v4281
    %v4319 = vunpack.c.l.b16 %v4282
    %v4320 = vpack.c.b16 %v4305, %v4304
    %v4321 = vpack.c.b16 %v4307, %v4306
    %v4322 = vpack.c.b16 %v4309, %v4308
    %v4323 = vpack.c.b16 %v4311, %v4310
    %v4324 = vpack.c.b16 %v4313, %v4312
    %v4325 = vpack.c.b16 %v4315, %v4314
    %v4326 = vpack.c.b16 %v4317, %v4316
    %v4327 = vpack.c.b16 %v4319, %v4318
    %4336 = vmatprep.subr.bf16.mxu0 0
    %4337 = vmatpush1.bf16.msra.mxu0 %v4320
    %4338 = vmatprep.subr.bf16.mxu0 0
    %4339 = vmatpush1.bf16.msra.mxu0 %v4321
    %4340 = vmatprep.subr.bf16.mxu0 0
    %4341 = vmatpush1.bf16.msra.mxu0 %v4322
    %4342 = vmatprep.subr.bf16.mxu0 0
    %4343 = vmatpush1.bf16.msra.mxu0 %v4323
    %4344 = vmatprep.subr.bf16.mxu0 0
    %4345 = vmatpush1.bf16.msra.mxu0 %v4324
    %4346 = vmatprep.subr.bf16.mxu0 0
    %4347 = vmatpush1.bf16.msra.mxu0 %v4325
    %4348 = vmatprep.subr.bf16.mxu0 0
    %4349 = vmatpush1.bf16.msra.mxu0 %v4326
    %4350 = vmatprep.subr.bf16.mxu0 0
    %4351 = vmatpush1.bf16.msra.mxu0 %v4327
    %4352 = vmatprep.subr.bf16.mxu0 0
    %4353 = vmatpush1.bf16.msra.mxu0 0
    %4354 = vmatprep.subr.bf16.mxu0 0
    %4355 = vmatpush1.bf16.msra.mxu0 0
    %4356 = vmatprep.subr.bf16.mxu0 0
    %4357 = vmatpush1.bf16.msra.mxu0 0
    %4358 = vmatprep.subr.bf16.mxu0 0
    %4359 = vmatpush1.bf16.msra.mxu0 0
    %4360 = vmatprep.subr.bf16.mxu0 0
    %4361 = vmatpush1.bf16.msra.mxu0 0
    %4362 = vmatprep.subr.bf16.mxu0 0
    %4363 = vmatpush1.bf16.msra.mxu0 0
    %4364 = vmatprep.subr.bf16.mxu0 0
    %4365 = vmatpush1.bf16.msra.mxu0 0
    %4366 = vmatprep.subr.bf16.mxu0 0
    %4367 = vmatpush1.bf16.msra.mxu0 0
    %4368 = vmatprep.mubr.bf16.mxu0 0
    %4369 = vmatmul.mubr.bf16.gmra.mrb[0].mxu0 %v4264
    %v4370 = vpop.f32.mrb[0].mxu0
    %v4371 = vadd.f32 %v4287, %v4370
    %v4372 = vpop.f32.mrb[0].mxu0
    %v4373 = vpop.f32.mrb[0].mxu0
    %v4374 = vadd.f32 %v4287, %v4373
    %v4375 = vpop.f32.mrb[0].mxu0
    %4376 = vmatprep.mubr.bf16.mxu0 0
    %4377 = vmatmul.mubr.bf16.gmra.mrb[0].mxu0 %v4265
    %v4378 = vpop.f32.mrb[0].mxu0
    %v4379 = vadd.f32 %v4287, %v4378
    %v4380 = vpop.f32.mrb[0].mxu0
    %v4381 = vpop.f32.mrb[0].mxu0
    %v4382 = vadd.f32 %v4287, %v4381
    %v4383 = vpop.f32.mrb[0].mxu0
    %4384 = vmatprep.mubr.bf16.mxu0 0
    %4385 = vmatmul.mubr.bf16.gmra.mrb[0].mxu0 %v4266
    %v4386 = vpop.f32.mrb[0].mxu0
    %v4387 = vadd.f32 %v4287, %v4386
    %v4388 = vpop.f32.mrb[0].mxu0
    %v4389 = vpop.f32.mrb[0].mxu0
    %v4390 = vadd.f32 %v4287, %v4389
    %v4391 = vpop.f32.mrb[0].mxu0
    %4392 = vdwg.mxu0
    %v4393 = vadd.f32 %v4014, %v4371
    %v4394 = vadd.f32 %v4015, %v4374
    %v4395 = vadd.f32 %v4016, %v4379
    %v4396 = vadd.f32 %v4017, %v4382
    %v4397 = vadd.f32 %v4018, %v4387
    %v4398 = vadd.f32 %v4019, %v4390
    %v4399 = vld [vmem:[%s2 + $0x28] sm:$0x1]
    %v4400 = vld [vmem:[%s2 + $0x29] sm:$0x1]
    %v4401 = vsel %vm154, %v4393, 0.0
    %4402 = vadd.xlane.f32.xlu0 %v4401
    %v4403 = vpop.xlane.xlu0 %4402
    %v4404 = vsel %vm154, %v4394, 0.0
    %4405 = vadd.xlane.f32.xlu0 %v4404
    %v4406 = vpop.xlane.xlu0 %4405
    %v4407 = vsel %vm154, %v4395, 0.0
    %4408 = vadd.xlane.f32.xlu0 %v4407
    %v4409 = vpop.xlane.xlu0 %4408
    %v4410 = vsel %vm154, %v4396, 0.0
    %4411 = vadd.xlane.f32.xlu0 %v4410
    %v4412 = vpop.xlane.xlu0 %4411
    %v4413 = vsel %vm154, %v4397, 0.0
    %4414 = vadd.xlane.f32.xlu0 %v4413
    %v4415 = vpop.xlane.xlu0 %4414
    %v4416 = vsel %vm154, %v4398, 0.0
    %4417 = vadd.xlane.f32.xlu0 %v4416
    %v4418 = vpop.xlane.xlu0 %4417
    %v4419 = vmul.f32 %v4403, %v173
    %v4420 = vmul.f32 %v4406, %v173
    %v4421 = vmul.f32 %v4409, %v173
    %v4422 = vmul.f32 %v4412, %v173
    %v4423 = vmul.f32 %v4415, %v173
    %v4424 = vmul.f32 %v4418, %v173
    %v4425 = vsub.f32 %v4393, %v4419
    %v4426 = vsub.f32 %v4394, %v4420
    %v4427 = vsub.f32 %v4395, %v4421
    %v4428 = vsub.f32 %v4396, %v4422
    %v4429 = vsub.f32 %v4397, %v4423
    %v4430 = vsub.f32 %v4398, %v4424
    %v4431 = vmul.f32 %v4425, %v4425
    %v4432 = vmul.f32 %v4426, %v4426
    %v4433 = vmul.f32 %v4427, %v4427
    %v4434 = vmul.f32 %v4428, %v4428
    %v4435 = vmul.f32 %v4429, %v4429
    %v4436 = vmul.f32 %v4430, %v4430
    %v4437 = vsel %vm154, %v4431, 0.0
    %4438 = vadd.xlane.f32.xlu0 %v4437
    %v4439 = vpop.xlane.xlu0 %4438
    %v4440 = vsel %vm154, %v4432, 0.0
    %4441 = vadd.xlane.f32.xlu0 %v4440
    %v4442 = vpop.xlane.xlu0 %4441
    %v4443 = vsel %vm154, %v4433, 0.0
    %4444 = vadd.xlane.f32.xlu0 %v4443
    %v4445 = vpop.xlane.xlu0 %4444
    %v4446 = vsel %vm154, %v4434, 0.0
    %4447 = vadd.xlane.f32.xlu0 %v4446
    %v4448 = vpop.xlane.xlu0 %4447
    %v4449 = vsel %vm154, %v4435, 0.0
    %4450 = vadd.xlane.f32.xlu0 %v4449
    %v4451 = vpop.xlane.xlu0 %4450
    %v4452 = vsel %vm154, %v4436, 0.0
    %4453 = vadd.xlane.f32.xlu0 %v4452
    %v4454 = vpop.xlane.xlu0 %4453
    %v4455 = vmul.f32 %v4439, %v173
    %v4456 = vmul.f32 %v4442, %v173
    %v4457 = vmul.f32 %v4445, %v173
    %v4458 = vmul.f32 %v4448, %v173
    %v4459 = vmul.f32 %v4451, %v173
    %v4460 = vmul.f32 %v4454, %v173
    %v4461 = vadd.f32 %v4455, 1e-05
    %v4462 = vadd.f32 %v4456, 1e-05
    %v4463 = vadd.f32 %v4457, 1e-05
    %v4464 = vadd.f32 %v4458, 1e-05
    %v4465 = vadd.f32 %v4459, 1e-05
    %v4466 = vadd.f32 %v4460, 1e-05
    %v4467 = vrsqrt.pop %v4461
    %v4468 = vrsqrt.pop %v4462
    %v4469 = vrsqrt.pop %v4463
    %v4470 = vrsqrt.pop %v4464
    %v4471 = vrsqrt.pop %v4465
    %v4472 = vrsqrt.pop %v4466
    %v4473 = vmul.f32 %v4425, %v4467
    %v4474 = vmul.f32 %v4426, %v4468
    %v4475 = vmul.f32 %v4427, %v4469
    %v4476 = vmul.f32 %v4428, %v4470
    %v4477 = vmul.f32 %v4429, %v4471
    %v4478 = vmul.f32 %v4430, %v4472
    %v4479 = vlaneseq
    %v4480 = vshrl.u32 %v4479, 7
    %v4481 = vsub.s32 0, %v4480
    %v4482 = vrot.slane %v4399, %v4481
    %v4483 = vmul.f32 %v4473, %v4482
    %v4484 = vmul.f32 %v4474, %v4482
    %v4485 = vmul.f32 %v4475, %v4482
    %v4486 = vmul.f32 %v4476, %v4482
    %v4487 = vmul.f32 %v4477, %v4482
    %v4488 = vmul.f32 %v4478, %v4482
    %v4489 = vlaneseq
    %v4490 = vshrl.u32 %v4489, 7
    %v4491 = vsub.s32 0, %v4490
    %v4492 = vrot.slane %v4400, %v4491
    %v4493 = vadd.f32 %v4483, %v4492
    %v4494 = vadd.f32 %v4484, %v4492
    %v4495 = vadd.f32 %v4485, %v4492
    %v4496 = vadd.f32 %v4486, %v4492
    %v4497 = vadd.f32 %v4487, %v4492
    %v4498 = vadd.f32 %v4488, %v4492
    %v4499 = vsel %vm154, %v4493, 0.0
    %v4500 = vsel %vm154, %v4494, 0.0
    %v4501 = vsel %vm154, %v4495, 0.0
    %v4502 = vsel %vm154, %v4496, 0.0
    %v4503 = vsel %vm154, %v4497, 0.0
    %v4504 = vsel %vm154, %v4498, 0.0
    %4505 = vst [vmem:[#allocation2] sm:$0xff] %v4499
    %4506 = vst [vmem:[#allocation2 + $0x8] sm:$0xff] %v4500
    %4507 = vst [vmem:[#allocation2 + $0x10] sm:$0xff] %v4501
    %4508 = vst [vmem:[#allocation2 + $0x18] sm:$0xff] %v4502
    %4509 = vst [vmem:[#allocation2 + $0x20] sm:$0xff] %v4503
    %4510 = vst [vmem:[#allocation2 + $0x28] sm:$0xff] %v4504
    %v4511 = vld [vmem:[%s2 + $0x2a] sm:$0x1]
    %v4512 = vld [vmem:[%s2 + $0x2b] sm:$0x1]
    %4513 = vadd.xlane.f32.xlu0 %v4499
    %v4514 = vpop.xlane.xlu0 %4513
    %4515 = vadd.xlane.f32.xlu0 %v4500
    %v4516 = vpop.xlane.xlu0 %4515
    %4517 = vadd.xlane.f32.xlu0 %v4501
    %v4518 = vpop.xlane.xlu0 %4517
    %4519 = vadd.xlane.f32.xlu0 %v4502
    %v4520 = vpop.xlane.xlu0 %4519
    %4521 = vadd.xlane.f32.xlu0 %v4503
    %v4522 = vpop.xlane.xlu0 %4521
    %4523 = vadd.xlane.f32.xlu0 %v4504
    %v4524 = vpop.xlane.xlu0 %4523
    %v4525 = vmul.f32 %v4514, %v173
    %v4526 = vmul.f32 %v4516, %v173
    %v4527 = vmul.f32 %v4518, %v173
    %v4528 = vmul.f32 %v4520, %v173
    %v4529 = vmul.f32 %v4522, %v173
    %v4530 = vmul.f32 %v4524, %v173
    %v4531 = vsub.f32 %v4493, %v4525
    %v4532 = vsub.f32 %v4494, %v4526
    %v4533 = vsub.f32 %v4495, %v4527
    %v4534 = vsub.f32 %v4496, %v4528
    %v4535 = vsub.f32 %v4497, %v4529
    %v4536 = vsub.f32 %v4498, %v4530
    %v4537 = vmul.f32 %v4531, %v4531
    %v4538 = vmul.f32 %v4532, %v4532
    %v4539 = vmul.f32 %v4533, %v4533
    %v4540 = vmul.f32 %v4534, %v4534
    %v4541 = vmul.f32 %v4535, %v4535
    %v4542 = vmul.f32 %v4536, %v4536
    %v4543 = vsel %vm154, %v4537, 0.0
    %4544 = vadd.xlane.f32.xlu0 %v4543
    %v4545 = vpop.xlane.xlu0 %4544
    %v4546 = vsel %vm154, %v4538, 0.0
    %4547 = vadd.xlane.f32.xlu0 %v4546
    %v4548 = vpop.xlane.xlu0 %4547
    %v4549 = vsel %vm154, %v4539, 0.0
    %4550 = vadd.xlane.f32.xlu0 %v4549
    %v4551 = vpop.xlane.xlu0 %4550
    %v4552 = vsel %vm154, %v4540, 0.0
    %4553 = vadd.xlane.f32.xlu0 %v4552
    %v4554 = vpop.xlane.xlu0 %4553
    %v4555 = vsel %vm154, %v4541, 0.0
    %4556 = vadd.xlane.f32.xlu0 %v4555
    %v4557 = vpop.xlane.xlu0 %4556
    %v4558 = vsel %vm154, %v4542, 0.0
    %4559 = vadd.xlane.f32.xlu0 %v4558
    %v4560 = vpop.xlane.xlu0 %4559
    %v4561 = vmul.f32 %v4545, %v173
    %v4562 = vmul.f32 %v4548, %v173
    %v4563 = vmul.f32 %v4551, %v173
    %v4564 = vmul.f32 %v4554, %v173
    %v4565 = vmul.f32 %v4557, %v173
    %v4566 = vmul.f32 %v4560, %v173
    %v4567 = vadd.f32 %v4561, 1e-05
    %v4568 = vadd.f32 %v4562, 1e-05
    %v4569 = vadd.f32 %v4563, 1e-05
    %v4570 = vadd.f32 %v4564, 1e-05
    %v4571 = vadd.f32 %v4565, 1e-05
    %v4572 = vadd.f32 %v4566, 1e-05
    %v4573 = vrsqrt.pop %v4567
    %v4574 = vrsqrt.pop %v4568
    %v4575 = vrsqrt.pop %v4569
    %v4576 = vrsqrt.pop %v4570
    %v4577 = vrsqrt.pop %v4571
    %v4578 = vrsqrt.pop %v4572
    %v4579 = vmul.f32 %v4531, %v4573
    %v4580 = vmul.f32 %v4532, %v4574
    %v4581 = vmul.f32 %v4533, %v4575
    %v4582 = vmul.f32 %v4534, %v4576
    %v4583 = vmul.f32 %v4535, %v4577
    %v4584 = vmul.f32 %v4536, %v4578
    %v4585 = vlaneseq
    %v4586 = vshrl.u32 %v4585, 7
    %v4587 = vsub.s32 0, %v4586
    %v4588 = vrot.slane %v4511, %v4587
    %v4589 = vmul.f32 %v4579, %v4588
    %v4590 = vmul.f32 %v4580, %v4588
    %v4591 = vmul.f32 %v4581, %v4588
    %v4592 = vmul.f32 %v4582, %v4588
    %v4593 = vmul.f32 %v4583, %v4588
    %v4594 = vmul.f32 %v4584, %v4588
    %v4595 = vlaneseq
    %v4596 = vshrl.u32 %v4595, 7
    %v4597 = vsub.s32 0, %v4596
    %v4598 = vrot.slane %v4512, %v4597
    %v4599 = vadd.f32 %v4589, %v4598
    %v4600 = vadd.f32 %v4590, %v4598
    %v4601 = vadd.f32 %v4591, %v4598
    %v4602 = vadd.f32 %v4592, %v4598
    %v4603 = vadd.f32 %v4593, %v4598
    %v4604 = vadd.f32 %v4594, %v4598
    %v4605 = vpack.c.bf16 %v4600, %v4599
    %v4606 = vpack.c.bf16 %v4602, %v4601
    %v4607 = vpack.c.bf16 %v4604, %v4603
    %v4608 = vld [vmem:[%s1 + $0x100] sm:$0xf]
    %v4609 = vld [vmem:[%s1 + $0x104] sm:$0xf]
    %v4610 = vld [vmem:[%s1 + $0x108] sm:$0xf]
    %v4611 = vld [vmem:[%s1 + $0x10c] sm:$0xf]
    %v4612 = vld [vmem:[%s2 + $0x2c] sm:$0x1]
    %v4613 = vlaneseq
    %v4614 = vshrl.u32 %v4613, 7
    %v4615 = vsub.s32 0, %v4614
    %v4616 = vrot.slane %v4612, %v4615
    %v4621 = vunpack.c.l.b16 %v4608
    %v4622 = vunpack.c.l.b16 %v4609
    %v4623 = vunpack.c.l.b16 %v4610
    %v4624 = vunpack.c.l.b16 %v4611
    %v4625 = vpack.c.b16 %v4622, %v4621
    %v4626 = vpack.c.b16 %v4624, %v4623
    %v4630 = vsel %vm154, %v4605, 0
    %v4633 = vsel %vm154, %v4606, 0
    %v4636 = vsel %vm154, %v4607, 0
    %4638 = vmatprep.subr.bf16.mxu0 0
    %4639 = vmatpush1.bf16.msra.mxu0 %v4625
    %4640 = vmatprep.subr.bf16.mxu0 0
    %4641 = vmatpush1.bf16.msra.mxu0 %v4626
    %4642 = vmatprep.subr.bf16.mxu0 0
    %4643 = vmatpush1.bf16.msra.mxu0 0
    %4644 = vmatprep.subr.bf16.mxu0 0
    %4645 = vmatpush1.bf16.msra.mxu0 0
    %4646 = vmatprep.subr.bf16.mxu0 0
    %4647 = vmatpush1.bf16.msra.mxu0 0
    %4648 = vmatprep.subr.bf16.mxu0 0
    %4649 = vmatpush1.bf16.msra.mxu0 0
    %4650 = vmatprep.subr.bf16.mxu0 0
    %4651 = vmatpush1.bf16.msra.mxu0 0
    %4652 = vmatprep.subr.bf16.mxu0 0
    %4653 = vmatpush1.bf16.msra.mxu0 0
    %4654 = vmatprep.subr.bf16.mxu0 0
    %4655 = vmatpush1.bf16.msra.mxu0 0
    %4656 = vmatprep.subr.bf16.mxu0 0
    %4657 = vmatpush1.bf16.msra.mxu0 0
    %4658 = vmatprep.subr.bf16.mxu0 0
    %4659 = vmatpush1.bf16.msra.mxu0 0
    %4660 = vmatprep.subr.bf16.mxu0 0
    %4661 = vmatpush1.bf16.msra.mxu0 0
    %4662 = vmatprep.subr.bf16.mxu0 0
    %4663 = vmatpush1.bf16.msra.mxu0 0
    %4664 = vmatprep.subr.bf16.mxu0 0
    %4665 = vmatpush1.bf16.msra.mxu0 0
    %4666 = vmatprep.subr.bf16.mxu0 0
    %4667 = vmatpush1.bf16.msra.mxu0 0
    %4668 = vmatprep.subr.bf16.mxu0 0
    %4669 = vmatpush1.bf16.msra.mxu0 0
    %4670 = vmatprep.mubr.bf16.mxu0 0
    %4671 = vmatmul.mubr.bf16.gmra.mrb[0].mxu0 %v4630
    %v4672 = vpop.f32.mrb[0].mxu0
    %v4673 = vadd.f32 %v4616, %v4672
    %v4674 = vpop.f32.mrb[0].mxu0
    %v4675 = vpop.f32.mrb[0].mxu0
    %v4676 = vadd.f32 %v4616, %v4675
    %v4677 = vpop.f32.mrb[0].mxu0
    %4678 = vmatprep.mubr.bf16.mxu0 0
    %4679 = vmatmul.mubr.bf16.gmra.mrb[0].mxu0 %v4633
    %v4680 = vpop.f32.mrb[0].mxu0
    %v4681 = vadd.f32 %v4616, %v4680
    %v4682 = vpop.f32.mrb[0].mxu0
    %v4683 = vpop.f32.mrb[0].mxu0
    %v4684 = vadd.f32 %v4616, %v4683
    %v4685 = vpop.f32.mrb[0].mxu0
    %4686 = vmatprep.mubr.bf16.mxu0 0
    %4687 = vmatmul.mubr.bf16.gmra.mrb[0].mxu0 %v4636
    %v4688 = vpop.f32.mrb[0].mxu0
    %v4689 = vadd.f32 %v4616, %v4688
    %v4690 = vpop.f32.mrb[0].mxu0
    %v4691 = vpop.f32.mrb[0].mxu0
    %v4692 = vadd.f32 %v4616, %v4691
    %v4693 = vpop.f32.mrb[0].mxu0
    %4694 = vdwg.mxu0
    %4695 = vst [vmem:[%s3] sm:$0xff] %v4673
    %4696 = vst [vmem:[%s3 + $0x8] sm:$0xff] %v4676
    %4697 = vst [vmem:[%s3 + $0x10] sm:$0xff] %v4681
    %4698 = vst [vmem:[%s3 + $0x18] sm:$0xff] %v4684
    %4699 = vst [vmem:[%s3 + $0x20] sm:$0xff] %v4689
    %4700 = vst [vmem:[%s3 + $0x28] sm:$0xff] %v4692
    // Predicated region
    $region14: #{minivit_forward.1} parent=1 // pred_check
      _
    $region15: #{minivit_forward.1} parent=1 // pred_check_branch
      %4702 = sbr.rel (0) target = $region17
    $region16: #{minivit_forward.1} parent=1 // pred_region
      _
    $region17: #{minivit_forward.1} parent=1 // pred_fallthru
      _
    // Predicated region
    $region18: #{minivit_forward.1} parent=1 // pred_check
      _
    $region19: #{minivit_forward.1} parent=1 // pred_check_branch
      %4704 = sbr.rel (0) target = $region21
    $region20: #{minivit_forward.1} parent=1 // pred_region
      %s4706 = ssub.s32 768, 768
      %4707 = vsyncadd [#allocation3], %s4706
      %s4708 = sshll.u32 [#allocation2], 4
      %s4709 = int_to_ptr.vmem [resolvable:$true] %s4708
      %4714 = dma.vmem_to_hbm [thread:$0]  %s4709, 768, %s4, [#allocation3], 128, 128, 8
    $region21: #{minivit_forward.1} parent=1 // pred_fallthru
      _
    // Predicated region
    $region22: #{minivit_forward.1} parent=1 // pred_check
      _
    $region23: #{minivit_forward.1} parent=1 // pred_check_branch
      %4716 = sbr.rel (0) target = $region25
    $region24: #{minivit_forward.1} parent=1 // pred_region
      _
    $region25: #{minivit_forward.1} parent=1 // pred_fallthru
      _
    // Predicated region
    $region26: #{minivit_forward.1} parent=1 // pred_check
      _
    $region27: #{minivit_forward.1} parent=1 // pred_check_branch
      %4718 = sbr.rel (0) target = $region29
    $region28: #{minivit_forward.1} parent=1 // pred_region
      %4719 = dma.done [#allocation3], 768
    $region29: #{minivit_forward.1} parent=1 // pred_fallthru
      _
    %4720 = vsyncpa [#allocation3], 1

</llo_original>
